<compile_context>
chip_gen: v7x
topology: tpu7x:2x2x1
jax: 0.10.0
libtpu: 0.0.40
codegen_flags: <defaults>
</compile_context>

<pallas_src>
import functools
import math

import jax
import jax.numpy as jnp
from jax import lax
from jax.experimental import pallas as pl
from jax.experimental.pallas import tpu as pltpu

# ---------------- small GPT-2 config ----------------
VOCAB = 64
N_EMBD = 32
N_HEAD = 4
HEAD_DIM = N_EMBD // N_HEAD
N_LAYER = 2
N_CTX = 16
EPS = 1e-5
LANE = 128                     # lane-dense output row width
MASK_VALUE = -1e9              # single finite mask value
MXU_DTYPE = jnp.bfloat16       # MXU operand dtype (f32 accumulation)


# ---------------- fused whole-model kernel (whole batch per program) ---------
def _gpt2_reward_kernel(
    h0_ref, mask_ref,
    ln1_g_ref, ln1_b_ref,
    wq_ref, bq_ref, wk_ref, bk_ref, wv_ref, bv_ref,
    proj_w_ref, proj_b_ref,
    ln2_g_ref, ln2_b_ref,
    fc_w_ref, fc_b_ref, fc2_w_ref, fc2_b_ref,
    lnf_g_ref, lnf_b_ref, head_w_ref, head_b_ref,
    out_ref, *, apply_sigmoid):
  BB, S, D = h0_ref.shape                  # batch rows handled by this program
  R = BB * S                               # token rows folded onto sublanes
  Dh = D // N_HEAD

  # residual stream, f32, (R, D)
  h = h0_ref[...].astype(jnp.float32).reshape(R, D)

  # causal + key-padding additive bias, built once in-kernel (hoisted).
  q_idx = lax.broadcasted_iota(jnp.int32, (S, S), 0)
  k_idx = lax.broadcasted_iota(jnp.int32, (S, S), 1)
  causal = (k_idx <= q_idx)[None, :, :]                    # (1, S, S)
  keep = jnp.logical_and(causal, mask_ref[...] > 0.5)      # (BB, S, S)
  bias = jnp.where(keep, 0.0, MASK_VALUE).astype(jnp.float32)

  def _ln(x, g, b):                        # layernorm, f32 statistics
    mu = jnp.mean(x, axis=-1, keepdims=True)
    var = jnp.mean(jnp.square(x - mu), axis=-1, keepdims=True)
    return (x - mu) * lax.rsqrt(var + EPS) * g + b

  def _mm(x, w):                           # bf16 MXU operands, f32 accumulate
    return jnp.dot(x.astype(MXU_DTYPE), w, preferred_element_type=jnp.float32)

  def layer(l, h):
    # ---------- attention block (pre-LN) ----------
    x = _ln(h, ln1_g_ref[l], ln1_b_ref[l])                 # (R, D)
    xb = x.astype(MXU_DTYPE)
    attn = jnp.zeros((R, D), jnp.float32)
    for hh in range(N_HEAD):
      g = l * N_HEAD + hh                                  # per-(layer, head) weight row
      # per-head Q/K/V straight from the slab (weights pre-split in wrapper,
      # softmax scale already folded into wq/bq) -> no activation lane slices
      q = (jnp.dot(xb, wq_ref[g], preferred_element_type=jnp.float32)
           + bq_ref[g]).reshape(BB, S, Dh)
      k = (jnp.dot(xb, wk_ref[g], preferred_element_type=jnp.float32)
           + bk_ref[g]).reshape(BB, S, Dh)
      v = (jnp.dot(xb, wv_ref[g], preferred_element_type=jnp.float32)
           + bv_ref[g]).reshape(BB, S, Dh)
      s = jnp.einsum('bqd,bkd->bqk', q.astype(MXU_DTYPE), k.astype(MXU_DTYPE),
                     preferred_element_type=jnp.float32) + bias   # (BB, S, S)
      s = s - jnp.max(s, axis=-1, keepdims=True)
      p = jnp.exp(s)
      p = p * pl.reciprocal(jnp.sum(p, axis=-1, keepdims=True), approx=True)
      o = jnp.einsum('bqk,bkd->bqd', p.astype(MXU_DTYPE), v.astype(MXU_DTYPE),
                     preferred_element_type=jnp.float32)          # (BB, S, Dh)
      # accumulate directly through the output projection: no lane concat
      attn = attn + jnp.dot(o.reshape(R, Dh).astype(MXU_DTYPE), proj_w_ref[g],
                            preferred_element_type=jnp.float32)
    h = h + attn + proj_b_ref[l]
    # ---------- MLP block (pre-LN) ----------
    x = _ln(h, ln2_g_ref[l], ln2_b_ref[l])
    m = _mm(x, fc_w_ref[l]) + fc_b_ref[l]
    m = jax.nn.gelu(m, approximate=True)                   # GPT-2 "gelu_new"
    m = _mm(m, fc2_w_ref[l]) + fc2_b_ref[l]
    return h + m

  h = lax.fori_loop(0, N_LAYER, layer, h, unroll=True)

  hf = _ln(h, lnf_g_ref[...], lnf_b_ref[...])              # final LN, (R, D)
  pooled = jnp.mean(hf.reshape(BB, S, D), axis=1)          # (BB, D), all positions
  # dropout(p=0.1) is identity at inference.
  # TODO(synk): train-mode stochastic dropout would use pltpu.prng_* here.
  logit = jnp.sum(pooled * head_w_ref[...], axis=-1, keepdims=True) \
      + head_b_ref[...]                                    # (BB, 1)
  if apply_sigmoid:
    logit = jax.nn.sigmoid(logit)

  # ONE lane-dense (1, LANE) store: batch element b goes to lane b.
  lane = lax.broadcasted_iota(jnp.int32, (BB, LANE), 1)
  bidx = lax.broadcasted_iota(jnp.int32, (BB, LANE), 0)
  row = jnp.sum(jnp.where(lane == bidx, logit, 0.0), axis=0, keepdims=True)
  out_ref[...] = row.astype(out_ref.dtype)


def _zero_map(ndim):
  return lambda b, n=ndim: (0,) * n


# ---------------- parameters (deterministic, GPT-2-style init, f32) ----------
def init_params(key):
  keys = iter(jax.random.split(key, 3 + 4 * N_LAYER))
  nrm = lambda k, s: (0.02 * jax.random.normal(k, s)).astype(jnp.float32)
  ones = lambda s: jnp.ones(s, jnp.float32)
  zeros = lambda s: jnp.zeros(s, jnp.float32)

  wte = nrm(next(keys), (VOCAB, N_EMBD))
  wpe = nrm(next(keys), (N_CTX, N_EMBD))
  attn_w = jnp.stack([nrm(next(keys), (N_EMBD, 3 * N_EMBD)) for _ in range(N_LAYER)])
  proj_w = jnp.stack([nrm(next(keys), (N_EMBD, N_EMBD)) for _ in range(N_LAYER)])
  fc_w = jnp.stack([nrm(next(keys), (N_EMBD, 4 * N_EMBD)) for _ in range(N_LAYER)])
  fc2_w = jnp.stack([nrm(next(keys), (4 * N_EMBD, N_EMBD)) for _ in range(N_LAYER)])

  # regression head: xavier_uniform on torch (1, n_embd) weight layout
  bound = math.sqrt(6.0 / (N_EMBD + 1))
  head_w = jax.random.uniform(next(keys), (1, N_EMBD), jnp.float32,
                              minval=-bound, maxval=bound)

  return {
      "wte": wte, "wpe": wpe,
      "ln1_g": ones((N_LAYER, 1, N_EMBD)), "ln1_b": zeros((N_LAYER, 1, N_EMBD)),
      "attn_w": attn_w, "attn_b": zeros((N_LAYER, 1, 3 * N_EMBD)),
      "proj_w": proj_w, "proj_b": zeros((N_LAYER, 1, N_EMBD)),
      "ln2_g": ones((N_LAYER, 1, N_EMBD)), "ln2_b": zeros((N_LAYER, 1, N_EMBD)),
      "fc_w": fc_w, "fc_b": zeros((N_LAYER, 1, 4 * N_EMBD)),
      "fc2_w": fc2_w, "fc2_b": zeros((N_LAYER, 1, N_EMBD)),
      "lnf_g": ones((1, N_EMBD)), "lnf_b": zeros((1, N_EMBD)),
      "head_w": head_w, "head_b": zeros((1, 1)),
  }


# ---------------- forward pass ----------------
@functools.partial(jax.jit, static_argnames=("apply_sigmoid", "num_batch_blocks"))
def gpt2_reward_forward(params, input_ids, attention_mask=None,
                        apply_sigmoid=False, num_batch_blocks=1):
  # num_batch_blocks=1: whole batch in one program (best on v5e/v6e, 1 TC).
  # num_batch_blocks=2: two batch blocks so both v7x TensorCores stay busy.
  B, S = input_ids.shape
  D, H, Dh, L = N_EMBD, N_HEAD, HEAD_DIM, N_LAYER
  NB = num_batch_blocks
  assert B % NB == 0, "batch must divide num_batch_blocks"
  BB = B // NB

  if attention_mask is None:
    attention_mask = jnp.ones((B, S), jnp.float32)
  mask = attention_mask.astype(jnp.float32).reshape(B, 1, S)

  # token + position embeddings (gather = glue, stays in plain JAX)
  h0 = (params["wte"][input_ids]
        + params["wpe"][:S][None, :, :]).astype(jnp.float32)        # (B, S, D)

  # --- wrapper-side weight pre-split: per-head QKV / proj, scale folded in ---
  q_scale = 1.0 / math.sqrt(Dh)
  aw, ab = params["attn_w"], params["attn_b"]

  def w_heads(w):   # (L, D, D) -> (L*H, D, Dh)
    return w.reshape(L, D, H, Dh).transpose(0, 2, 1, 3).reshape(L * H, D, Dh)

  def b_heads(b):   # (L, 1, D) -> (L*H, 1, Dh)
    return b.reshape(L, 1, H, Dh).transpose(0, 2, 1, 3).reshape(L * H, 1, Dh)

  wq = w_heads(aw[:, :, :D] * q_scale).astype(MXU_DTYPE)
  wk = w_heads(aw[:, :, D:2 * D]).astype(MXU_DTYPE)
  wv = w_heads(aw[:, :, 2 * D:]).astype(MXU_DTYPE)
  bq = b_heads(ab[:, :, :D] * q_scale)
  bk = b_heads(ab[:, :, D:2 * D])
  bv = b_heads(ab[:, :, 2 * D:])
  proj_wh = params["proj_w"].reshape(L, H, Dh, D).reshape(L * H, Dh, D) \
      .astype(MXU_DTYPE)

  weight_args = (
      params["ln1_g"], params["ln1_b"],
      wq, bq, wk, bk, wv, bv,
      proj_wh, params["proj_b"],
      params["ln2_g"], params["ln2_b"],
      params["fc_w"].astype(MXU_DTYPE), params["fc_b"],
      params["fc2_w"].astype(MXU_DTYPE), params["fc2_b"],
      params["lnf_g"], params["lnf_b"],
      params["head_w"], params["head_b"],
  )

  in_specs = [
      pl.BlockSpec((BB, S, D), lambda b: (b, 0, 0)),       # h0: batch block
      pl.BlockSpec((BB, 1, S), lambda b: (b, 0, 0)),       # attention mask
  ]
  # all weights: full-array VMEM blocks, constant block index (resident)
  in_specs += [pl.BlockSpec(w.shape, _zero_map(w.ndim)) for w in weight_args]

  kernel = functools.partial(_gpt2_reward_kernel, apply_sigmoid=apply_sigmoid)

  out = pl.pallas_call(
      kernel,
      out_shape=jax.ShapeDtypeStruct((NB, LANE), jnp.float32),
      grid=(NB,),
      in_specs=in_specs,
      out_specs=pl.BlockSpec((1, LANE), lambda b: (b, 0)),
      compiler_params=pltpu.CompilerParams(
          dimension_semantics=("parallel",)),
  )(h0, mask, *weight_args)

  return out[:, :BB].reshape(B)                            # (B,)


# ---------------- demo ----------------
if __name__ == "__main__":
  key = jax.random.PRNGKey(0)
  pkey, ikey = jax.random.split(key)
  params = init_params(pkey)

  B, S = 2, 8
  input_ids = jax.random.randint(ikey, (B, S), 0, VOCAB, dtype=jnp.int32)
  attention_mask = jnp.ones((B, S), jnp.float32).at[1, 6:].set(0.0)  # pad tail

  logits = gpt2_reward_forward(params, input_ids, attention_mask,
                               apply_sigmoid=False)
  probs = gpt2_reward_forward(params, input_ids, attention_mask,
                              apply_sigmoid=True)
  jax.block_until_ready((logits, probs))
  assert logits.shape == (B,) and probs.shape == (B,)
  assert bool(jnp.all(jnp.isfinite(logits)))
  assert bool(jnp.all((probs >= 0.0) & (probs <= 1.0)))
  print("KERNEL_OK")
</pallas_src>

<mosaic_0001>
module attributes {stable_mosaic.version = 11 : i64} {
  func.func @_gpt2_reward_kernel(%arg0: i32, %arg1: memref<2x8x32xf32, #tpu.memory_space<vmem>>, %arg2: memref<2x1x8xf32, #tpu.memory_space<vmem>>, %arg3: memref<2x1x32xf32, #tpu.memory_space<vmem>>, %arg4: memref<2x1x32xf32, #tpu.memory_space<vmem>>, %arg5: memref<8x32x8xbf16, #tpu.memory_space<vmem>>, %arg6: memref<8x1x8xf32, #tpu.memory_space<vmem>>, %arg7: memref<8x32x8xbf16, #tpu.memory_space<vmem>>, %arg8: memref<8x1x8xf32, #tpu.memory_space<vmem>>, %arg9: memref<8x32x8xbf16, #tpu.memory_space<vmem>>, %arg10: memref<8x1x8xf32, #tpu.memory_space<vmem>>, %arg11: memref<8x8x32xbf16, #tpu.memory_space<vmem>>, %arg12: memref<2x1x32xf32, #tpu.memory_space<vmem>>, %arg13: memref<2x1x32xf32, #tpu.memory_space<vmem>>, %arg14: memref<2x1x32xf32, #tpu.memory_space<vmem>>, %arg15: memref<2x32x128xbf16, #tpu.memory_space<vmem>>, %arg16: memref<2x1x128xf32, #tpu.memory_space<vmem>>, %arg17: memref<2x128x32xbf16, #tpu.memory_space<vmem>>, %arg18: memref<2x1x32xf32, #tpu.memory_space<vmem>>, %arg19: memref<1x32xf32, #tpu.memory_space<vmem>>, %arg20: memref<1x32xf32, #tpu.memory_space<vmem>>, %arg21: memref<1x32xf32, #tpu.memory_space<vmem>>, %arg22: memref<1x1xf32, #tpu.memory_space<vmem>>, %arg23: memref<1x128xf32, #tpu.memory_space<vmem>>) attributes {dimension_semantics = [#tpu.dimension_semantics<parallel>], iteration_bounds = array<i64: 1>, scalar_prefetch = 0 : i64, scratch_operands = 0 : i64, tpu.core_type = #tpu.core_type<tc>, window_params = [{transform_indices = @transform_0, window_bounds = array<i64: 2, 8, 32>}, {transform_indices = @transform_1, window_bounds = array<i64: 2, 1, 8>}, {pipeline_mode = #tpu.pipeline_mode<synchronous>, transform_indices = @transform_2, window_bounds = array<i64: 2, 1, 32>}, {pipeline_mode = #tpu.pipeline_mode<synchronous>, transform_indices = @transform_3, window_bounds = array<i64: 2, 1, 32>}, {pipeline_mode = #tpu.pipeline_mode<synchronous>, transform_indices = @transform_4, window_bounds = array<i64: 8, 32, 8>}, {pipeline_mode = #tpu.pipeline_mode<synchronous>, transform_indices = @transform_5, window_bounds = array<i64: 8, 1, 8>}, {pipeline_mode = #tpu.pipeline_mode<synchronous>, transform_indices = @transform_6, window_bounds = array<i64: 8, 32, 8>}, {pipeline_mode = #tpu.pipeline_mode<synchronous>, transform_indices = @transform_7, window_bounds = array<i64: 8, 1, 8>}, {pipeline_mode = #tpu.pipeline_mode<synchronous>, transform_indices = @transform_8, window_bounds = array<i64: 8, 32, 8>}, {pipeline_mode = #tpu.pipeline_mode<synchronous>, transform_indices = @transform_9, window_bounds = array<i64: 8, 1, 8>}, {pipeline_mode = #tpu.pipeline_mode<synchronous>, transform_indices = @transform_10, window_bounds = array<i64: 8, 8, 32>}, {pipeline_mode = #tpu.pipeline_mode<synchronous>, transform_indices = @transform_11, window_bounds = array<i64: 2, 1, 32>}, {pipeline_mode = #tpu.pipeline_mode<synchronous>, transform_indices = @transform_12, window_bounds = array<i64: 2, 1, 32>}, {pipeline_mode = #tpu.pipeline_mode<synchronous>, transform_indices = @transform_13, window_bounds = array<i64: 2, 1, 32>}, {pipeline_mode = #tpu.pipeline_mode<synchronous>, transform_indices = @transform_14, window_bounds = array<i64: 2, 32, 128>}, {pipeline_mode = #tpu.pipeline_mode<synchronous>, transform_indices = @transform_15, window_bounds = array<i64: 2, 1, 128>}, {pipeline_mode = #tpu.pipeline_mode<synchronous>, transform_indices = @transform_16, window_bounds = array<i64: 2, 128, 32>}, {pipeline_mode = #tpu.pipeline_mode<synchronous>, transform_indices = @transform_17, window_bounds = array<i64: 2, 1, 32>}, {pipeline_mode = #tpu.pipeline_mode<synchronous>, transform_indices = @transform_18, window_bounds = array<i64: 1, 32>}, {pipeline_mode = #tpu.pipeline_mode<synchronous>, transform_indices = @transform_19, window_bounds = array<i64: 1, 32>}, {pipeline_mode = #tpu.pipeline_mode<synchronous>, transform_indices = @transform_20, window_bounds = array<i64: 1, 32>}, {pipeline_mode = #tpu.pipeline_mode<synchronous>, transform_indices = @transform_21, window_bounds = array<i64: 1, 1>}, {transform_indices = @transform_22, window_bounds = array<i64: 1, 128>}]} {
    %c0 = arith.constant 0 : index
    %c0_0 = arith.constant 0 : index
    %c0_1 = arith.constant 0 : index
    %0 = vector.load %arg1[%c0, %c0_0, %c0_1] : memref<2x8x32xf32, #tpu.memory_space<vmem>>, vector<2x8x32xf32>
    %1 = vector.shape_cast %0 : vector<2x8x32xf32> to vector<16x32xf32>
    %2 = tpu.iota {dimensions = array<i32: 0>} : vector<8x8xi32>
    %3 = tpu.iota {dimensions = array<i32: 1>} : vector<8x8xi32>
    %4 = arith.cmpi sle, %3, %2 : vector<8x8xi32>
    %5 = vector.shape_cast %4 : vector<8x8xi1> to vector<1x8x8xi1>
    %c0_2 = arith.constant 0 : index
    %c0_3 = arith.constant 0 : index
    %c0_4 = arith.constant 0 : index
    %6 = vector.load %arg2[%c0_2, %c0_3, %c0_4] : memref<2x1x8xf32, #tpu.memory_space<vmem>>, vector<2x1x8xf32>
    %cst = arith.constant 5.000000e-01 : f32
    %7 = vector.broadcast %cst : f32 to vector<2x1x8xf32>
    %8 = arith.cmpf ogt, %6, %7 : vector<2x1x8xf32>
    %9 = vector.broadcast %5 : vector<1x8x8xi1> to vector<2x8x8xi1>
    %10 = vector.broadcast %8 : vector<2x1x8xi1> to vector<2x8x8xi1>
    %11 = arith.andi %9, %10 : vector<2x8x8xi1>
    %cst_5 = arith.constant 0.000000e+00 : f32
    %cst_6 = arith.constant -1.000000e+09 : f32
    %12 = vector.broadcast %cst_5 : f32 to vector<2x8x8xf32>
    %13 = vector.broadcast %cst_6 : f32 to vector<2x8x8xf32>
    %14 = arith.select %11, %12, %13 : vector<2x8x8xi1>, vector<2x8x8xf32>
    %c0_i32 = arith.constant 0 : i32
    %15 = arith.index_cast %c0_i32 : i32 to index
    %c0_7 = arith.constant 0 : index
    %c0_8 = arith.constant 0 : index
    %16 = vector.load %arg3[%15, %c0_7, %c0_8] : memref<2x1x32xf32, #tpu.memory_space<vmem>>, vector<1x1x32xf32>
    %17 = vector.shape_cast %16 : vector<1x1x32xf32> to vector<1x32xf32>
    %18 = arith.index_cast %c0_i32 : i32 to index
    %c0_9 = arith.constant 0 : index
    %c0_10 = arith.constant 0 : index
    %19 = vector.load %arg4[%18, %c0_9, %c0_10] : memref<2x1x32xf32, #tpu.memory_space<vmem>>, vector<1x1x32xf32>
    %20 = vector.shape_cast %19 : vector<1x1x32xf32> to vector<1x32xf32>
    %cst_11 = arith.constant dense<0.000000e+00> : vector<16xf32>
    %21 = vector.multi_reduction <add>, %1, %cst_11 [1] : vector<16x32xf32> to vector<16xf32>
    %22 = vector.shape_cast %21 : vector<16xf32> to vector<16x1xf32>
    %cst_12 = arith.constant 3.200000e+01 : f32
    %23 = vector.broadcast %cst_12 : f32 to vector<16x1xf32>
    %24 = arith.divf %22, %23 : vector<16x1xf32>
    %25 = vector.broadcast %24 : vector<16x1xf32> to vector<16x32xf32>
    %26 = arith.subf %1, %25 : vector<16x32xf32>
    %27 = arith.mulf %26, %26 : vector<16x32xf32>
    %cst_13 = arith.constant dense<0.000000e+00> : vector<16xf32>
    %28 = vector.multi_reduction <add>, %27, %cst_13 [1] : vector<16x32xf32> to vector<16xf32>
    %29 = vector.shape_cast %28 : vector<16xf32> to vector<16x1xf32>
    %cst_14 = arith.constant 3.200000e+01 : f32
    %30 = vector.broadcast %cst_14 : f32 to vector<16x1xf32>
    %31 = arith.divf %29, %30 : vector<16x1xf32>
    %32 = vector.broadcast %24 : vector<16x1xf32> to vector<16x32xf32>
    %33 = arith.subf %1, %32 : vector<16x32xf32>
    %cst_15 = arith.constant 9.99999974E-6 : f32
    %34 = vector.broadcast %cst_15 : f32 to vector<16x1xf32>
    %35 = arith.addf %31, %34 : vector<16x1xf32>
    %36 = math.rsqrt %35 : vector<16x1xf32>
    %37 = vector.broadcast %36 : vector<16x1xf32> to vector<16x32xf32>
    %38 = arith.mulf %33, %37 : vector<16x32xf32>
    %39 = vector.broadcast %17 : vector<1x32xf32> to vector<16x32xf32>
    %40 = arith.mulf %38, %39 : vector<16x32xf32>
    %41 = vector.broadcast %20 : vector<1x32xf32> to vector<16x32xf32>
    %42 = arith.addf %40, %41 : vector<16x32xf32>
    %43 = arith.truncf %42 : vector<16x32xf32> to vector<16x32xbf16>
    %cst_16 = arith.constant 0.000000e+00 : f32
    %44 = vector.broadcast %cst_16 : f32 to vector<16x32xf32>
    %c4_i32 = arith.constant 4 : i32
    %45 = arith.muli %c0_i32, %c4_i32 : i32
    %c0_i32_17 = arith.constant 0 : i32
    %46 = arith.addi %45, %c0_i32_17 : i32
    %47 = arith.index_cast %46 : i32 to index
    %c0_18 = arith.constant 0 : index
    %c0_19 = arith.constant 0 : index
    %48 = vector.load %arg5[%47, %c0_18, %c0_19] : memref<8x32x8xbf16, #tpu.memory_space<vmem>>, vector<1x32x8xbf16>
    %49 = vector.shape_cast %48 : vector<1x32x8xbf16> to vector<32x8xbf16>
    %cst_20 = arith.constant dense<0.000000e+00> : vector<16x8xf32>
    %50 = tpu.matmul %43, %49, %cst_20 {dimension_numbers = #tpu.dot_dimension_numbers<[1], [0], [0], [1], [0, 0, 1, 1], [], []>} : vector<16x32xbf16>, vector<32x8xbf16>, vector<16x8xf32> -> vector<16x8xf32>
    %51 = arith.index_cast %46 : i32 to index
    %c0_21 = arith.constant 0 : index
    %c0_22 = arith.constant 0 : index
    %52 = vector.load %arg6[%51, %c0_21, %c0_22] : memref<8x1x8xf32, #tpu.memory_space<vmem>>, vector<1x1x8xf32>
    %53 = vector.shape_cast %52 : vector<1x1x8xf32> to vector<1x8xf32>
    %54 = vector.broadcast %53 : vector<1x8xf32> to vector<16x8xf32>
    %55 = arith.addf %50, %54 : vector<16x8xf32>
    %56 = vector.shape_cast %55 : vector<16x8xf32> to vector<2x8x8xf32>
    %57 = arith.index_cast %46 : i32 to index
    %c0_23 = arith.constant 0 : index
    %c0_24 = arith.constant 0 : index
    %58 = vector.load %arg7[%57, %c0_23, %c0_24] : memref<8x32x8xbf16, #tpu.memory_space<vmem>>, vector<1x32x8xbf16>
    %59 = vector.shape_cast %58 : vector<1x32x8xbf16> to vector<32x8xbf16>
    %cst_25 = arith.constant dense<0.000000e+00> : vector<16x8xf32>
    %60 = tpu.matmul %43, %59, %cst_25 {dimension_numbers = #tpu.dot_dimension_numbers<[1], [0], [0], [1], [0, 0, 1, 1], [], []>} : vector<16x32xbf16>, vector<32x8xbf16>, vector<16x8xf32> -> vector<16x8xf32>
    %61 = arith.index_cast %46 : i32 to index
    %c0_26 = arith.constant 0 : index
    %c0_27 = arith.constant 0 : index
    %62 = vector.load %arg8[%61, %c0_26, %c0_27] : memref<8x1x8xf32, #tpu.memory_space<vmem>>, vector<1x1x8xf32>
    %63 = vector.shape_cast %62 : vector<1x1x8xf32> to vector<1x8xf32>
    %64 = vector.broadcast %63 : vector<1x8xf32> to vector<16x8xf32>
    %65 = arith.addf %60, %64 : vector<16x8xf32>
    %66 = vector.shape_cast %65 : vector<16x8xf32> to vector<2x8x8xf32>
    %67 = arith.index_cast %46 : i32 to index
    %c0_28 = arith.constant 0 : index
    %c0_29 = arith.constant 0 : index
    %68 = vector.load %arg9[%67, %c0_28, %c0_29] : memref<8x32x8xbf16, #tpu.memory_space<vmem>>, vector<1x32x8xbf16>
    %69 = vector.shape_cast %68 : vector<1x32x8xbf16> to vector<32x8xbf16>
    %cst_30 = arith.constant dense<0.000000e+00> : vector<16x8xf32>
    %70 = tpu.matmul %43, %69, %cst_30 {dimension_numbers = #tpu.dot_dimension_numbers<[1], [0], [0], [1], [0, 0, 1, 1], [], []>} : vector<16x32xbf16>, vector<32x8xbf16>, vector<16x8xf32> -> vector<16x8xf32>
    %71 = arith.index_cast %46 : i32 to index
    %c0_31 = arith.constant 0 : index
    %c0_32 = arith.constant 0 : index
    %72 = vector.load %arg10[%71, %c0_31, %c0_32] : memref<8x1x8xf32, #tpu.memory_space<vmem>>, vector<1x1x8xf32>
    %73 = vector.shape_cast %72 : vector<1x1x8xf32> to vector<1x8xf32>
    %74 = vector.broadcast %73 : vector<1x8xf32> to vector<16x8xf32>
    %75 = arith.addf %70, %74 : vector<16x8xf32>
    %76 = vector.shape_cast %75 : vector<16x8xf32> to vector<2x8x8xf32>
    %77 = arith.truncf %56 : vector<2x8x8xf32> to vector<2x8x8xbf16>
    %78 = arith.truncf %66 : vector<2x8x8xf32> to vector<2x8x8xbf16>
    "tpu.trace_start"() <{level = 10 : i32, message = "bqd,bkd->bqk"}> : () -> ()
    %cst_33 = arith.constant dense<0.000000e+00> : vector<2x8x8xf32>
    %79 = tpu.matmul %77, %78, %cst_33 {dimension_numbers = #tpu.dot_dimension_numbers<[2], [2], [1], [1], [0, 0, 0, 1, 1, 1], [0], [0]>} : vector<2x8x8xbf16>, vector<2x8x8xbf16>, vector<2x8x8xf32> -> vector<2x8x8xf32>
    "tpu.trace_stop"() : () -> ()
    %80 = arith.addf %79, %14 : vector<2x8x8xf32>
    %cst_34 = arith.constant dense<0xFF800000> : vector<2x8xf32>
    %81 = vector.multi_reduction <maximumf>, %80, %cst_34 [2] : vector<2x8x8xf32> to vector<2x8xf32>
    %82 = vector.shape_cast %81 : vector<2x8xf32> to vector<2x8x1xf32>
    %83 = vector.broadcast %82 : vector<2x8x1xf32> to vector<2x8x8xf32>
    %84 = arith.subf %80, %83 : vector<2x8x8xf32>
    %85 = math.exp %84 : vector<2x8x8xf32>
    %cst_35 = arith.constant dense<0.000000e+00> : vector<2x8xf32>
    %86 = vector.multi_reduction <add>, %85, %cst_35 [2] : vector<2x8x8xf32> to vector<2x8xf32>
    %87 = vector.shape_cast %86 : vector<2x8xf32> to vector<2x8x1xf32>
    %88 = tpu.reciprocal %87 {approx = true} : vector<2x8x1xf32> -> vector<2x8x1xf32>
    %89 = vector.broadcast %88 : vector<2x8x1xf32> to vector<2x8x8xf32>
    %90 = arith.mulf %85, %89 : vector<2x8x8xf32>
    %91 = arith.truncf %90 : vector<2x8x8xf32> to vector<2x8x8xbf16>
    %92 = arith.truncf %76 : vector<2x8x8xf32> to vector<2x8x8xbf16>
    "tpu.trace_start"() <{level = 10 : i32, message = "bqk,bkd->bqd"}> : () -> ()
    %cst_36 = arith.constant dense<0.000000e+00> : vector<2x8x8xf32>
    %93 = tpu.matmul %91, %92, %cst_36 {dimension_numbers = #tpu.dot_dimension_numbers<[2], [1], [1], [2], [0, 0, 0, 1, 1, 2], [0], [0]>} : vector<2x8x8xbf16>, vector<2x8x8xbf16>, vector<2x8x8xf32> -> vector<2x8x8xf32>
    "tpu.trace_stop"() : () -> ()
    %94 = vector.shape_cast %93 : vector<2x8x8xf32> to vector<16x8xf32>
    %95 = arith.truncf %94 : vector<16x8xf32> to vector<16x8xbf16>
    %96 = arith.index_cast %46 : i32 to index
    %c0_37 = arith.constant 0 : index
    %c0_38 = arith.constant 0 : index
    %97 = vector.load %arg11[%96, %c0_37, %c0_38] : memref<8x8x32xbf16, #tpu.memory_space<vmem>>, vector<1x8x32xbf16>
    %98 = vector.shape_cast %97 : vector<1x8x32xbf16> to vector<8x32xbf16>
    %cst_39 = arith.constant dense<0.000000e+00> : vector<16x32xf32>
    %99 = tpu.matmul %95, %98, %cst_39 {dimension_numbers = #tpu.dot_dimension_numbers<[1], [0], [0], [1], [0, 0, 1, 1], [], []>} : vector<16x8xbf16>, vector<8x32xbf16>, vector<16x32xf32> -> vector<16x32xf32>
    %100 = arith.addf %44, %99 : vector<16x32xf32>
    %c4_i32_40 = arith.constant 4 : i32
    %101 = arith.muli %c0_i32, %c4_i32_40 : i32
    %c1_i32 = arith.constant 1 : i32
    %102 = arith.addi %101, %c1_i32 : i32
    %103 = arith.index_cast %102 : i32 to index
    %c0_41 = arith.constant 0 : index
    %c0_42 = arith.constant 0 : index
    %104 = vector.load %arg5[%103, %c0_41, %c0_42] : memref<8x32x8xbf16, #tpu.memory_space<vmem>>, vector<1x32x8xbf16>
    %105 = vector.shape_cast %104 : vector<1x32x8xbf16> to vector<32x8xbf16>
    %cst_43 = arith.constant dense<0.000000e+00> : vector<16x8xf32>
    %106 = tpu.matmul %43, %105, %cst_43 {dimension_numbers = #tpu.dot_dimension_numbers<[1], [0], [0], [1], [0, 0, 1, 1], [], []>} : vector<16x32xbf16>, vector<32x8xbf16>, vector<16x8xf32> -> vector<16x8xf32>
    %107 = arith.index_cast %102 : i32 to index
    %c0_44 = arith.constant 0 : index
    %c0_45 = arith.constant 0 : index
    %108 = vector.load %arg6[%107, %c0_44, %c0_45] : memref<8x1x8xf32, #tpu.memory_space<vmem>>, vector<1x1x8xf32>
    %109 = vector.shape_cast %108 : vector<1x1x8xf32> to vector<1x8xf32>
    %110 = vector.broadcast %109 : vector<1x8xf32> to vector<16x8xf32>
    %111 = arith.addf %106, %110 : vector<16x8xf32>
    %112 = vector.shape_cast %111 : vector<16x8xf32> to vector<2x8x8xf32>
    %113 = arith.index_cast %102 : i32 to index
    %c0_46 = arith.constant 0 : index
    %c0_47 = arith.constant 0 : index
    %114 = vector.load %arg7[%113, %c0_46, %c0_47] : memref<8x32x8xbf16, #tpu.memory_space<vmem>>, vector<1x32x8xbf16>
    %115 = vector.shape_cast %114 : vector<1x32x8xbf16> to vector<32x8xbf16>
    %cst_48 = arith.constant dense<0.000000e+00> : vector<16x8xf32>
    %116 = tpu.matmul %43, %115, %cst_48 {dimension_numbers = #tpu.dot_dimension_numbers<[1], [0], [0], [1], [0, 0, 1, 1], [], []>} : vector<16x32xbf16>, vector<32x8xbf16>, vector<16x8xf32> -> vector<16x8xf32>
    %117 = arith.index_cast %102 : i32 to index
    %c0_49 = arith.constant 0 : index
    %c0_50 = arith.constant 0 : index
    %118 = vector.load %arg8[%117, %c0_49, %c0_50] : memref<8x1x8xf32, #tpu.memory_space<vmem>>, vector<1x1x8xf32>
    %119 = vector.shape_cast %118 : vector<1x1x8xf32> to vector<1x8xf32>
    %120 = vector.broadcast %119 : vector<1x8xf32> to vector<16x8xf32>
    %121 = arith.addf %116, %120 : vector<16x8xf32>
    %122 = vector.shape_cast %121 : vector<16x8xf32> to vector<2x8x8xf32>
    %123 = arith.index_cast %102 : i32 to index
    %c0_51 = arith.constant 0 : index
    %c0_52 = arith.constant 0 : index
    %124 = vector.load %arg9[%123, %c0_51, %c0_52] : memref<8x32x8xbf16, #tpu.memory_space<vmem>>, vector<1x32x8xbf16>
    %125 = vector.shape_cast %124 : vector<1x32x8xbf16> to vector<32x8xbf16>
    %cst_53 = arith.constant dense<0.000000e+00> : vector<16x8xf32>
    %126 = tpu.matmul %43, %125, %cst_53 {dimension_numbers = #tpu.dot_dimension_numbers<[1], [0], [0], [1], [0, 0, 1, 1], [], []>} : vector<16x32xbf16>, vector<32x8xbf16>, vector<16x8xf32> -> vector<16x8xf32>
    %127 = arith.index_cast %102 : i32 to index
    %c0_54 = arith.constant 0 : index
    %c0_55 = arith.constant 0 : index
    %128 = vector.load %arg10[%127, %c0_54, %c0_55] : memref<8x1x8xf32, #tpu.memory_space<vmem>>, vector<1x1x8xf32>
    %129 = vector.shape_cast %128 : vector<1x1x8xf32> to vector<1x8xf32>
    %130 = vector.broadcast %129 : vector<1x8xf32> to vector<16x8xf32>
    %131 = arith.addf %126, %130 : vector<16x8xf32>
    %132 = vector.shape_cast %131 : vector<16x8xf32> to vector<2x8x8xf32>
    %133 = arith.truncf %112 : vector<2x8x8xf32> to vector<2x8x8xbf16>
    %134 = arith.truncf %122 : vector<2x8x8xf32> to vector<2x8x8xbf16>
    "tpu.trace_start"() <{level = 10 : i32, message = "bqd,bkd->bqk"}> : () -> ()
    %cst_56 = arith.constant dense<0.000000e+00> : vector<2x8x8xf32>
    %135 = tpu.matmul %133, %134, %cst_56 {dimension_numbers = #tpu.dot_dimension_numbers<[2], [2], [1], [1], [0, 0, 0, 1, 1, 1], [0], [0]>} : vector<2x8x8xbf16>, vector<2x8x8xbf16>, vector<2x8x8xf32> -> vector<2x8x8xf32>
    "tpu.trace_stop"() : () -> ()
    %136 = arith.addf %135, %14 : vector<2x8x8xf32>
    %cst_57 = arith.constant dense<0xFF800000> : vector<2x8xf32>
    %137 = vector.multi_reduction <maximumf>, %136, %cst_57 [2] : vector<2x8x8xf32> to vector<2x8xf32>
    %138 = vector.shape_cast %137 : vector<2x8xf32> to vector<2x8x1xf32>
    %139 = vector.broadcast %138 : vector<2x8x1xf32> to vector<2x8x8xf32>
    %140 = arith.subf %136, %139 : vector<2x8x8xf32>
    %141 = math.exp %140 : vector<2x8x8xf32>
    %cst_58 = arith.constant dense<0.000000e+00> : vector<2x8xf32>
    %142 = vector.multi_reduction <add>, %141, %cst_58 [2] : vector<2x8x8xf32> to vector<2x8xf32>
    %143 = vector.shape_cast %142 : vector<2x8xf32> to vector<2x8x1xf32>
    %144 = tpu.reciprocal %143 {approx = true} : vector<2x8x1xf32> -> vector<2x8x1xf32>
    %145 = vector.broadcast %144 : vector<2x8x1xf32> to vector<2x8x8xf32>
    %146 = arith.mulf %141, %145 : vector<2x8x8xf32>
    %147 = arith.truncf %146 : vector<2x8x8xf32> to vector<2x8x8xbf16>
    %148 = arith.truncf %132 : vector<2x8x8xf32> to vector<2x8x8xbf16>
    "tpu.trace_start"() <{level = 10 : i32, message = "bqk,bkd->bqd"}> : () -> ()
    %cst_59 = arith.constant dense<0.000000e+00> : vector<2x8x8xf32>
    %149 = tpu.matmul %147, %148, %cst_59 {dimension_numbers = #tpu.dot_dimension_numbers<[2], [1], [1], [2], [0, 0, 0, 1, 1, 2], [0], [0]>} : vector<2x8x8xbf16>, vector<2x8x8xbf16>, vector<2x8x8xf32> -> vector<2x8x8xf32>
    "tpu.trace_stop"() : () -> ()
    %150 = vector.shape_cast %149 : vector<2x8x8xf32> to vector<16x8xf32>
    %151 = arith.truncf %150 : vector<16x8xf32> to vector<16x8xbf16>
    %152 = arith.index_cast %102 : i32 to index
    %c0_60 = arith.constant 0 : index
    %c0_61 = arith.constant 0 : index
    %153 = vector.load %arg11[%152, %c0_60, %c0_61] : memref<8x8x32xbf16, #tpu.memory_space<vmem>>, vector<1x8x32xbf16>
    %154 = vector.shape_cast %153 : vector<1x8x32xbf16> to vector<8x32xbf16>
    %cst_62 = arith.constant dense<0.000000e+00> : vector<16x32xf32>
    %155 = tpu.matmul %151, %154, %cst_62 {dimension_numbers = #tpu.dot_dimension_numbers<[1], [0], [0], [1], [0, 0, 1, 1], [], []>} : vector<16x8xbf16>, vector<8x32xbf16>, vector<16x32xf32> -> vector<16x32xf32>
    %156 = arith.addf %100, %155 : vector<16x32xf32>
    %c4_i32_63 = arith.constant 4 : i32
    %157 = arith.muli %c0_i32, %c4_i32_63 : i32
    %c2_i32 = arith.constant 2 : i32
    %158 = arith.addi %157, %c2_i32 : i32
    %159 = arith.index_cast %158 : i32 to index
    %c0_64 = arith.constant 0 : index
    %c0_65 = arith.constant 0 : index
    %160 = vector.load %arg5[%159, %c0_64, %c0_65] : memref<8x32x8xbf16, #tpu.memory_space<vmem>>, vector<1x32x8xbf16>
    %161 = vector.shape_cast %160 : vector<1x32x8xbf16> to vector<32x8xbf16>
    %cst_66 = arith.constant dense<0.000000e+00> : vector<16x8xf32>
    %162 = tpu.matmul %43, %161, %cst_66 {dimension_numbers = #tpu.dot_dimension_numbers<[1], [0], [0], [1], [0, 0, 1, 1], [], []>} : vector<16x32xbf16>, vector<32x8xbf16>, vector<16x8xf32> -> vector<16x8xf32>
    %163 = arith.index_cast %158 : i32 to index
    %c0_67 = arith.constant 0 : index
    %c0_68 = arith.constant 0 : index
    %164 = vector.load %arg6[%163, %c0_67, %c0_68] : memref<8x1x8xf32, #tpu.memory_space<vmem>>, vector<1x1x8xf32>
    %165 = vector.shape_cast %164 : vector<1x1x8xf32> to vector<1x8xf32>
    %166 = vector.broadcast %165 : vector<1x8xf32> to vector<16x8xf32>
    %167 = arith.addf %162, %166 : vector<16x8xf32>
    %168 = vector.shape_cast %167 : vector<16x8xf32> to vector<2x8x8xf32>
    %169 = arith.index_cast %158 : i32 to index
    %c0_69 = arith.constant 0 : index
    %c0_70 = arith.constant 0 : index
    %170 = vector.load %arg7[%169, %c0_69, %c0_70] : memref<8x32x8xbf16, #tpu.memory_space<vmem>>, vector<1x32x8xbf16>
    %171 = vector.shape_cast %170 : vector<1x32x8xbf16> to vector<32x8xbf16>
    %cst_71 = arith.constant dense<0.000000e+00> : vector<16x8xf32>
    %172 = tpu.matmul %43, %171, %cst_71 {dimension_numbers = #tpu.dot_dimension_numbers<[1], [0], [0], [1], [0, 0, 1, 1], [], []>} : vector<16x32xbf16>, vector<32x8xbf16>, vector<16x8xf32> -> vector<16x8xf32>
    %173 = arith.index_cast %158 : i32 to index
    %c0_72 = arith.constant 0 : index
    %c0_73 = arith.constant 0 : index
    %174 = vector.load %arg8[%173, %c0_72, %c0_73] : memref<8x1x8xf32, #tpu.memory_space<vmem>>, vector<1x1x8xf32>
    %175 = vector.shape_cast %174 : vector<1x1x8xf32> to vector<1x8xf32>
    %176 = vector.broadcast %175 : vector<1x8xf32> to vector<16x8xf32>
    %177 = arith.addf %172, %176 : vector<16x8xf32>
    %178 = vector.shape_cast %177 : vector<16x8xf32> to vector<2x8x8xf32>
    %179 = arith.index_cast %158 : i32 to index
    %c0_74 = arith.constant 0 : index
    %c0_75 = arith.constant 0 : index
    %180 = vector.load %arg9[%179, %c0_74, %c0_75] : memref<8x32x8xbf16, #tpu.memory_space<vmem>>, vector<1x32x8xbf16>
    %181 = vector.shape_cast %180 : vector<1x32x8xbf16> to vector<32x8xbf16>
    %cst_76 = arith.constant dense<0.000000e+00> : vector<16x8xf32>
    %182 = tpu.matmul %43, %181, %cst_76 {dimension_numbers = #tpu.dot_dimension_numbers<[1], [0], [0], [1], [0, 0, 1, 1], [], []>} : vector<16x32xbf16>, vector<32x8xbf16>, vector<16x8xf32> -> vector<16x8xf32>
    %183 = arith.index_cast %158 : i32 to index
    %c0_77 = arith.constant 0 : index
    %c0_78 = arith.constant 0 : index
    %184 = vector.load %arg10[%183, %c0_77, %c0_78] : memref<8x1x8xf32, #tpu.memory_space<vmem>>, vector<1x1x8xf32>
    %185 = vector.shape_cast %184 : vector<1x1x8xf32> to vector<1x8xf32>
    %186 = vector.broadcast %185 : vector<1x8xf32> to vector<16x8xf32>
    %187 = arith.addf %182, %186 : vector<16x8xf32>
    %188 = vector.shape_cast %187 : vector<16x8xf32> to vector<2x8x8xf32>
    %189 = arith.truncf %168 : vector<2x8x8xf32> to vector<2x8x8xbf16>
    %190 = arith.truncf %178 : vector<2x8x8xf32> to vector<2x8x8xbf16>
    "tpu.trace_start"() <{level = 10 : i32, message = "bqd,bkd->bqk"}> : () -> ()
    %cst_79 = arith.constant dense<0.000000e+00> : vector<2x8x8xf32>
    %191 = tpu.matmul %189, %190, %cst_79 {dimension_numbers = #tpu.dot_dimension_numbers<[2], [2], [1], [1], [0, 0, 0, 1, 1, 1], [0], [0]>} : vector<2x8x8xbf16>, vector<2x8x8xbf16>, vector<2x8x8xf32> -> vector<2x8x8xf32>
    "tpu.trace_stop"() : () -> ()
    %192 = arith.addf %191, %14 : vector<2x8x8xf32>
    %cst_80 = arith.constant dense<0xFF800000> : vector<2x8xf32>
    %193 = vector.multi_reduction <maximumf>, %192, %cst_80 [2] : vector<2x8x8xf32> to vector<2x8xf32>
    %194 = vector.shape_cast %193 : vector<2x8xf32> to vector<2x8x1xf32>
    %195 = vector.broadcast %194 : vector<2x8x1xf32> to vector<2x8x8xf32>
    %196 = arith.subf %192, %195 : vector<2x8x8xf32>
    %197 = math.exp %196 : vector<2x8x8xf32>
    %cst_81 = arith.constant dense<0.000000e+00> : vector<2x8xf32>
    %198 = vector.multi_reduction <add>, %197, %cst_81 [2] : vector<2x8x8xf32> to vector<2x8xf32>
    %199 = vector.shape_cast %198 : vector<2x8xf32> to vector<2x8x1xf32>
    %200 = tpu.reciprocal %199 {approx = true} : vector<2x8x1xf32> -> vector<2x8x1xf32>
    %201 = vector.broadcast %200 : vector<2x8x1xf32> to vector<2x8x8xf32>
    %202 = arith.mulf %197, %201 : vector<2x8x8xf32>
    %203 = arith.truncf %202 : vector<2x8x8xf32> to vector<2x8x8xbf16>
    %204 = arith.truncf %188 : vector<2x8x8xf32> to vector<2x8x8xbf16>
    "tpu.trace_start"() <{level = 10 : i32, message = "bqk,bkd->bqd"}> : () -> ()
    %cst_82 = arith.constant dense<0.000000e+00> : vector<2x8x8xf32>
    %205 = tpu.matmul %203, %204, %cst_82 {dimension_numbers = #tpu.dot_dimension_numbers<[2], [1], [1], [2], [0, 0, 0, 1, 1, 2], [0], [0]>} : vector<2x8x8xbf16>, vector<2x8x8xbf16>, vector<2x8x8xf32> -> vector<2x8x8xf32>
    "tpu.trace_stop"() : () -> ()
    %206 = vector.shape_cast %205 : vector<2x8x8xf32> to vector<16x8xf32>
    %207 = arith.truncf %206 : vector<16x8xf32> to vector<16x8xbf16>
    %208 = arith.index_cast %158 : i32 to index
    %c0_83 = arith.constant 0 : index
    %c0_84 = arith.constant 0 : index
    %209 = vector.load %arg11[%208, %c0_83, %c0_84] : memref<8x8x32xbf16, #tpu.memory_space<vmem>>, vector<1x8x32xbf16>
    %210 = vector.shape_cast %209 : vector<1x8x32xbf16> to vector<8x32xbf16>
    %cst_85 = arith.constant dense<0.000000e+00> : vector<16x32xf32>
    %211 = tpu.matmul %207, %210, %cst_85 {dimension_numbers = #tpu.dot_dimension_numbers<[1], [0], [0], [1], [0, 0, 1, 1], [], []>} : vector<16x8xbf16>, vector<8x32xbf16>, vector<16x32xf32> -> vector<16x32xf32>
    %212 = arith.addf %156, %211 : vector<16x32xf32>
    %c4_i32_86 = arith.constant 4 : i32
    %213 = arith.muli %c0_i32, %c4_i32_86 : i32
    %c3_i32 = arith.constant 3 : i32
    %214 = arith.addi %213, %c3_i32 : i32
    %215 = arith.index_cast %214 : i32 to index
    %c0_87 = arith.constant 0 : index
    %c0_88 = arith.constant 0 : index
    %216 = vector.load %arg5[%215, %c0_87, %c0_88] : memref<8x32x8xbf16, #tpu.memory_space<vmem>>, vector<1x32x8xbf16>
    %217 = vector.shape_cast %216 : vector<1x32x8xbf16> to vector<32x8xbf16>
    %cst_89 = arith.constant dense<0.000000e+00> : vector<16x8xf32>
    %218 = tpu.matmul %43, %217, %cst_89 {dimension_numbers = #tpu.dot_dimension_numbers<[1], [0], [0], [1], [0, 0, 1, 1], [], []>} : vector<16x32xbf16>, vector<32x8xbf16>, vector<16x8xf32> -> vector<16x8xf32>
    %219 = arith.index_cast %214 : i32 to index
    %c0_90 = arith.constant 0 : index
    %c0_91 = arith.constant 0 : index
    %220 = vector.load %arg6[%219, %c0_90, %c0_91] : memref<8x1x8xf32, #tpu.memory_space<vmem>>, vector<1x1x8xf32>
    %221 = vector.shape_cast %220 : vector<1x1x8xf32> to vector<1x8xf32>
    %222 = vector.broadcast %221 : vector<1x8xf32> to vector<16x8xf32>
    %223 = arith.addf %218, %222 : vector<16x8xf32>
    %224 = vector.shape_cast %223 : vector<16x8xf32> to vector<2x8x8xf32>
    %225 = arith.index_cast %214 : i32 to index
    %c0_92 = arith.constant 0 : index
    %c0_93 = arith.constant 0 : index
    %226 = vector.load %arg7[%225, %c0_92, %c0_93] : memref<8x32x8xbf16, #tpu.memory_space<vmem>>, vector<1x32x8xbf16>
    %227 = vector.shape_cast %226 : vector<1x32x8xbf16> to vector<32x8xbf16>
    %cst_94 = arith.constant dense<0.000000e+00> : vector<16x8xf32>
    %228 = tpu.matmul %43, %227, %cst_94 {dimension_numbers = #tpu.dot_dimension_numbers<[1], [0], [0], [1], [0, 0, 1, 1], [], []>} : vector<16x32xbf16>, vector<32x8xbf16>, vector<16x8xf32> -> vector<16x8xf32>
    %229 = arith.index_cast %214 : i32 to index
    %c0_95 = arith.constant 0 : index
    %c0_96 = arith.constant 0 : index
    %230 = vector.load %arg8[%229, %c0_95, %c0_96] : memref<8x1x8xf32, #tpu.memory_space<vmem>>, vector<1x1x8xf32>
    %231 = vector.shape_cast %230 : vector<1x1x8xf32> to vector<1x8xf32>
    %232 = vector.broadcast %231 : vector<1x8xf32> to vector<16x8xf32>
    %233 = arith.addf %228, %232 : vector<16x8xf32>
    %234 = vector.shape_cast %233 : vector<16x8xf32> to vector<2x8x8xf32>
    %235 = arith.index_cast %214 : i32 to index
    %c0_97 = arith.constant 0 : index
    %c0_98 = arith.constant 0 : index
    %236 = vector.load %arg9[%235, %c0_97, %c0_98] : memref<8x32x8xbf16, #tpu.memory_space<vmem>>, vector<1x32x8xbf16>
    %237 = vector.shape_cast %236 : vector<1x32x8xbf16> to vector<32x8xbf16>
    %cst_99 = arith.constant dense<0.000000e+00> : vector<16x8xf32>
    %238 = tpu.matmul %43, %237, %cst_99 {dimension_numbers = #tpu.dot_dimension_numbers<[1], [0], [0], [1], [0, 0, 1, 1], [], []>} : vector<16x32xbf16>, vector<32x8xbf16>, vector<16x8xf32> -> vector<16x8xf32>
    %239 = arith.index_cast %214 : i32 to index
    %c0_100 = arith.constant 0 : index
    %c0_101 = arith.constant 0 : index
    %240 = vector.load %arg10[%239, %c0_100, %c0_101] : memref<8x1x8xf32, #tpu.memory_space<vmem>>, vector<1x1x8xf32>
    %241 = vector.shape_cast %240 : vector<1x1x8xf32> to vector<1x8xf32>
    %242 = vector.broadcast %241 : vector<1x8xf32> to vector<16x8xf32>
    %243 = arith.addf %238, %242 : vector<16x8xf32>
    %244 = vector.shape_cast %243 : vector<16x8xf32> to vector<2x8x8xf32>
    %245 = arith.truncf %224 : vector<2x8x8xf32> to vector<2x8x8xbf16>
    %246 = arith.truncf %234 : vector<2x8x8xf32> to vector<2x8x8xbf16>
    "tpu.trace_start"() <{level = 10 : i32, message = "bqd,bkd->bqk"}> : () -> ()
    %cst_102 = arith.constant dense<0.000000e+00> : vector<2x8x8xf32>
    %247 = tpu.matmul %245, %246, %cst_102 {dimension_numbers = #tpu.dot_dimension_numbers<[2], [2], [1], [1], [0, 0, 0, 1, 1, 1], [0], [0]>} : vector<2x8x8xbf16>, vector<2x8x8xbf16>, vector<2x8x8xf32> -> vector<2x8x8xf32>
    "tpu.trace_stop"() : () -> ()
    %248 = arith.addf %247, %14 : vector<2x8x8xf32>
    %cst_103 = arith.constant dense<0xFF800000> : vector<2x8xf32>
    %249 = vector.multi_reduction <maximumf>, %248, %cst_103 [2] : vector<2x8x8xf32> to vector<2x8xf32>
    %250 = vector.shape_cast %249 : vector<2x8xf32> to vector<2x8x1xf32>
    %251 = vector.broadcast %250 : vector<2x8x1xf32> to vector<2x8x8xf32>
    %252 = arith.subf %248, %251 : vector<2x8x8xf32>
    %253 = math.exp %252 : vector<2x8x8xf32>
    %cst_104 = arith.constant dense<0.000000e+00> : vector<2x8xf32>
    %254 = vector.multi_reduction <add>, %253, %cst_104 [2] : vector<2x8x8xf32> to vector<2x8xf32>
    %255 = vector.shape_cast %254 : vector<2x8xf32> to vector<2x8x1xf32>
    %256 = tpu.reciprocal %255 {approx = true} : vector<2x8x1xf32> -> vector<2x8x1xf32>
    %257 = vector.broadcast %256 : vector<2x8x1xf32> to vector<2x8x8xf32>
    %258 = arith.mulf %253, %257 : vector<2x8x8xf32>
    %259 = arith.truncf %258 : vector<2x8x8xf32> to vector<2x8x8xbf16>
    %260 = arith.truncf %244 : vector<2x8x8xf32> to vector<2x8x8xbf16>
    "tpu.trace_start"() <{level = 10 : i32, message = "bqk,bkd->bqd"}> : () -> ()
    %cst_105 = arith.constant dense<0.000000e+00> : vector<2x8x8xf32>
    %261 = tpu.matmul %259, %260, %cst_105 {dimension_numbers = #tpu.dot_dimension_numbers<[2], [1], [1], [2], [0, 0, 0, 1, 1, 2], [0], [0]>} : vector<2x8x8xbf16>, vector<2x8x8xbf16>, vector<2x8x8xf32> -> vector<2x8x8xf32>
    "tpu.trace_stop"() : () -> ()
    %262 = vector.shape_cast %261 : vector<2x8x8xf32> to vector<16x8xf32>
    %263 = arith.truncf %262 : vector<16x8xf32> to vector<16x8xbf16>
    %264 = arith.index_cast %214 : i32 to index
    %c0_106 = arith.constant 0 : index
    %c0_107 = arith.constant 0 : index
    %265 = vector.load %arg11[%264, %c0_106, %c0_107] : memref<8x8x32xbf16, #tpu.memory_space<vmem>>, vector<1x8x32xbf16>
    %266 = vector.shape_cast %265 : vector<1x8x32xbf16> to vector<8x32xbf16>
    %cst_108 = arith.constant dense<0.000000e+00> : vector<16x32xf32>
    %267 = tpu.matmul %263, %266, %cst_108 {dimension_numbers = #tpu.dot_dimension_numbers<[1], [0], [0], [1], [0, 0, 1, 1], [], []>} : vector<16x8xbf16>, vector<8x32xbf16>, vector<16x32xf32> -> vector<16x32xf32>
    %268 = arith.addf %212, %267 : vector<16x32xf32>
    %269 = arith.addf %1, %268 : vector<16x32xf32>
    %270 = arith.index_cast %c0_i32 : i32 to index
    %c0_109 = arith.constant 0 : index
    %c0_110 = arith.constant 0 : index
    %271 = vector.load %arg12[%270, %c0_109, %c0_110] : memref<2x1x32xf32, #tpu.memory_space<vmem>>, vector<1x1x32xf32>
    %272 = vector.shape_cast %271 : vector<1x1x32xf32> to vector<1x32xf32>
    %273 = vector.broadcast %272 : vector<1x32xf32> to vector<16x32xf32>
    %274 = arith.addf %269, %273 : vector<16x32xf32>
    %275 = arith.index_cast %c0_i32 : i32 to index
    %c0_111 = arith.constant 0 : index
    %c0_112 = arith.constant 0 : index
    %276 = vector.load %arg13[%275, %c0_111, %c0_112] : memref<2x1x32xf32, #tpu.memory_space<vmem>>, vector<1x1x32xf32>
    %277 = vector.shape_cast %276 : vector<1x1x32xf32> to vector<1x32xf32>
    %278 = arith.index_cast %c0_i32 : i32 to index
    %c0_113 = arith.constant 0 : index
    %c0_114 = arith.constant 0 : index
    %279 = vector.load %arg14[%278, %c0_113, %c0_114] : memref<2x1x32xf32, #tpu.memory_space<vmem>>, vector<1x1x32xf32>
    %280 = vector.shape_cast %279 : vector<1x1x32xf32> to vector<1x32xf32>
    %cst_115 = arith.constant dense<0.000000e+00> : vector<16xf32>
    %281 = vector.multi_reduction <add>, %274, %cst_115 [1] : vector<16x32xf32> to vector<16xf32>
    %282 = vector.shape_cast %281 : vector<16xf32> to vector<16x1xf32>
    %cst_116 = arith.constant 3.200000e+01 : f32
    %283 = vector.broadcast %cst_116 : f32 to vector<16x1xf32>
    %284 = arith.divf %282, %283 : vector<16x1xf32>
    %285 = vector.broadcast %284 : vector<16x1xf32> to vector<16x32xf32>
    %286 = arith.subf %274, %285 : vector<16x32xf32>
    %287 = arith.mulf %286, %286 : vector<16x32xf32>
    %cst_117 = arith.constant dense<0.000000e+00> : vector<16xf32>
    %288 = vector.multi_reduction <add>, %287, %cst_117 [1] : vector<16x32xf32> to vector<16xf32>
    %289 = vector.shape_cast %288 : vector<16xf32> to vector<16x1xf32>
    %cst_118 = arith.constant 3.200000e+01 : f32
    %290 = vector.broadcast %cst_118 : f32 to vector<16x1xf32>
    %291 = arith.divf %289, %290 : vector<16x1xf32>
    %292 = vector.broadcast %284 : vector<16x1xf32> to vector<16x32xf32>
    %293 = arith.subf %274, %292 : vector<16x32xf32>
    %cst_119 = arith.constant 9.99999974E-6 : f32
    %294 = vector.broadcast %cst_119 : f32 to vector<16x1xf32>
    %295 = arith.addf %291, %294 : vector<16x1xf32>
    %296 = math.rsqrt %295 : vector<16x1xf32>
    %297 = vector.broadcast %296 : vector<16x1xf32> to vector<16x32xf32>
    %298 = arith.mulf %293, %297 : vector<16x32xf32>
    %299 = vector.broadcast %277 : vector<1x32xf32> to vector<16x32xf32>
    %300 = arith.mulf %298, %299 : vector<16x32xf32>
    %301 = vector.broadcast %280 : vector<1x32xf32> to vector<16x32xf32>
    %302 = arith.addf %300, %301 : vector<16x32xf32>
    %303 = arith.index_cast %c0_i32 : i32 to index
    %c0_120 = arith.constant 0 : index
    %c0_121 = arith.constant 0 : index
    %304 = vector.load %arg15[%303, %c0_120, %c0_121] : memref<2x32x128xbf16, #tpu.memory_space<vmem>>, vector<1x32x128xbf16>
    %305 = vector.shape_cast %304 : vector<1x32x128xbf16> to vector<32x128xbf16>
    %306 = arith.truncf %302 : vector<16x32xf32> to vector<16x32xbf16>
    %cst_122 = arith.constant dense<0.000000e+00> : vector<16x128xf32>
    %307 = tpu.matmul %306, %305, %cst_122 {dimension_numbers = #tpu.dot_dimension_numbers<[1], [0], [0], [1], [0, 0, 1, 1], [], []>} : vector<16x32xbf16>, vector<32x128xbf16>, vector<16x128xf32> -> vector<16x128xf32>
    %308 = arith.index_cast %c0_i32 : i32 to index
    %c0_123 = arith.constant 0 : index
    %c0_124 = arith.constant 0 : index
    %309 = vector.load %arg16[%308, %c0_123, %c0_124] : memref<2x1x128xf32, #tpu.memory_space<vmem>>, vector<1x1x128xf32>
    %310 = vector.shape_cast %309 : vector<1x1x128xf32> to vector<1x128xf32>
    %311 = vector.broadcast %310 : vector<1x128xf32> to vector<16x128xf32>
    %312 = arith.addf %307, %311 : vector<16x128xf32>
    %313 = arith.mulf %312, %312 : vector<16x128xf32>
    %314 = arith.mulf %312, %313 : vector<16x128xf32>
    %cst_125 = arith.constant 4.471500e-02 : f32
    %315 = vector.broadcast %cst_125 : f32 to vector<16x128xf32>
    %316 = arith.mulf %315, %314 : vector<16x128xf32>
    %317 = arith.addf %312, %316 : vector<16x128xf32>
    %cst_126 = arith.constant 0.797884583 : f32
    %318 = vector.broadcast %cst_126 : f32 to vector<16x128xf32>
    %319 = arith.mulf %318, %317 : vector<16x128xf32>
    %320 = math.tanh %319 : vector<16x128xf32>
    %cst_127 = arith.constant 1.000000e+00 : f32
    %321 = vector.broadcast %cst_127 : f32 to vector<16x128xf32>
    %322 = arith.addf %321, %320 : vector<16x128xf32>
    %cst_128 = arith.constant 5.000000e-01 : f32
    %323 = vector.broadcast %cst_128 : f32 to vector<16x128xf32>
    %324 = arith.mulf %323, %322 : vector<16x128xf32>
    %325 = arith.mulf %312, %324 : vector<16x128xf32>
    %326 = arith.index_cast %c0_i32 : i32 to index
    %c0_129 = arith.constant 0 : index
    %c0_130 = arith.constant 0 : index
    %327 = vector.load %arg17[%326, %c0_129, %c0_130] : memref<2x128x32xbf16, #tpu.memory_space<vmem>>, vector<1x128x32xbf16>
    %328 = vector.shape_cast %327 : vector<1x128x32xbf16> to vector<128x32xbf16>
    %329 = arith.truncf %325 : vector<16x128xf32> to vector<16x128xbf16>
    %cst_131 = arith.constant dense<0.000000e+00> : vector<16x32xf32>
    %330 = tpu.matmul %329, %328, %cst_131 {dimension_numbers = #tpu.dot_dimension_numbers<[1], [0], [0], [1], [0, 0, 1, 1], [], []>} : vector<16x128xbf16>, vector<128x32xbf16>, vector<16x32xf32> -> vector<16x32xf32>
    %331 = arith.index_cast %c0_i32 : i32 to index
    %c0_132 = arith.constant 0 : index
    %c0_133 = arith.constant 0 : index
    %332 = vector.load %arg18[%331, %c0_132, %c0_133] : memref<2x1x32xf32, #tpu.memory_space<vmem>>, vector<1x1x32xf32>
    %333 = vector.shape_cast %332 : vector<1x1x32xf32> to vector<1x32xf32>
    %334 = vector.broadcast %333 : vector<1x32xf32> to vector<16x32xf32>
    %335 = arith.addf %330, %334 : vector<16x32xf32>
    %336 = arith.addf %274, %335 : vector<16x32xf32>
    %c1_i32_134 = arith.constant 1 : i32
    %337 = arith.index_cast %c1_i32_134 : i32 to index
    %c0_135 = arith.constant 0 : index
    %c0_136 = arith.constant 0 : index
    %338 = vector.load %arg3[%337, %c0_135, %c0_136] : memref<2x1x32xf32, #tpu.memory_space<vmem>>, vector<1x1x32xf32>
    %339 = vector.shape_cast %338 : vector<1x1x32xf32> to vector<1x32xf32>
    %340 = arith.index_cast %c1_i32_134 : i32 to index
    %c0_137 = arith.constant 0 : index
    %c0_138 = arith.constant 0 : index
    %341 = vector.load %arg4[%340, %c0_137, %c0_138] : memref<2x1x32xf32, #tpu.memory_space<vmem>>, vector<1x1x32xf32>
    %342 = vector.shape_cast %341 : vector<1x1x32xf32> to vector<1x32xf32>
    %cst_139 = arith.constant dense<0.000000e+00> : vector<16xf32>
    %343 = vector.multi_reduction <add>, %336, %cst_139 [1] : vector<16x32xf32> to vector<16xf32>
    %344 = vector.shape_cast %343 : vector<16xf32> to vector<16x1xf32>
    %cst_140 = arith.constant 3.200000e+01 : f32
    %345 = vector.broadcast %cst_140 : f32 to vector<16x1xf32>
    %346 = arith.divf %344, %345 : vector<16x1xf32>
    %347 = vector.broadcast %346 : vector<16x1xf32> to vector<16x32xf32>
    %348 = arith.subf %336, %347 : vector<16x32xf32>
    %349 = arith.mulf %348, %348 : vector<16x32xf32>
    %cst_141 = arith.constant dense<0.000000e+00> : vector<16xf32>
    %350 = vector.multi_reduction <add>, %349, %cst_141 [1] : vector<16x32xf32> to vector<16xf32>
    %351 = vector.shape_cast %350 : vector<16xf32> to vector<16x1xf32>
    %cst_142 = arith.constant 3.200000e+01 : f32
    %352 = vector.broadcast %cst_142 : f32 to vector<16x1xf32>
    %353 = arith.divf %351, %352 : vector<16x1xf32>
    %354 = vector.broadcast %346 : vector<16x1xf32> to vector<16x32xf32>
    %355 = arith.subf %336, %354 : vector<16x32xf32>
    %cst_143 = arith.constant 9.99999974E-6 : f32
    %356 = vector.broadcast %cst_143 : f32 to vector<16x1xf32>
    %357 = arith.addf %353, %356 : vector<16x1xf32>
    %358 = math.rsqrt %357 : vector<16x1xf32>
    %359 = vector.broadcast %358 : vector<16x1xf32> to vector<16x32xf32>
    %360 = arith.mulf %355, %359 : vector<16x32xf32>
    %361 = vector.broadcast %339 : vector<1x32xf32> to vector<16x32xf32>
    %362 = arith.mulf %360, %361 : vector<16x32xf32>
    %363 = vector.broadcast %342 : vector<1x32xf32> to vector<16x32xf32>
    %364 = arith.addf %362, %363 : vector<16x32xf32>
    %365 = arith.truncf %364 : vector<16x32xf32> to vector<16x32xbf16>
    %cst_144 = arith.constant 0.000000e+00 : f32
    %366 = vector.broadcast %cst_144 : f32 to vector<16x32xf32>
    %c4_i32_145 = arith.constant 4 : i32
    %367 = arith.muli %c1_i32_134, %c4_i32_145 : i32
    %c0_i32_146 = arith.constant 0 : i32
    %368 = arith.addi %367, %c0_i32_146 : i32
    %369 = arith.index_cast %368 : i32 to index
    %c0_147 = arith.constant 0 : index
    %c0_148 = arith.constant 0 : index
    %370 = vector.load %arg5[%369, %c0_147, %c0_148] : memref<8x32x8xbf16, #tpu.memory_space<vmem>>, vector<1x32x8xbf16>
    %371 = vector.shape_cast %370 : vector<1x32x8xbf16> to vector<32x8xbf16>
    %cst_149 = arith.constant dense<0.000000e+00> : vector<16x8xf32>
    %372 = tpu.matmul %365, %371, %cst_149 {dimension_numbers = #tpu.dot_dimension_numbers<[1], [0], [0], [1], [0, 0, 1, 1], [], []>} : vector<16x32xbf16>, vector<32x8xbf16>, vector<16x8xf32> -> vector<16x8xf32>
    %373 = arith.index_cast %368 : i32 to index
    %c0_150 = arith.constant 0 : index
    %c0_151 = arith.constant 0 : index
    %374 = vector.load %arg6[%373, %c0_150, %c0_151] : memref<8x1x8xf32, #tpu.memory_space<vmem>>, vector<1x1x8xf32>
    %375 = vector.shape_cast %374 : vector<1x1x8xf32> to vector<1x8xf32>
    %376 = vector.broadcast %375 : vector<1x8xf32> to vector<16x8xf32>
    %377 = arith.addf %372, %376 : vector<16x8xf32>
    %378 = vector.shape_cast %377 : vector<16x8xf32> to vector<2x8x8xf32>
    %379 = arith.index_cast %368 : i32 to index
    %c0_152 = arith.constant 0 : index
    %c0_153 = arith.constant 0 : index
    %380 = vector.load %arg7[%379, %c0_152, %c0_153] : memref<8x32x8xbf16, #tpu.memory_space<vmem>>, vector<1x32x8xbf16>
    %381 = vector.shape_cast %380 : vector<1x32x8xbf16> to vector<32x8xbf16>
    %cst_154 = arith.constant dense<0.000000e+00> : vector<16x8xf32>
    %382 = tpu.matmul %365, %381, %cst_154 {dimension_numbers = #tpu.dot_dimension_numbers<[1], [0], [0], [1], [0, 0, 1, 1], [], []>} : vector<16x32xbf16>, vector<32x8xbf16>, vector<16x8xf32> -> vector<16x8xf32>
    %383 = arith.index_cast %368 : i32 to index
    %c0_155 = arith.constant 0 : index
    %c0_156 = arith.constant 0 : index
    %384 = vector.load %arg8[%383, %c0_155, %c0_156] : memref<8x1x8xf32, #tpu.memory_space<vmem>>, vector<1x1x8xf32>
    %385 = vector.shape_cast %384 : vector<1x1x8xf32> to vector<1x8xf32>
    %386 = vector.broadcast %385 : vector<1x8xf32> to vector<16x8xf32>
    %387 = arith.addf %382, %386 : vector<16x8xf32>
    %388 = vector.shape_cast %387 : vector<16x8xf32> to vector<2x8x8xf32>
    %389 = arith.index_cast %368 : i32 to index
    %c0_157 = arith.constant 0 : index
    %c0_158 = arith.constant 0 : index
    %390 = vector.load %arg9[%389, %c0_157, %c0_158] : memref<8x32x8xbf16, #tpu.memory_space<vmem>>, vector<1x32x8xbf16>
    %391 = vector.shape_cast %390 : vector<1x32x8xbf16> to vector<32x8xbf16>
    %cst_159 = arith.constant dense<0.000000e+00> : vector<16x8xf32>
    %392 = tpu.matmul %365, %391, %cst_159 {dimension_numbers = #tpu.dot_dimension_numbers<[1], [0], [0], [1], [0, 0, 1, 1], [], []>} : vector<16x32xbf16>, vector<32x8xbf16>, vector<16x8xf32> -> vector<16x8xf32>
    %393 = arith.index_cast %368 : i32 to index
    %c0_160 = arith.constant 0 : index
    %c0_161 = arith.constant 0 : index
    %394 = vector.load %arg10[%393, %c0_160, %c0_161] : memref<8x1x8xf32, #tpu.memory_space<vmem>>, vector<1x1x8xf32>
    %395 = vector.shape_cast %394 : vector<1x1x8xf32> to vector<1x8xf32>
    %396 = vector.broadcast %395 : vector<1x8xf32> to vector<16x8xf32>
    %397 = arith.addf %392, %396 : vector<16x8xf32>
    %398 = vector.shape_cast %397 : vector<16x8xf32> to vector<2x8x8xf32>
    %399 = arith.truncf %378 : vector<2x8x8xf32> to vector<2x8x8xbf16>
    %400 = arith.truncf %388 : vector<2x8x8xf32> to vector<2x8x8xbf16>
    "tpu.trace_start"() <{level = 10 : i32, message = "bqd,bkd->bqk"}> : () -> ()
    %cst_162 = arith.constant dense<0.000000e+00> : vector<2x8x8xf32>
    %401 = tpu.matmul %399, %400, %cst_162 {dimension_numbers = #tpu.dot_dimension_numbers<[2], [2], [1], [1], [0, 0, 0, 1, 1, 1], [0], [0]>} : vector<2x8x8xbf16>, vector<2x8x8xbf16>, vector<2x8x8xf32> -> vector<2x8x8xf32>
    "tpu.trace_stop"() : () -> ()
    %402 = arith.addf %401, %14 : vector<2x8x8xf32>
    %cst_163 = arith.constant dense<0xFF800000> : vector<2x8xf32>
    %403 = vector.multi_reduction <maximumf>, %402, %cst_163 [2] : vector<2x8x8xf32> to vector<2x8xf32>
    %404 = vector.shape_cast %403 : vector<2x8xf32> to vector<2x8x1xf32>
    %405 = vector.broadcast %404 : vector<2x8x1xf32> to vector<2x8x8xf32>
    %406 = arith.subf %402, %405 : vector<2x8x8xf32>
    %407 = math.exp %406 : vector<2x8x8xf32>
    %cst_164 = arith.constant dense<0.000000e+00> : vector<2x8xf32>
    %408 = vector.multi_reduction <add>, %407, %cst_164 [2] : vector<2x8x8xf32> to vector<2x8xf32>
    %409 = vector.shape_cast %408 : vector<2x8xf32> to vector<2x8x1xf32>
    %410 = tpu.reciprocal %409 {approx = true} : vector<2x8x1xf32> -> vector<2x8x1xf32>
    %411 = vector.broadcast %410 : vector<2x8x1xf32> to vector<2x8x8xf32>
    %412 = arith.mulf %407, %411 : vector<2x8x8xf32>
    %413 = arith.truncf %412 : vector<2x8x8xf32> to vector<2x8x8xbf16>
    %414 = arith.truncf %398 : vector<2x8x8xf32> to vector<2x8x8xbf16>
    "tpu.trace_start"() <{level = 10 : i32, message = "bqk,bkd->bqd"}> : () -> ()
    %cst_165 = arith.constant dense<0.000000e+00> : vector<2x8x8xf32>
    %415 = tpu.matmul %413, %414, %cst_165 {dimension_numbers = #tpu.dot_dimension_numbers<[2], [1], [1], [2], [0, 0, 0, 1, 1, 2], [0], [0]>} : vector<2x8x8xbf16>, vector<2x8x8xbf16>, vector<2x8x8xf32> -> vector<2x8x8xf32>
    "tpu.trace_stop"() : () -> ()
    %416 = vector.shape_cast %415 : vector<2x8x8xf32> to vector<16x8xf32>
    %417 = arith.truncf %416 : vector<16x8xf32> to vector<16x8xbf16>
    %418 = arith.index_cast %368 : i32 to index
    %c0_166 = arith.constant 0 : index
    %c0_167 = arith.constant 0 : index
    %419 = vector.load %arg11[%418, %c0_166, %c0_167] : memref<8x8x32xbf16, #tpu.memory_space<vmem>>, vector<1x8x32xbf16>
    %420 = vector.shape_cast %419 : vector<1x8x32xbf16> to vector<8x32xbf16>
    %cst_168 = arith.constant dense<0.000000e+00> : vector<16x32xf32>
    %421 = tpu.matmul %417, %420, %cst_168 {dimension_numbers = #tpu.dot_dimension_numbers<[1], [0], [0], [1], [0, 0, 1, 1], [], []>} : vector<16x8xbf16>, vector<8x32xbf16>, vector<16x32xf32> -> vector<16x32xf32>
    %422 = arith.addf %366, %421 : vector<16x32xf32>
    %c4_i32_169 = arith.constant 4 : i32
    %423 = arith.muli %c1_i32_134, %c4_i32_169 : i32
    %c1_i32_170 = arith.constant 1 : i32
    %424 = arith.addi %423, %c1_i32_170 : i32
    %425 = arith.index_cast %424 : i32 to index
    %c0_171 = arith.constant 0 : index
    %c0_172 = arith.constant 0 : index
    %426 = vector.load %arg5[%425, %c0_171, %c0_172] : memref<8x32x8xbf16, #tpu.memory_space<vmem>>, vector<1x32x8xbf16>
    %427 = vector.shape_cast %426 : vector<1x32x8xbf16> to vector<32x8xbf16>
    %cst_173 = arith.constant dense<0.000000e+00> : vector<16x8xf32>
    %428 = tpu.matmul %365, %427, %cst_173 {dimension_numbers = #tpu.dot_dimension_numbers<[1], [0], [0], [1], [0, 0, 1, 1], [], []>} : vector<16x32xbf16>, vector<32x8xbf16>, vector<16x8xf32> -> vector<16x8xf32>
    %429 = arith.index_cast %424 : i32 to index
    %c0_174 = arith.constant 0 : index
    %c0_175 = arith.constant 0 : index
    %430 = vector.load %arg6[%429, %c0_174, %c0_175] : memref<8x1x8xf32, #tpu.memory_space<vmem>>, vector<1x1x8xf32>
    %431 = vector.shape_cast %430 : vector<1x1x8xf32> to vector<1x8xf32>
    %432 = vector.broadcast %431 : vector<1x8xf32> to vector<16x8xf32>
    %433 = arith.addf %428, %432 : vector<16x8xf32>
    %434 = vector.shape_cast %433 : vector<16x8xf32> to vector<2x8x8xf32>
    %435 = arith.index_cast %424 : i32 to index
    %c0_176 = arith.constant 0 : index
    %c0_177 = arith.constant 0 : index
    %436 = vector.load %arg7[%435, %c0_176, %c0_177] : memref<8x32x8xbf16, #tpu.memory_space<vmem>>, vector<1x32x8xbf16>
    %437 = vector.shape_cast %436 : vector<1x32x8xbf16> to vector<32x8xbf16>
    %cst_178 = arith.constant dense<0.000000e+00> : vector<16x8xf32>
    %438 = tpu.matmul %365, %437, %cst_178 {dimension_numbers = #tpu.dot_dimension_numbers<[1], [0], [0], [1], [0, 0, 1, 1], [], []>} : vector<16x32xbf16>, vector<32x8xbf16>, vector<16x8xf32> -> vector<16x8xf32>
    %439 = arith.index_cast %424 : i32 to index
    %c0_179 = arith.constant 0 : index
    %c0_180 = arith.constant 0 : index
    %440 = vector.load %arg8[%439, %c0_179, %c0_180] : memref<8x1x8xf32, #tpu.memory_space<vmem>>, vector<1x1x8xf32>
    %441 = vector.shape_cast %440 : vector<1x1x8xf32> to vector<1x8xf32>
    %442 = vector.broadcast %441 : vector<1x8xf32> to vector<16x8xf32>
    %443 = arith.addf %438, %442 : vector<16x8xf32>
    %444 = vector.shape_cast %443 : vector<16x8xf32> to vector<2x8x8xf32>
    %445 = arith.index_cast %424 : i32 to index
    %c0_181 = arith.constant 0 : index
    %c0_182 = arith.constant 0 : index
    %446 = vector.load %arg9[%445, %c0_181, %c0_182] : memref<8x32x8xbf16, #tpu.memory_space<vmem>>, vector<1x32x8xbf16>
    %447 = vector.shape_cast %446 : vector<1x32x8xbf16> to vector<32x8xbf16>
    %cst_183 = arith.constant dense<0.000000e+00> : vector<16x8xf32>
    %448 = tpu.matmul %365, %447, %cst_183 {dimension_numbers = #tpu.dot_dimension_numbers<[1], [0], [0], [1], [0, 0, 1, 1], [], []>} : vector<16x32xbf16>, vector<32x8xbf16>, vector<16x8xf32> -> vector<16x8xf32>
    %449 = arith.index_cast %424 : i32 to index
    %c0_184 = arith.constant 0 : index
    %c0_185 = arith.constant 0 : index
    %450 = vector.load %arg10[%449, %c0_184, %c0_185] : memref<8x1x8xf32, #tpu.memory_space<vmem>>, vector<1x1x8xf32>
    %451 = vector.shape_cast %450 : vector<1x1x8xf32> to vector<1x8xf32>
    %452 = vector.broadcast %451 : vector<1x8xf32> to vector<16x8xf32>
    %453 = arith.addf %448, %452 : vector<16x8xf32>
    %454 = vector.shape_cast %453 : vector<16x8xf32> to vector<2x8x8xf32>
    %455 = arith.truncf %434 : vector<2x8x8xf32> to vector<2x8x8xbf16>
    %456 = arith.truncf %444 : vector<2x8x8xf32> to vector<2x8x8xbf16>
    "tpu.trace_start"() <{level = 10 : i32, message = "bqd,bkd->bqk"}> : () -> ()
    %cst_186 = arith.constant dense<0.000000e+00> : vector<2x8x8xf32>
    %457 = tpu.matmul %455, %456, %cst_186 {dimension_numbers = #tpu.dot_dimension_numbers<[2], [2], [1], [1], [0, 0, 0, 1, 1, 1], [0], [0]>} : vector<2x8x8xbf16>, vector<2x8x8xbf16>, vector<2x8x8xf32> -> vector<2x8x8xf32>
    "tpu.trace_stop"() : () -> ()
    %458 = arith.addf %457, %14 : vector<2x8x8xf32>
    %cst_187 = arith.constant dense<0xFF800000> : vector<2x8xf32>
    %459 = vector.multi_reduction <maximumf>, %458, %cst_187 [2] : vector<2x8x8xf32> to vector<2x8xf32>
    %460 = vector.shape_cast %459 : vector<2x8xf32> to vector<2x8x1xf32>
    %461 = vector.broadcast %460 : vector<2x8x1xf32> to vector<2x8x8xf32>
    %462 = arith.subf %458, %461 : vector<2x8x8xf32>
    %463 = math.exp %462 : vector<2x8x8xf32>
    %cst_188 = arith.constant dense<0.000000e+00> : vector<2x8xf32>
    %464 = vector.multi_reduction <add>, %463, %cst_188 [2] : vector<2x8x8xf32> to vector<2x8xf32>
    %465 = vector.shape_cast %464 : vector<2x8xf32> to vector<2x8x1xf32>
    %466 = tpu.reciprocal %465 {approx = true} : vector<2x8x1xf32> -> vector<2x8x1xf32>
    %467 = vector.broadcast %466 : vector<2x8x1xf32> to vector<2x8x8xf32>
    %468 = arith.mulf %463, %467 : vector<2x8x8xf32>
    %469 = arith.truncf %468 : vector<2x8x8xf32> to vector<2x8x8xbf16>
    %470 = arith.truncf %454 : vector<2x8x8xf32> to vector<2x8x8xbf16>
    "tpu.trace_start"() <{level = 10 : i32, message = "bqk,bkd->bqd"}> : () -> ()
    %cst_189 = arith.constant dense<0.000000e+00> : vector<2x8x8xf32>
    %471 = tpu.matmul %469, %470, %cst_189 {dimension_numbers = #tpu.dot_dimension_numbers<[2], [1], [1], [2], [0, 0, 0, 1, 1, 2], [0], [0]>} : vector<2x8x8xbf16>, vector<2x8x8xbf16>, vector<2x8x8xf32> -> vector<2x8x8xf32>
    "tpu.trace_stop"() : () -> ()
    %472 = vector.shape_cast %471 : vector<2x8x8xf32> to vector<16x8xf32>
    %473 = arith.truncf %472 : vector<16x8xf32> to vector<16x8xbf16>
    %474 = arith.index_cast %424 : i32 to index
    %c0_190 = arith.constant 0 : index
    %c0_191 = arith.constant 0 : index
    %475 = vector.load %arg11[%474, %c0_190, %c0_191] : memref<8x8x32xbf16, #tpu.memory_space<vmem>>, vector<1x8x32xbf16>
    %476 = vector.shape_cast %475 : vector<1x8x32xbf16> to vector<8x32xbf16>
    %cst_192 = arith.constant dense<0.000000e+00> : vector<16x32xf32>
    %477 = tpu.matmul %473, %476, %cst_192 {dimension_numbers = #tpu.dot_dimension_numbers<[1], [0], [0], [1], [0, 0, 1, 1], [], []>} : vector<16x8xbf16>, vector<8x32xbf16>, vector<16x32xf32> -> vector<16x32xf32>
    %478 = arith.addf %422, %477 : vector<16x32xf32>
    %c4_i32_193 = arith.constant 4 : i32
    %479 = arith.muli %c1_i32_134, %c4_i32_193 : i32
    %c2_i32_194 = arith.constant 2 : i32
    %480 = arith.addi %479, %c2_i32_194 : i32
    %481 = arith.index_cast %480 : i32 to index
    %c0_195 = arith.constant 0 : index
    %c0_196 = arith.constant 0 : index
    %482 = vector.load %arg5[%481, %c0_195, %c0_196] : memref<8x32x8xbf16, #tpu.memory_space<vmem>>, vector<1x32x8xbf16>
    %483 = vector.shape_cast %482 : vector<1x32x8xbf16> to vector<32x8xbf16>
    %cst_197 = arith.constant dense<0.000000e+00> : vector<16x8xf32>
    %484 = tpu.matmul %365, %483, %cst_197 {dimension_numbers = #tpu.dot_dimension_numbers<[1], [0], [0], [1], [0, 0, 1, 1], [], []>} : vector<16x32xbf16>, vector<32x8xbf16>, vector<16x8xf32> -> vector<16x8xf32>
    %485 = arith.index_cast %480 : i32 to index
    %c0_198 = arith.constant 0 : index
    %c0_199 = arith.constant 0 : index
    %486 = vector.load %arg6[%485, %c0_198, %c0_199] : memref<8x1x8xf32, #tpu.memory_space<vmem>>, vector<1x1x8xf32>
    %487 = vector.shape_cast %486 : vector<1x1x8xf32> to vector<1x8xf32>
    %488 = vector.broadcast %487 : vector<1x8xf32> to vector<16x8xf32>
    %489 = arith.addf %484, %488 : vector<16x8xf32>
    %490 = vector.shape_cast %489 : vector<16x8xf32> to vector<2x8x8xf32>
    %491 = arith.index_cast %480 : i32 to index
    %c0_200 = arith.constant 0 : index
    %c0_201 = arith.constant 0 : index
    %492 = vector.load %arg7[%491, %c0_200, %c0_201] : memref<8x32x8xbf16, #tpu.memory_space<vmem>>, vector<1x32x8xbf16>
    %493 = vector.shape_cast %492 : vector<1x32x8xbf16> to vector<32x8xbf16>
    %cst_202 = arith.constant dense<0.000000e+00> : vector<16x8xf32>
    %494 = tpu.matmul %365, %493, %cst_202 {dimension_numbers = #tpu.dot_dimension_numbers<[1], [0], [0], [1], [0, 0, 1, 1], [], []>} : vector<16x32xbf16>, vector<32x8xbf16>, vector<16x8xf32> -> vector<16x8xf32>
    %495 = arith.index_cast %480 : i32 to index
    %c0_203 = arith.constant 0 : index
    %c0_204 = arith.constant 0 : index
    %496 = vector.load %arg8[%495, %c0_203, %c0_204] : memref<8x1x8xf32, #tpu.memory_space<vmem>>, vector<1x1x8xf32>
    %497 = vector.shape_cast %496 : vector<1x1x8xf32> to vector<1x8xf32>
    %498 = vector.broadcast %497 : vector<1x8xf32> to vector<16x8xf32>
    %499 = arith.addf %494, %498 : vector<16x8xf32>
    %500 = vector.shape_cast %499 : vector<16x8xf32> to vector<2x8x8xf32>
    %501 = arith.index_cast %480 : i32 to index
    %c0_205 = arith.constant 0 : index
    %c0_206 = arith.constant 0 : index
    %502 = vector.load %arg9[%501, %c0_205, %c0_206] : memref<8x32x8xbf16, #tpu.memory_space<vmem>>, vector<1x32x8xbf16>
    %503 = vector.shape_cast %502 : vector<1x32x8xbf16> to vector<32x8xbf16>
    %cst_207 = arith.constant dense<0.000000e+00> : vector<16x8xf32>
    %504 = tpu.matmul %365, %503, %cst_207 {dimension_numbers = #tpu.dot_dimension_numbers<[1], [0], [0], [1], [0, 0, 1, 1], [], []>} : vector<16x32xbf16>, vector<32x8xbf16>, vector<16x8xf32> -> vector<16x8xf32>
    %505 = arith.index_cast %480 : i32 to index
    %c0_208 = arith.constant 0 : index
    %c0_209 = arith.constant 0 : index
    %506 = vector.load %arg10[%505, %c0_208, %c0_209] : memref<8x1x8xf32, #tpu.memory_space<vmem>>, vector<1x1x8xf32>
    %507 = vector.shape_cast %506 : vector<1x1x8xf32> to vector<1x8xf32>
    %508 = vector.broadcast %507 : vector<1x8xf32> to vector<16x8xf32>
    %509 = arith.addf %504, %508 : vector<16x8xf32>
    %510 = vector.shape_cast %509 : vector<16x8xf32> to vector<2x8x8xf32>
    %511 = arith.truncf %490 : vector<2x8x8xf32> to vector<2x8x8xbf16>
    %512 = arith.truncf %500 : vector<2x8x8xf32> to vector<2x8x8xbf16>
    "tpu.trace_start"() <{level = 10 : i32, message = "bqd,bkd->bqk"}> : () -> ()
    %cst_210 = arith.constant dense<0.000000e+00> : vector<2x8x8xf32>
    %513 = tpu.matmul %511, %512, %cst_210 {dimension_numbers = #tpu.dot_dimension_numbers<[2], [2], [1], [1], [0, 0, 0, 1, 1, 1], [0], [0]>} : vector<2x8x8xbf16>, vector<2x8x8xbf16>, vector<2x8x8xf32> -> vector<2x8x8xf32>
    "tpu.trace_stop"() : () -> ()
    %514 = arith.addf %513, %14 : vector<2x8x8xf32>
    %cst_211 = arith.constant dense<0xFF800000> : vector<2x8xf32>
    %515 = vector.multi_reduction <maximumf>, %514, %cst_211 [2] : vector<2x8x8xf32> to vector<2x8xf32>
    %516 = vector.shape_cast %515 : vector<2x8xf32> to vector<2x8x1xf32>
    %517 = vector.broadcast %516 : vector<2x8x1xf32> to vector<2x8x8xf32>
    %518 = arith.subf %514, %517 : vector<2x8x8xf32>
    %519 = math.exp %518 : vector<2x8x8xf32>
    %cst_212 = arith.constant dense<0.000000e+00> : vector<2x8xf32>
    %520 = vector.multi_reduction <add>, %519, %cst_212 [2] : vector<2x8x8xf32> to vector<2x8xf32>
    %521 = vector.shape_cast %520 : vector<2x8xf32> to vector<2x8x1xf32>
    %522 = tpu.reciprocal %521 {approx = true} : vector<2x8x1xf32> -> vector<2x8x1xf32>
    %523 = vector.broadcast %522 : vector<2x8x1xf32> to vector<2x8x8xf32>
    %524 = arith.mulf %519, %523 : vector<2x8x8xf32>
    %525 = arith.truncf %524 : vector<2x8x8xf32> to vector<2x8x8xbf16>
    %526 = arith.truncf %510 : vector<2x8x8xf32> to vector<2x8x8xbf16>
    "tpu.trace_start"() <{level = 10 : i32, message = "bqk,bkd->bqd"}> : () -> ()
    %cst_213 = arith.constant dense<0.000000e+00> : vector<2x8x8xf32>
    %527 = tpu.matmul %525, %526, %cst_213 {dimension_numbers = #tpu.dot_dimension_numbers<[2], [1], [1], [2], [0, 0, 0, 1, 1, 2], [0], [0]>} : vector<2x8x8xbf16>, vector<2x8x8xbf16>, vector<2x8x8xf32> -> vector<2x8x8xf32>
    "tpu.trace_stop"() : () -> ()
    %528 = vector.shape_cast %527 : vector<2x8x8xf32> to vector<16x8xf32>
    %529 = arith.truncf %528 : vector<16x8xf32> to vector<16x8xbf16>
    %530 = arith.index_cast %480 : i32 to index
    %c0_214 = arith.constant 0 : index
    %c0_215 = arith.constant 0 : index
    %531 = vector.load %arg11[%530, %c0_214, %c0_215] : memref<8x8x32xbf16, #tpu.memory_space<vmem>>, vector<1x8x32xbf16>
    %532 = vector.shape_cast %531 : vector<1x8x32xbf16> to vector<8x32xbf16>
    %cst_216 = arith.constant dense<0.000000e+00> : vector<16x32xf32>
    %533 = tpu.matmul %529, %532, %cst_216 {dimension_numbers = #tpu.dot_dimension_numbers<[1], [0], [0], [1], [0, 0, 1, 1], [], []>} : vector<16x8xbf16>, vector<8x32xbf16>, vector<16x32xf32> -> vector<16x32xf32>
    %534 = arith.addf %478, %533 : vector<16x32xf32>
    %c4_i32_217 = arith.constant 4 : i32
    %535 = arith.muli %c1_i32_134, %c4_i32_217 : i32
    %c3_i32_218 = arith.constant 3 : i32
    %536 = arith.addi %535, %c3_i32_218 : i32
    %537 = arith.index_cast %536 : i32 to index
    %c0_219 = arith.constant 0 : index
    %c0_220 = arith.constant 0 : index
    %538 = vector.load %arg5[%537, %c0_219, %c0_220] : memref<8x32x8xbf16, #tpu.memory_space<vmem>>, vector<1x32x8xbf16>
    %539 = vector.shape_cast %538 : vector<1x32x8xbf16> to vector<32x8xbf16>
    %cst_221 = arith.constant dense<0.000000e+00> : vector<16x8xf32>
    %540 = tpu.matmul %365, %539, %cst_221 {dimension_numbers = #tpu.dot_dimension_numbers<[1], [0], [0], [1], [0, 0, 1, 1], [], []>} : vector<16x32xbf16>, vector<32x8xbf16>, vector<16x8xf32> -> vector<16x8xf32>
    %541 = arith.index_cast %536 : i32 to index
    %c0_222 = arith.constant 0 : index
    %c0_223 = arith.constant 0 : index
    %542 = vector.load %arg6[%541, %c0_222, %c0_223] : memref<8x1x8xf32, #tpu.memory_space<vmem>>, vector<1x1x8xf32>
    %543 = vector.shape_cast %542 : vector<1x1x8xf32> to vector<1x8xf32>
    %544 = vector.broadcast %543 : vector<1x8xf32> to vector<16x8xf32>
    %545 = arith.addf %540, %544 : vector<16x8xf32>
    %546 = vector.shape_cast %545 : vector<16x8xf32> to vector<2x8x8xf32>
    %547 = arith.index_cast %536 : i32 to index
    %c0_224 = arith.constant 0 : index
    %c0_225 = arith.constant 0 : index
    %548 = vector.load %arg7[%547, %c0_224, %c0_225] : memref<8x32x8xbf16, #tpu.memory_space<vmem>>, vector<1x32x8xbf16>
    %549 = vector.shape_cast %548 : vector<1x32x8xbf16> to vector<32x8xbf16>
    %cst_226 = arith.constant dense<0.000000e+00> : vector<16x8xf32>
    %550 = tpu.matmul %365, %549, %cst_226 {dimension_numbers = #tpu.dot_dimension_numbers<[1], [0], [0], [1], [0, 0, 1, 1], [], []>} : vector<16x32xbf16>, vector<32x8xbf16>, vector<16x8xf32> -> vector<16x8xf32>
    %551 = arith.index_cast %536 : i32 to index
    %c0_227 = arith.constant 0 : index
    %c0_228 = arith.constant 0 : index
    %552 = vector.load %arg8[%551, %c0_227, %c0_228] : memref<8x1x8xf32, #tpu.memory_space<vmem>>, vector<1x1x8xf32>
    %553 = vector.shape_cast %552 : vector<1x1x8xf32> to vector<1x8xf32>
    %554 = vector.broadcast %553 : vector<1x8xf32> to vector<16x8xf32>
    %555 = arith.addf %550, %554 : vector<16x8xf32>
    %556 = vector.shape_cast %555 : vector<16x8xf32> to vector<2x8x8xf32>
    %557 = arith.index_cast %536 : i32 to index
    %c0_229 = arith.constant 0 : index
    %c0_230 = arith.constant 0 : index
    %558 = vector.load %arg9[%557, %c0_229, %c0_230] : memref<8x32x8xbf16, #tpu.memory_space<vmem>>, vector<1x32x8xbf16>
    %559 = vector.shape_cast %558 : vector<1x32x8xbf16> to vector<32x8xbf16>
    %cst_231 = arith.constant dense<0.000000e+00> : vector<16x8xf32>
    %560 = tpu.matmul %365, %559, %cst_231 {dimension_numbers = #tpu.dot_dimension_numbers<[1], [0], [0], [1], [0, 0, 1, 1], [], []>} : vector<16x32xbf16>, vector<32x8xbf16>, vector<16x8xf32> -> vector<16x8xf32>
    %561 = arith.index_cast %536 : i32 to index
    %c0_232 = arith.constant 0 : index
    %c0_233 = arith.constant 0 : index
    %562 = vector.load %arg10[%561, %c0_232, %c0_233] : memref<8x1x8xf32, #tpu.memory_space<vmem>>, vector<1x1x8xf32>
    %563 = vector.shape_cast %562 : vector<1x1x8xf32> to vector<1x8xf32>
    %564 = vector.broadcast %563 : vector<1x8xf32> to vector<16x8xf32>
    %565 = arith.addf %560, %564 : vector<16x8xf32>
    %566 = vector.shape_cast %565 : vector<16x8xf32> to vector<2x8x8xf32>
    %567 = arith.truncf %546 : vector<2x8x8xf32> to vector<2x8x8xbf16>
    %568 = arith.truncf %556 : vector<2x8x8xf32> to vector<2x8x8xbf16>
    "tpu.trace_start"() <{level = 10 : i32, message = "bqd,bkd->bqk"}> : () -> ()
    %cst_234 = arith.constant dense<0.000000e+00> : vector<2x8x8xf32>
    %569 = tpu.matmul %567, %568, %cst_234 {dimension_numbers = #tpu.dot_dimension_numbers<[2], [2], [1], [1], [0, 0, 0, 1, 1, 1], [0], [0]>} : vector<2x8x8xbf16>, vector<2x8x8xbf16>, vector<2x8x8xf32> -> vector<2x8x8xf32>
    "tpu.trace_stop"() : () -> ()
    %570 = arith.addf %569, %14 : vector<2x8x8xf32>
    %cst_235 = arith.constant dense<0xFF800000> : vector<2x8xf32>
    %571 = vector.multi_reduction <maximumf>, %570, %cst_235 [2] : vector<2x8x8xf32> to vector<2x8xf32>
    %572 = vector.shape_cast %571 : vector<2x8xf32> to vector<2x8x1xf32>
    %573 = vector.broadcast %572 : vector<2x8x1xf32> to vector<2x8x8xf32>
    %574 = arith.subf %570, %573 : vector<2x8x8xf32>
    %575 = math.exp %574 : vector<2x8x8xf32>
    %cst_236 = arith.constant dense<0.000000e+00> : vector<2x8xf32>
    %576 = vector.multi_reduction <add>, %575, %cst_236 [2] : vector<2x8x8xf32> to vector<2x8xf32>
    %577 = vector.shape_cast %576 : vector<2x8xf32> to vector<2x8x1xf32>
    %578 = tpu.reciprocal %577 {approx = true} : vector<2x8x1xf32> -> vector<2x8x1xf32>
    %579 = vector.broadcast %578 : vector<2x8x1xf32> to vector<2x8x8xf32>
    %580 = arith.mulf %575, %579 : vector<2x8x8xf32>
    %581 = arith.truncf %580 : vector<2x8x8xf32> to vector<2x8x8xbf16>
    %582 = arith.truncf %566 : vector<2x8x8xf32> to vector<2x8x8xbf16>
    "tpu.trace_start"() <{level = 10 : i32, message = "bqk,bkd->bqd"}> : () -> ()
    %cst_237 = arith.constant dense<0.000000e+00> : vector<2x8x8xf32>
    %583 = tpu.matmul %581, %582, %cst_237 {dimension_numbers = #tpu.dot_dimension_numbers<[2], [1], [1], [2], [0, 0, 0, 1, 1, 2], [0], [0]>} : vector<2x8x8xbf16>, vector<2x8x8xbf16>, vector<2x8x8xf32> -> vector<2x8x8xf32>
    "tpu.trace_stop"() : () -> ()
    %584 = vector.shape_cast %583 : vector<2x8x8xf32> to vector<16x8xf32>
    %585 = arith.truncf %584 : vector<16x8xf32> to vector<16x8xbf16>
    %586 = arith.index_cast %536 : i32 to index
    %c0_238 = arith.constant 0 : index
    %c0_239 = arith.constant 0 : index
    %587 = vector.load %arg11[%586, %c0_238, %c0_239] : memref<8x8x32xbf16, #tpu.memory_space<vmem>>, vector<1x8x32xbf16>
    %588 = vector.shape_cast %587 : vector<1x8x32xbf16> to vector<8x32xbf16>
    %cst_240 = arith.constant dense<0.000000e+00> : vector<16x32xf32>
    %589 = tpu.matmul %585, %588, %cst_240 {dimension_numbers = #tpu.dot_dimension_numbers<[1], [0], [0], [1], [0, 0, 1, 1], [], []>} : vector<16x8xbf16>, vector<8x32xbf16>, vector<16x32xf32> -> vector<16x32xf32>
    %590 = arith.addf %534, %589 : vector<16x32xf32>
    %591 = arith.addf %336, %590 : vector<16x32xf32>
    %592 = arith.index_cast %c1_i32_134 : i32 to index
    %c0_241 = arith.constant 0 : index
    %c0_242 = arith.constant 0 : index
    %593 = vector.load %arg12[%592, %c0_241, %c0_242] : memref<2x1x32xf32, #tpu.memory_space<vmem>>, vector<1x1x32xf32>
    %594 = vector.shape_cast %593 : vector<1x1x32xf32> to vector<1x32xf32>
    %595 = vector.broadcast %594 : vector<1x32xf32> to vector<16x32xf32>
    %596 = arith.addf %591, %595 : vector<16x32xf32>
    %597 = arith.index_cast %c1_i32_134 : i32 to index
    %c0_243 = arith.constant 0 : index
    %c0_244 = arith.constant 0 : index
    %598 = vector.load %arg13[%597, %c0_243, %c0_244] : memref<2x1x32xf32, #tpu.memory_space<vmem>>, vector<1x1x32xf32>
    %599 = vector.shape_cast %598 : vector<1x1x32xf32> to vector<1x32xf32>
    %600 = arith.index_cast %c1_i32_134 : i32 to index
    %c0_245 = arith.constant 0 : index
    %c0_246 = arith.constant 0 : index
    %601 = vector.load %arg14[%600, %c0_245, %c0_246] : memref<2x1x32xf32, #tpu.memory_space<vmem>>, vector<1x1x32xf32>
    %602 = vector.shape_cast %601 : vector<1x1x32xf32> to vector<1x32xf32>
    %cst_247 = arith.constant dense<0.000000e+00> : vector<16xf32>
    %603 = vector.multi_reduction <add>, %596, %cst_247 [1] : vector<16x32xf32> to vector<16xf32>
    %604 = vector.shape_cast %603 : vector<16xf32> to vector<16x1xf32>
    %cst_248 = arith.constant 3.200000e+01 : f32
    %605 = vector.broadcast %cst_248 : f32 to vector<16x1xf32>
    %606 = arith.divf %604, %605 : vector<16x1xf32>
    %607 = vector.broadcast %606 : vector<16x1xf32> to vector<16x32xf32>
    %608 = arith.subf %596, %607 : vector<16x32xf32>
    %609 = arith.mulf %608, %608 : vector<16x32xf32>
    %cst_249 = arith.constant dense<0.000000e+00> : vector<16xf32>
    %610 = vector.multi_reduction <add>, %609, %cst_249 [1] : vector<16x32xf32> to vector<16xf32>
    %611 = vector.shape_cast %610 : vector<16xf32> to vector<16x1xf32>
    %cst_250 = arith.constant 3.200000e+01 : f32
    %612 = vector.broadcast %cst_250 : f32 to vector<16x1xf32>
    %613 = arith.divf %611, %612 : vector<16x1xf32>
    %614 = vector.broadcast %606 : vector<16x1xf32> to vector<16x32xf32>
    %615 = arith.subf %596, %614 : vector<16x32xf32>
    %cst_251 = arith.constant 9.99999974E-6 : f32
    %616 = vector.broadcast %cst_251 : f32 to vector<16x1xf32>
    %617 = arith.addf %613, %616 : vector<16x1xf32>
    %618 = math.rsqrt %617 : vector<16x1xf32>
    %619 = vector.broadcast %618 : vector<16x1xf32> to vector<16x32xf32>
    %620 = arith.mulf %615, %619 : vector<16x32xf32>
    %621 = vector.broadcast %599 : vector<1x32xf32> to vector<16x32xf32>
    %622 = arith.mulf %620, %621 : vector<16x32xf32>
    %623 = vector.broadcast %602 : vector<1x32xf32> to vector<16x32xf32>
    %624 = arith.addf %622, %623 : vector<16x32xf32>
    %625 = arith.index_cast %c1_i32_134 : i32 to index
    %c0_252 = arith.constant 0 : index
    %c0_253 = arith.constant 0 : index
    %626 = vector.load %arg15[%625, %c0_252, %c0_253] : memref<2x32x128xbf16, #tpu.memory_space<vmem>>, vector<1x32x128xbf16>
    %627 = vector.shape_cast %626 : vector<1x32x128xbf16> to vector<32x128xbf16>
    %628 = arith.truncf %624 : vector<16x32xf32> to vector<16x32xbf16>
    %cst_254 = arith.constant dense<0.000000e+00> : vector<16x128xf32>
    %629 = tpu.matmul %628, %627, %cst_254 {dimension_numbers = #tpu.dot_dimension_numbers<[1], [0], [0], [1], [0, 0, 1, 1], [], []>} : vector<16x32xbf16>, vector<32x128xbf16>, vector<16x128xf32> -> vector<16x128xf32>
    %630 = arith.index_cast %c1_i32_134 : i32 to index
    %c0_255 = arith.constant 0 : index
    %c0_256 = arith.constant 0 : index
    %631 = vector.load %arg16[%630, %c0_255, %c0_256] : memref<2x1x128xf32, #tpu.memory_space<vmem>>, vector<1x1x128xf32>
    %632 = vector.shape_cast %631 : vector<1x1x128xf32> to vector<1x128xf32>
    %633 = vector.broadcast %632 : vector<1x128xf32> to vector<16x128xf32>
    %634 = arith.addf %629, %633 : vector<16x128xf32>
    %635 = arith.mulf %634, %634 : vector<16x128xf32>
    %636 = arith.mulf %634, %635 : vector<16x128xf32>
    %cst_257 = arith.constant 4.471500e-02 : f32
    %637 = vector.broadcast %cst_257 : f32 to vector<16x128xf32>
    %638 = arith.mulf %637, %636 : vector<16x128xf32>
    %639 = arith.addf %634, %638 : vector<16x128xf32>
    %cst_258 = arith.constant 0.797884583 : f32
    %640 = vector.broadcast %cst_258 : f32 to vector<16x128xf32>
    %641 = arith.mulf %640, %639 : vector<16x128xf32>
    %642 = math.tanh %641 : vector<16x128xf32>
    %cst_259 = arith.constant 1.000000e+00 : f32
    %643 = vector.broadcast %cst_259 : f32 to vector<16x128xf32>
    %644 = arith.addf %643, %642 : vector<16x128xf32>
    %cst_260 = arith.constant 5.000000e-01 : f32
    %645 = vector.broadcast %cst_260 : f32 to vector<16x128xf32>
    %646 = arith.mulf %645, %644 : vector<16x128xf32>
    %647 = arith.mulf %634, %646 : vector<16x128xf32>
    %648 = arith.index_cast %c1_i32_134 : i32 to index
    %c0_261 = arith.constant 0 : index
    %c0_262 = arith.constant 0 : index
    %649 = vector.load %arg17[%648, %c0_261, %c0_262] : memref<2x128x32xbf16, #tpu.memory_space<vmem>>, vector<1x128x32xbf16>
    %650 = vector.shape_cast %649 : vector<1x128x32xbf16> to vector<128x32xbf16>
    %651 = arith.truncf %647 : vector<16x128xf32> to vector<16x128xbf16>
    %cst_263 = arith.constant dense<0.000000e+00> : vector<16x32xf32>
    %652 = tpu.matmul %651, %650, %cst_263 {dimension_numbers = #tpu.dot_dimension_numbers<[1], [0], [0], [1], [0, 0, 1, 1], [], []>} : vector<16x128xbf16>, vector<128x32xbf16>, vector<16x32xf32> -> vector<16x32xf32>
    %653 = arith.index_cast %c1_i32_134 : i32 to index
    %c0_264 = arith.constant 0 : index
    %c0_265 = arith.constant 0 : index
    %654 = vector.load %arg18[%653, %c0_264, %c0_265] : memref<2x1x32xf32, #tpu.memory_space<vmem>>, vector<1x1x32xf32>
    %655 = vector.shape_cast %654 : vector<1x1x32xf32> to vector<1x32xf32>
    %656 = vector.broadcast %655 : vector<1x32xf32> to vector<16x32xf32>
    %657 = arith.addf %652, %656 : vector<16x32xf32>
    %658 = arith.addf %596, %657 : vector<16x32xf32>
    %c2_i32_266 = arith.constant 2 : i32
    %c0_267 = arith.constant 0 : index
    %c0_268 = arith.constant 0 : index
    %659 = vector.load %arg19[%c0_267, %c0_268] : memref<1x32xf32, #tpu.memory_space<vmem>>, vector<1x32xf32>
    %c0_269 = arith.constant 0 : index
    %c0_270 = arith.constant 0 : index
    %660 = vector.load %arg20[%c0_269, %c0_270] : memref<1x32xf32, #tpu.memory_space<vmem>>, vector<1x32xf32>
    %cst_271 = arith.constant dense<0.000000e+00> : vector<16xf32>
    %661 = vector.multi_reduction <add>, %658, %cst_271 [1] : vector<16x32xf32> to vector<16xf32>
    %662 = vector.shape_cast %661 : vector<16xf32> to vector<16x1xf32>
    %cst_272 = arith.constant 3.200000e+01 : f32
    %663 = vector.broadcast %cst_272 : f32 to vector<16x1xf32>
    %664 = arith.divf %662, %663 : vector<16x1xf32>
    %665 = vector.broadcast %664 : vector<16x1xf32> to vector<16x32xf32>
    %666 = arith.subf %658, %665 : vector<16x32xf32>
    %667 = arith.mulf %666, %666 : vector<16x32xf32>
    %cst_273 = arith.constant dense<0.000000e+00> : vector<16xf32>
    %668 = vector.multi_reduction <add>, %667, %cst_273 [1] : vector<16x32xf32> to vector<16xf32>
    %669 = vector.shape_cast %668 : vector<16xf32> to vector<16x1xf32>
    %cst_274 = arith.constant 3.200000e+01 : f32
    %670 = vector.broadcast %cst_274 : f32 to vector<16x1xf32>
    %671 = arith.divf %669, %670 : vector<16x1xf32>
    %672 = vector.broadcast %664 : vector<16x1xf32> to vector<16x32xf32>
    %673 = arith.subf %658, %672 : vector<16x32xf32>
    %cst_275 = arith.constant 9.99999974E-6 : f32
    %674 = vector.broadcast %cst_275 : f32 to vector<16x1xf32>
    %675 = arith.addf %671, %674 : vector<16x1xf32>
    %676 = math.rsqrt %675 : vector<16x1xf32>
    %677 = vector.broadcast %676 : vector<16x1xf32> to vector<16x32xf32>
    %678 = arith.mulf %673, %677 : vector<16x32xf32>
    %679 = vector.broadcast %659 : vector<1x32xf32> to vector<16x32xf32>
    %680 = arith.mulf %678, %679 : vector<16x32xf32>
    %681 = vector.broadcast %660 : vector<1x32xf32> to vector<16x32xf32>
    %682 = arith.addf %680, %681 : vector<16x32xf32>
    %683 = vector.shape_cast %682 : vector<16x32xf32> to vector<2x8x32xf32>
    %cst_276 = arith.constant dense<0.000000e+00> : vector<2x32xf32>
    %684 = vector.multi_reduction <add>, %683, %cst_276 [1] : vector<2x8x32xf32> to vector<2x32xf32>
    %cst_277 = arith.constant 8.000000e+00 : f32
    %685 = vector.broadcast %cst_277 : f32 to vector<2x32xf32>
    %686 = arith.divf %684, %685 : vector<2x32xf32>
    %c0_278 = arith.constant 0 : index
    %c0_279 = arith.constant 0 : index
    %687 = vector.load %arg21[%c0_278, %c0_279] : memref<1x32xf32, #tpu.memory_space<vmem>>, vector<1x32xf32>
    %688 = vector.broadcast %687 : vector<1x32xf32> to vector<2x32xf32>
    %689 = arith.mulf %686, %688 : vector<2x32xf32>
    %cst_280 = arith.constant dense<0.000000e+00> : vector<2xf32>
    %690 = vector.multi_reduction <add>, %689, %cst_280 [1] : vector<2x32xf32> to vector<2xf32>
    %691 = vector.shape_cast %690 : vector<2xf32> to vector<2x1xf32>
    %c0_281 = arith.constant 0 : index
    %c0_282 = arith.constant 0 : index
    %692 = vector.load %arg22[%c0_281, %c0_282] : memref<1x1xf32, #tpu.memory_space<vmem>>, vector<1x1xf32>
    %693 = vector.broadcast %692 : vector<1x1xf32> to vector<2x1xf32>
    %694 = arith.addf %691, %693 : vector<2x1xf32>
    %695 = tpu.iota {dimensions = array<i32: 1>} : vector<2x128xi32>
    %696 = tpu.iota {dimensions = array<i32: 0>} : vector<2x128xi32>
    %697 = arith.cmpi eq, %695, %696 : vector<2x128xi32>
    %cst_283 = arith.constant 0.000000e+00 : f32
    %698 = vector.shape_cast %694 : vector<2x1xf32> to vector<2x1xf32>
    %699 = vector.broadcast %698 : vector<2x1xf32> to vector<2x128xf32>
    %700 = vector.broadcast %cst_283 : f32 to vector<2x128xf32>
    %701 = arith.select %697, %699, %700 : vector<2x128xi1>, vector<2x128xf32>
    %cst_284 = arith.constant dense<0.000000e+00> : vector<128xf32>
    %702 = vector.multi_reduction <add>, %701, %cst_284 [0] : vector<2x128xf32> to vector<128xf32>
    %703 = vector.shape_cast %702 : vector<128xf32> to vector<1x128xf32>
    %c0_285 = arith.constant 0 : index
    %c0_286 = arith.constant 0 : index
    %704 = vector.load %arg23[%c0_285, %c0_286] : memref<1x128xf32, #tpu.memory_space<vmem>>, vector<1x128xf32>
    tpu.vector_store %arg23[%c0_285, %c0_286], %703 {strides = array<i32>} : memref<1x128xf32, #tpu.memory_space<vmem>>, vector<1x128xf32>,
    return
  }
  func.func @transform_0(%arg0: i32) -> (i32, i32, i32) {
    %c0_i32 = arith.constant 0 : i32
    %c0_i32_0 = arith.constant 0 : i32
    %c0_i32_1 = arith.constant 0 : i32
    return %arg0, %c0_i32, %c0_i32_0 : i32, i32, i32
  }
  func.func @transform_1(%arg0: i32) -> (i32, i32, i32) {
    %c0_i32 = arith.constant 0 : i32
    %c0_i32_0 = arith.constant 0 : i32
    %c0_i32_1 = arith.constant 0 : i32
    return %arg0, %c0_i32, %c0_i32_0 : i32, i32, i32
  }
  func.func @transform_2(%arg0: i32) -> (i32, i32, i32) {
    %c0_i32 = arith.constant 0 : i32
    %c0_i32_0 = arith.constant 0 : i32
    %c0_i32_1 = arith.constant 0 : i32
    %c0_i32_2 = arith.constant 0 : i32
    return %c0_i32, %c0_i32_0, %c0_i32_1 : i32, i32, i32
  }
  func.func @transform_3(%arg0: i32) -> (i32, i32, i32) {
    %c0_i32 = arith.constant 0 : i32
    %c0_i32_0 = arith.constant 0 : i32
    %c0_i32_1 = arith.constant 0 : i32
    %c0_i32_2 = arith.constant 0 : i32
    return %c0_i32, %c0_i32_0, %c0_i32_1 : i32, i32, i32
  }
  func.func @transform_4(%arg0: i32) -> (i32, i32, i32) {
    %c0_i32 = arith.constant 0 : i32
    %c0_i32_0 = arith.constant 0 : i32
    %c0_i32_1 = arith.constant 0 : i32
    %c0_i32_2 = arith.constant 0 : i32
    return %c0_i32, %c0_i32_0, %c0_i32_1 : i32, i32, i32
  }
  func.func @transform_5(%arg0: i32) -> (i32, i32, i32) {
    %c0_i32 = arith.constant 0 : i32
    %c0_i32_0 = arith.constant 0 : i32
    %c0_i32_1 = arith.constant 0 : i32
    %c0_i32_2 = arith.constant 0 : i32
    return %c0_i32, %c0_i32_0, %c0_i32_1 : i32, i32, i32
  }
  func.func @transform_6(%arg0: i32) -> (i32, i32, i32) {
    %c0_i32 = arith.constant 0 : i32
    %c0_i32_0 = arith.constant 0 : i32
    %c0_i32_1 = arith.constant 0 : i32
    %c0_i32_2 = arith.constant 0 : i32
    return %c0_i32, %c0_i32_0, %c0_i32_1 : i32, i32, i32
  }
  func.func @transform_7(%arg0: i32) -> (i32, i32, i32) {
    %c0_i32 = arith.constant 0 : i32
    %c0_i32_0 = arith.constant 0 : i32
    %c0_i32_1 = arith.constant 0 : i32
    %c0_i32_2 = arith.constant 0 : i32
    return %c0_i32, %c0_i32_0, %c0_i32_1 : i32, i32, i32
  }
  func.func @transform_8(%arg0: i32) -> (i32, i32, i32) {
    %c0_i32 = arith.constant 0 : i32
    %c0_i32_0 = arith.constant 0 : i32
    %c0_i32_1 = arith.constant 0 : i32
    %c0_i32_2 = arith.constant 0 : i32
    return %c0_i32, %c0_i32_0, %c0_i32_1 : i32, i32, i32
  }
  func.func @transform_9(%arg0: i32) -> (i32, i32, i32) {
    %c0_i32 = arith.constant 0 : i32
    %c0_i32_0 = arith.constant 0 : i32
    %c0_i32_1 = arith.constant 0 : i32
    %c0_i32_2 = arith.constant 0 : i32
    return %c0_i32, %c0_i32_0, %c0_i32_1 : i32, i32, i32
  }
  func.func @transform_10(%arg0: i32) -> (i32, i32, i32) {
    %c0_i32 = arith.constant 0 : i32
    %c0_i32_0 = arith.constant 0 : i32
    %c0_i32_1 = arith.constant 0 : i32
    %c0_i32_2 = arith.constant 0 : i32
    return %c0_i32, %c0_i32_0, %c0_i32_1 : i32, i32, i32
  }
  func.func @transform_11(%arg0: i32) -> (i32, i32, i32) {
    %c0_i32 = arith.constant 0 : i32
    %c0_i32_0 = arith.constant 0 : i32
    %c0_i32_1 = arith.constant 0 : i32
    %c0_i32_2 = arith.constant 0 : i32
    return %c0_i32, %c0_i32_0, %c0_i32_1 : i32, i32, i32
  }
  func.func @transform_12(%arg0: i32) -> (i32, i32, i32) {
    %c0_i32 = arith.constant 0 : i32
    %c0_i32_0 = arith.constant 0 : i32
    %c0_i32_1 = arith.constant 0 : i32
    %c0_i32_2 = arith.constant 0 : i32
    return %c0_i32, %c0_i32_0, %c0_i32_1 : i32, i32, i32
  }
  func.func @transform_13(%arg0: i32) -> (i32, i32, i32) {
    %c0_i32 = arith.constant 0 : i32
    %c0_i32_0 = arith.constant 0 : i32
    %c0_i32_1 = arith.constant 0 : i32
    %c0_i32_2 = arith.constant 0 : i32
    return %c0_i32, %c0_i32_0, %c0_i32_1 : i32, i32, i32
  }
  func.func @transform_14(%arg0: i32) -> (i32, i32, i32) {
    %c0_i32 = arith.constant 0 : i32
    %c0_i32_0 = arith.constant 0 : i32
    %c0_i32_1 = arith.constant 0 : i32
    %c0_i32_2 = arith.constant 0 : i32
    return %c0_i32, %c0_i32_0, %c0_i32_1 : i32, i32, i32
  }
  func.func @transform_15(%arg0: i32) -> (i32, i32, i32) {
    %c0_i32 = arith.constant 0 : i32
    %c0_i32_0 = arith.constant 0 : i32
    %c0_i32_1 = arith.constant 0 : i32
    %c0_i32_2 = arith.constant 0 : i32
    return %c0_i32, %c0_i32_0, %c0_i32_1 : i32, i32, i32
  }
  func.func @transform_16(%arg0: i32) -> (i32, i32, i32) {
    %c0_i32 = arith.constant 0 : i32
    %c0_i32_0 = arith.constant 0 : i32
    %c0_i32_1 = arith.constant 0 : i32
    %c0_i32_2 = arith.constant 0 : i32
    return %c0_i32, %c0_i32_0, %c0_i32_1 : i32, i32, i32
  }
  func.func @transform_17(%arg0: i32) -> (i32, i32, i32) {
    %c0_i32 = arith.constant 0 : i32
    %c0_i32_0 = arith.constant 0 : i32
    %c0_i32_1 = arith.constant 0 : i32
    %c0_i32_2 = arith.constant 0 : i32
    return %c0_i32, %c0_i32_0, %c0_i32_1 : i32, i32, i32
  }
  func.func @transform_18(%arg0: i32) -> (i32, i32) {
    %c0_i32 = arith.constant 0 : i32
    %c0_i32_0 = arith.constant 0 : i32
    %c0_i32_1 = arith.constant 0 : i32
    return %c0_i32, %c0_i32_0 : i32, i32
  }
  func.func @transform_19(%arg0: i32) -> (i32, i32) {
    %c0_i32 = arith.constant 0 : i32
    %c0_i32_0 = arith.constant 0 : i32
    %c0_i32_1 = arith.constant 0 : i32
    return %c0_i32, %c0_i32_0 : i32, i32
  }
  func.func @transform_20(%arg0: i32) -> (i32, i32) {
    %c0_i32 = arith.constant 0 : i32
    %c0_i32_0 = arith.constant 0 : i32
    %c0_i32_1 = arith.constant 0 : i32
    return %c0_i32, %c0_i32_0 : i32, i32
  }
  func.func @transform_21(%arg0: i32) -> (i32, i32) {
    %c0_i32 = arith.constant 0 : i32
    %c0_i32_0 = arith.constant 0 : i32
    %c0_i32_1 = arith.constant 0 : i32
    return %c0_i32, %c0_i32_0 : i32, i32
  }
  func.func @transform_22(%arg0: i32) -> (i32, i32) {
    %c0_i32 = arith.constant 0 : i32
    %c0_i32_0 = arith.constant 0 : i32
    return %arg0, %c0_i32 : i32, i32
  }
}

</mosaic_0001>

<llo_original>
// kernel: gpt2_reward_forward.1
$region0: #{gpt2_reward_forward.1}
  #allocation0 [shape = 'u32[]', space=smem, size = 0x4, offset = 0x4, fixed_abs, tag = 'smem constant byte address 0x4 - core index']
  #allocation1 [shape = 'u32[144,128]{1,0:T(1,128)}', space=vmem, size = 0x12000, scoped, tag = 'internal scratch']
  #allocation2 [shape = 'f32[1,1]{1,0:T(1,128)S(1)}', space=vmem, size = 0x200, scoped, tag = 'scoped memory for gpt2_reward_forward.1']
  %s0 = inlined_call_operand.vmem [shape: f32[2,8,32], index: 0, kind: input, shape index: {}]
  %s1 = inlined_call_operand.vmem [shape: f32[2,1,8], index: 1, kind: input, shape index: {}]
  %s2 = inlined_call_operand.vmem [shape: f32[2,1,32], index: 2, kind: input, shape index: {}]
  %s3 = inlined_call_operand.vmem [shape: f32[2,1,32], index: 3, kind: input, shape index: {}]
  %s4 = inlined_call_operand.vmem [shape: bf16[8,32,8], index: 4, kind: input, shape index: {}]
  %s5 = inlined_call_operand.vmem [shape: f32[8,1,8], index: 5, kind: input, shape index: {}]
  %s6 = inlined_call_operand.vmem [shape: bf16[8,32,8], index: 6, kind: input, shape index: {}]
  %s7 = inlined_call_operand.vmem [shape: f32[8,1,8], index: 7, kind: input, shape index: {}]
  %s8 = inlined_call_operand.vmem [shape: bf16[8,32,8], index: 8, kind: input, shape index: {}]
  %s9 = inlined_call_operand.vmem [shape: f32[8,1,8], index: 9, kind: input, shape index: {}]
  %s10 = inlined_call_operand.vmem [shape: bf16[8,8,32], index: 10, kind: input, shape index: {}]
  %s11 = inlined_call_operand.vmem [shape: f32[2,1,32], index: 11, kind: input, shape index: {}]
  %s12 = inlined_call_operand.vmem [shape: f32[2,1,32], index: 12, kind: input, shape index: {}]
  %s13 = inlined_call_operand.vmem [shape: f32[2,1,32], index: 13, kind: input, shape index: {}]
  %s14 = inlined_call_operand.vmem [shape: bf16[2,32,128], index: 14, kind: input, shape index: {}]
  %s15 = inlined_call_operand.vmem [shape: f32[2,1,128], index: 15, kind: input, shape index: {}]
  %s16 = inlined_call_operand.vmem [shape: bf16[2,128,32], index: 16, kind: input, shape index: {}]
  %s17 = inlined_call_operand.vmem [shape: f32[2,1,32], index: 17, kind: input, shape index: {}]
  %s18 = inlined_call_operand.vmem [shape: f32[1,32], index: 18, kind: input, shape index: {}]
  %s19 = inlined_call_operand.vmem [shape: f32[1,32], index: 19, kind: input, shape index: {}]
  %s20 = inlined_call_operand.vmem [shape: f32[1,32], index: 20, kind: input, shape index: {}]
  %s21 = inlined_call_operand.<no memory space> [shape: f32[1,1], index: 21, kind: input, shape index: {}]
  %s22 = inlined_call_operand.vmem [shape: f32[1,128], index: 22, kind: output, shape index: {}]
  %s23 = sld [smem:[#allocation0]]
  $region98: #{gpt2_reward_forward.1} parent=0
    _
  %s25 = ssub.s32 1, %s23
  %s26 = scalar_select 0, %s25, %s23
  %v27 = vstv %s21
  %28 = vst [vmem:[#allocation2] sm:$0x1] %v27
  // Predicated region
  $region2: #{gpt2_reward_forward.1} parent=0 // pred_check
    _
  $region3: #{gpt2_reward_forward.1} parent=0 // pred_check_branch
    %30 = sbr.rel (0) target = $region5
  $region4: #{gpt2_reward_forward.1} parent=0 // pred_region
    _
  $region5: #{gpt2_reward_forward.1} parent=0 // pred_fallthru
    _
  // Predicated region
  $region6: #{gpt2_reward_forward.1} parent=0 // pred_check
    _
  $region7: #{gpt2_reward_forward.1} parent=0 // pred_check_branch
    %32 = sbr.rel (0) target = $region9
  $region8: #{gpt2_reward_forward.1} parent=0 // pred_region
    _
  $region9: #{gpt2_reward_forward.1} parent=0 // pred_fallthru
    _
  // Predicated region
  $region10: #{gpt2_reward_forward.1} parent=0 // pred_check
    _
  $region11: #{gpt2_reward_forward.1} parent=0 // pred_check_branch
    %34 = sbr.rel (0) target = $region13
  $region12: #{gpt2_reward_forward.1} parent=0 // pred_region
    _
  $region13: #{gpt2_reward_forward.1} parent=0 // pred_fallthru
    _
  // Predicated region
  $region14: #{gpt2_reward_forward.1} parent=0 // pred_check
    _
  $region15: #{gpt2_reward_forward.1} parent=0 // pred_check_branch
    %36 = sbr.rel (0) target = $region17
  $region16: #{gpt2_reward_forward.1} parent=0 // pred_region
    _
  $region17: #{gpt2_reward_forward.1} parent=0 // pred_fallthru
    _
  // Predicated region
  $region18: #{gpt2_reward_forward.1} parent=0 // pred_check
    _
  $region19: #{gpt2_reward_forward.1} parent=0 // pred_check_branch
    %38 = sbr.rel (0) target = $region21
  $region20: #{gpt2_reward_forward.1} parent=0 // pred_region
    _
  $region21: #{gpt2_reward_forward.1} parent=0 // pred_fallthru
    _
  // Predicated region
  $region22: #{gpt2_reward_forward.1} parent=0 // pred_check
    _
  $region23: #{gpt2_reward_forward.1} parent=0 // pred_check_branch
    %40 = sbr.rel (0) target = $region25
  $region24: #{gpt2_reward_forward.1} parent=0 // pred_region
    _
  $region25: #{gpt2_reward_forward.1} parent=0 // pred_fallthru
    _
  // Predicated region
  $region26: #{gpt2_reward_forward.1} parent=0 // pred_check
    _
  $region27: #{gpt2_reward_forward.1} parent=0 // pred_check_branch
    %42 = sbr.rel (0) target = $region29
  $region28: #{gpt2_reward_forward.1} parent=0 // pred_region
    _
  $region29: #{gpt2_reward_forward.1} parent=0 // pred_fallthru
    _
  // Predicated region
  $region30: #{gpt2_reward_forward.1} parent=0 // pred_check
    _
  $region31: #{gpt2_reward_forward.1} parent=0 // pred_check_branch
    %44 = sbr.rel (0) target = $region33
  $region32: #{gpt2_reward_forward.1} parent=0 // pred_region
    _
  $region33: #{gpt2_reward_forward.1} parent=0 // pred_fallthru
    _
  // Predicated region
  $region34: #{gpt2_reward_forward.1} parent=0 // pred_check
    _
  $region35: #{gpt2_reward_forward.1} parent=0 // pred_check_branch
    %46 = sbr.rel (0) target = $region37
  $region36: #{gpt2_reward_forward.1} parent=0 // pred_region
    _
  $region37: #{gpt2_reward_forward.1} parent=0 // pred_fallthru
    _
  // Predicated region
  $region38: #{gpt2_reward_forward.1} parent=0 // pred_check
    _
  $region39: #{gpt2_reward_forward.1} parent=0 // pred_check_branch
    %48 = sbr.rel (0) target = $region41
  $region40: #{gpt2_reward_forward.1} parent=0 // pred_region
    _
  $region41: #{gpt2_reward_forward.1} parent=0 // pred_fallthru
    _
  // Predicated region
  $region42: #{gpt2_reward_forward.1} parent=0 // pred_check
    _
  $region43: #{gpt2_reward_forward.1} parent=0 // pred_check_branch
    %50 = sbr.rel (0) target = $region45
  $region44: #{gpt2_reward_forward.1} parent=0 // pred_region
    _
  $region45: #{gpt2_reward_forward.1} parent=0 // pred_fallthru
    _
  // Predicated region
  $region46: #{gpt2_reward_forward.1} parent=0 // pred_check
    _
  $region47: #{gpt2_reward_forward.1} parent=0 // pred_check_branch
    %52 = sbr.rel (0) target = $region49
  $region48: #{gpt2_reward_forward.1} parent=0 // pred_region
    _
  $region49: #{gpt2_reward_forward.1} parent=0 // pred_fallthru
    _
  // Predicated region
  $region50: #{gpt2_reward_forward.1} parent=0 // pred_check
    _
  $region51: #{gpt2_reward_forward.1} parent=0 // pred_check_branch
    %54 = sbr.rel (0) target = $region53
  $region52: #{gpt2_reward_forward.1} parent=0 // pred_region
    _
  $region53: #{gpt2_reward_forward.1} parent=0 // pred_fallthru
    _
  // Predicated region
  $region54: #{gpt2_reward_forward.1} parent=0 // pred_check
    _
  $region55: #{gpt2_reward_forward.1} parent=0 // pred_check_branch
    %56 = sbr.rel (0) target = $region57
  $region56: #{gpt2_reward_forward.1} parent=0 // pred_region
    _
  $region57: #{gpt2_reward_forward.1} parent=0 // pred_fallthru
    _
  // Predicated region
  $region58: #{gpt2_reward_forward.1} parent=0 // pred_check
    _
  $region59: #{gpt2_reward_forward.1} parent=0 // pred_check_branch
    %58 = sbr.rel (0) target = $region61
  $region60: #{gpt2_reward_forward.1} parent=0 // pred_region
    _
  $region61: #{gpt2_reward_forward.1} parent=0 // pred_fallthru
    _
  // Predicated region
  $region62: #{gpt2_reward_forward.1} parent=0 // pred_check
    _
  $region63: #{gpt2_reward_forward.1} parent=0 // pred_check_branch
    %60 = sbr.rel (0) target = $region65
  $region64: #{gpt2_reward_forward.1} parent=0 // pred_region
    _
  $region65: #{gpt2_reward_forward.1} parent=0 // pred_fallthru
    _
  // Predicated region
  $region66: #{gpt2_reward_forward.1} parent=0 // pred_check
    _
  $region67: #{gpt2_reward_forward.1} parent=0 // pred_check_branch
    %62 = sbr.rel (0) target = $region69
  $region68: #{gpt2_reward_forward.1} parent=0 // pred_region
    _
  $region69: #{gpt2_reward_forward.1} parent=0 // pred_fallthru
    _
  // Predicated region
  $region70: #{gpt2_reward_forward.1} parent=0 // pred_check
    _
  $region71: #{gpt2_reward_forward.1} parent=0 // pred_check_branch
    %64 = sbr.rel (0) target = $region73
  $region72: #{gpt2_reward_forward.1} parent=0 // pred_region
    _
  $region73: #{gpt2_reward_forward.1} parent=0 // pred_fallthru
    _
  // Predicated region
  $region74: #{gpt2_reward_forward.1} parent=0 // pred_check
    _
  $region75: #{gpt2_reward_forward.1} parent=0 // pred_check_branch
    %66 = sbr.rel (0) target = $region77
  $region76: #{gpt2_reward_forward.1} parent=0 // pred_region
    _
  $region77: #{gpt2_reward_forward.1} parent=0 // pred_fallthru
    _
  // Predicated region
  $region78: #{gpt2_reward_forward.1} parent=0 // pred_check
    _
  $region79: #{gpt2_reward_forward.1} parent=0 // pred_check_branch
    %68 = sbr.rel (0) target = $region81
  $region80: #{gpt2_reward_forward.1} parent=0 // pred_region
    _
  $region81: #{gpt2_reward_forward.1} parent=0 // pred_fallthru
    _
  // Predicated region
  $region82: #{gpt2_reward_forward.1} parent=0 // pred_check
    _
  $region83: #{gpt2_reward_forward.1} parent=0 // pred_check_branch
    %70 = sbr.rel (0) target = $region85
  $region84: #{gpt2_reward_forward.1} parent=0 // pred_region
    _
  $region85: #{gpt2_reward_forward.1} parent=0 // pred_fallthru
    _
  // Predicated region
  $region86: #{gpt2_reward_forward.1} parent=0 // pred_check
    _
  $region87: #{gpt2_reward_forward.1} parent=0 // pred_check_branch
    %72 = sbr.rel (0) target = $region89
  $region88: #{gpt2_reward_forward.1} parent=0 // pred_region
    _
  $region89: #{gpt2_reward_forward.1} parent=0 // pred_fallthru
    _
  %v74 = vld [vmem:[%s0] sm:$0xff]
  %v75 = vld [vmem:[%s0 + $0x8] sm:$0xff]
  %v76 = vlaneseq
  %v77 = vshrl.u32 %v76, 7
  %v78 = vlaneseq
  %v79 = vand.u32 %v78, 127
  %vm80 = vcmp.le.s32.totalorder %v79, %v77
  %v81 = vld [vmem:[%s1] sm:$0x1]
  %v82 = vld [vmem:[%s1 + $0x1] sm:$0x1]
  %vm83 = vcmp.gt.f32.partialorder %v81, 0.5
  %vm84 = vcmp.gt.f32.partialorder %v82, 0.5
  %v85 = vsel %vm80, 1, 0
  %vm86 = vcmp.eq.s32.totalorder %v85, 1
  %v87 = vsel %vm83, 1, 0
  %v88 = vsel %vm84, 1, 0
  %v89 = vlaneseq
  %v90 = vshrl.u32 %v89, 7
  %v91 = vsub.s32 0, %v90
  %v92 = vrot.slane %v87, %v91
  %v93 = vlaneseq
  %v94 = vshrl.u32 %v93, 7
  %v95 = vsub.s32 0, %v94
  %v96 = vrot.slane %v88, %v95
  %vm97 = vcmp.eq.s32.totalorder %v92, 1
  %vm98 = vcmp.eq.s32.totalorder %v96, 1
  %vm99 = vmand %vm86, %vm97
  %vm100 = vmand %vm86, %vm98
  %v101 = vsel %vm99, 0.0, -1e+09
  %v102 = vsel %vm100, 0.0, -1e+09
  %v103 = vld [vmem:[%s2] sm:$0x1]
  %v104 = vld [vmem:[%s3] sm:$0x1]
  %vm105 = vcmask 261120
  %v106 = vsel %vm105, %v74, 0.0
  %107 = vadd.xlane.f32.xlu0 %v106
  %v108 = vpop.xlane.xlu0 %107
  %v109 = vsel %vm105, %v75, 0.0
  %110 = vadd.xlane.f32.xlu0 %v109
  %v111 = vpop.xlane.xlu0 %110
  %v112 = vrcp.pop 32.0
  %v113 = vmul.f32 %v108, %v112
  %v114 = vmul.f32 %v111, %v112
  %v115 = vsub.f32 %v74, %v113
  %v116 = vsub.f32 %v75, %v114
  %v117 = vmul.f32 %v115, %v115
  %v118 = vmul.f32 %v116, %v116
  %v119 = vsel %vm105, %v117, 0.0
  %120 = vadd.xlane.f32.xlu0 %v119
  %v121 = vpop.xlane.xlu0 %120
  %v122 = vsel %vm105, %v118, 0.0
  %123 = vadd.xlane.f32.xlu0 %v122
  %v124 = vpop.xlane.xlu0 %123
  %v125 = vmul.f32 %v121, %v112
  %v126 = vmul.f32 %v124, %v112
  %v127 = vadd.f32 %v125, 1e-05
  %v128 = vadd.f32 %v126, 1e-05
  %v129 = vrsqrt.pop %v127
  %v130 = vrsqrt.pop %v128
  %v131 = vmul.f32 %v115, %v129
  %v132 = vmul.f32 %v116, %v130
  %v134 = vlaneseq
  %v135 = vshrl.u32 %v134, 7
  %v136 = vsub.s32 0, %v135
  %v137 = vrot.slane %v103, %v136
  %v139 = vmul.f32 %v131, %v137
  %v140 = vmul.f32 %v132, %v137
  %v142 = vlaneseq
  %v143 = vshrl.u32 %v142, 7
  %v144 = vsub.s32 0, %v143
  %v145 = vrot.slane %v104, %v144
  %v147 = vadd.f32 %v139, %v145
  %v148 = vadd.f32 %v140, %v145
  %v149 = vpack.c.bf16 %v148, %v147
  %v150 = vld [vmem:[%s4] sm:$0xf]
  %v151 = vld [vmem:[%s4 + $0x4] sm:$0xf]
  %v152 = vld [vmem:[%s4 + $0x8] sm:$0xf]
  %v153 = vld [vmem:[%s4 + $0xc] sm:$0xf]
  %v154 = vld [vmem:[%s5] sm:$0x1]
  %v156 = vlaneseq
  %v157 = vshrl.u32 %v156, 7
  %v158 = vsub.s32 0, %v157
  %v159 = vrot.slane %v154, %v158
  %v165 = vunpack.c.l.b16 %v150
  %v166 = vunpack.c.l.b16 %v151
  %v167 = vunpack.c.l.b16 %v152
  %v168 = vunpack.c.l.b16 %v153
  %v169 = vpack.c.b16 %v166, %v165
  %v170 = vpack.c.b16 %v168, %v167
  %v174 = vsel %vm105, %v149, 0
  %176 = vmatprep.subr.bf16.mxu0 0
  %177 = vmatpush1.bf16.msra.mxu0 %v169
  %178 = vmatprep.subr.bf16.mxu0 0
  %179 = vmatpush1.bf16.msra.mxu0 %v170
  %180 = vmatprep.subr.bf16.mxu0 0
  %181 = vmatpush1.bf16.msra.mxu0 0
  %182 = vmatprep.subr.bf16.mxu0 0
  %183 = vmatpush1.bf16.msra.mxu0 0
  %184 = vmatprep.subr.bf16.mxu0 0
  %185 = vmatpush1.bf16.msra.mxu0 0
  %186 = vmatprep.subr.bf16.mxu0 0
  %187 = vmatpush1.bf16.msra.mxu0 0
  %188 = vmatprep.subr.bf16.mxu0 0
  %189 = vmatpush1.bf16.msra.mxu0 0
  %190 = vmatprep.subr.bf16.mxu0 0
  %191 = vmatpush1.bf16.msra.mxu0 0
  %192 = vmatprep.subr.bf16.mxu0 0
  %193 = vmatpush1.bf16.msra.mxu0 0
  %194 = vmatprep.subr.bf16.mxu0 0
  %195 = vmatpush1.bf16.msra.mxu0 0
  %196 = vmatprep.subr.bf16.mxu0 0
  %197 = vmatpush1.bf16.msra.mxu0 0
  %198 = vmatprep.subr.bf16.mxu0 0
  %199 = vmatpush1.bf16.msra.mxu0 0
  %200 = vmatprep.subr.bf16.mxu0 0
  %201 = vmatpush1.bf16.msra.mxu0 0
  %202 = vmatprep.subr.bf16.mxu0 0
  %203 = vmatpush1.bf16.msra.mxu0 0
  %204 = vmatprep.subr.bf16.mxu0 0
  %205 = vmatpush1.bf16.msra.mxu0 0
  %206 = vmatprep.subr.bf16.mxu0 0
  %207 = vmatpush1.bf16.msra.mxu0 0
  %208 = vmatprep.mubr.bf16.mxu0 0
  %209 = vmatmul.mubr.bf16.gmra.mrb[0].mxu0 %v174
  %v210 = vpop.f32.mrb[0].mxu0
  %v211 = vadd.f32 %v159, %v210
  %v212 = vpop.f32.mrb[0].mxu0
  %v213 = vpop.f32.mrb[0].mxu0
  %v214 = vadd.f32 %v159, %v213
  %v215 = vpop.f32.mrb[0].mxu0
  %216 = vdwg.mxu0
  %v217 = vld [vmem:[%s6] sm:$0xf]
  %v218 = vld [vmem:[%s6 + $0x4] sm:$0xf]
  %v219 = vld [vmem:[%s6 + $0x8] sm:$0xf]
  %v220 = vld [vmem:[%s6 + $0xc] sm:$0xf]
  %v221 = vld [vmem:[%s7] sm:$0x1]
  %v223 = vlaneseq
  %v224 = vshrl.u32 %v223, 7
  %v225 = vsub.s32 0, %v224
  %v226 = vrot.slane %v221, %v225
  %v232 = vunpack.c.l.b16 %v217
  %v233 = vunpack.c.l.b16 %v218
  %v234 = vunpack.c.l.b16 %v219
  %v235 = vunpack.c.l.b16 %v220
  %v236 = vpack.c.b16 %v233, %v232
  %v237 = vpack.c.b16 %v235, %v234
  %240 = vmatprep.subr.bf16.mxu0 0
  %241 = vmatpush1.bf16.msra.mxu0 %v236
  %242 = vmatprep.subr.bf16.mxu0 0
  %243 = vmatpush1.bf16.msra.mxu0 %v237
  %244 = vmatprep.subr.bf16.mxu0 0
  %245 = vmatpush1.bf16.msra.mxu0 0
  %246 = vmatprep.subr.bf16.mxu0 0
  %247 = vmatpush1.bf16.msra.mxu0 0
  %248 = vmatprep.subr.bf16.mxu0 0
  %249 = vmatpush1.bf16.msra.mxu0 0
  %250 = vmatprep.subr.bf16.mxu0 0
  %251 = vmatpush1.bf16.msra.mxu0 0
  %252 = vmatprep.subr.bf16.mxu0 0
  %253 = vmatpush1.bf16.msra.mxu0 0
  %254 = vmatprep.subr.bf16.mxu0 0
  %255 = vmatpush1.bf16.msra.mxu0 0
  %256 = vmatprep.subr.bf16.mxu0 0
  %257 = vmatpush1.bf16.msra.mxu0 0
  %258 = vmatprep.subr.bf16.mxu0 0
  %259 = vmatpush1.bf16.msra.mxu0 0
  %260 = vmatprep.subr.bf16.mxu0 0
  %261 = vmatpush1.bf16.msra.mxu0 0
  %262 = vmatprep.subr.bf16.mxu0 0
  %263 = vmatpush1.bf16.msra.mxu0 0
  %264 = vmatprep.subr.bf16.mxu0 0
  %265 = vmatpush1.bf16.msra.mxu0 0
  %266 = vmatprep.subr.bf16.mxu0 0
  %267 = vmatpush1.bf16.msra.mxu0 0
  %268 = vmatprep.subr.bf16.mxu0 0
  %269 = vmatpush1.bf16.msra.mxu0 0
  %270 = vmatprep.subr.bf16.mxu0 0
  %271 = vmatpush1.bf16.msra.mxu0 0
  %272 = vmatprep.mubr.bf16.mxu0 0
  %273 = vmatmul.mubr.bf16.gmra.mrb[0].mxu0 %v174
  %v274 = vpop.f32.mrb[0].mxu0
  %v275 = vadd.f32 %v226, %v274
  %v276 = vpop.f32.mrb[0].mxu0
  %v277 = vpop.f32.mrb[0].mxu0
  %v278 = vadd.f32 %v226, %v277
  %v279 = vpop.f32.mrb[0].mxu0
  %280 = vdwg.mxu0
  %v281 = vld [vmem:[%s8] sm:$0xf]
  %v282 = vld [vmem:[%s8 + $0x4] sm:$0xf]
  %v283 = vld [vmem:[%s8 + $0x8] sm:$0xf]
  %v284 = vld [vmem:[%s8 + $0xc] sm:$0xf]
  %v285 = vld [vmem:[%s9] sm:$0x1]
  %v287 = vlaneseq
  %v288 = vshrl.u32 %v287, 7
  %v289 = vsub.s32 0, %v288
  %v290 = vrot.slane %v285, %v289
  %v296 = vunpack.c.l.b16 %v281
  %v297 = vunpack.c.l.b16 %v282
  %v298 = vunpack.c.l.b16 %v283
  %v299 = vunpack.c.l.b16 %v284
  %v300 = vpack.c.b16 %v297, %v296
  %v301 = vpack.c.b16 %v299, %v298
  %304 = vmatprep.subr.bf16.mxu0 0
  %305 = vmatpush1.bf16.msra.mxu0 %v300
  %306 = vmatprep.subr.bf16.mxu0 0
  %307 = vmatpush1.bf16.msra.mxu0 %v301
  %308 = vmatprep.subr.bf16.mxu0 0
  %309 = vmatpush1.bf16.msra.mxu0 0
  %310 = vmatprep.subr.bf16.mxu0 0
  %311 = vmatpush1.bf16.msra.mxu0 0
  %312 = vmatprep.subr.bf16.mxu0 0
  %313 = vmatpush1.bf16.msra.mxu0 0
  %314 = vmatprep.subr.bf16.mxu0 0
  %315 = vmatpush1.bf16.msra.mxu0 0
  %316 = vmatprep.subr.bf16.mxu0 0
  %317 = vmatpush1.bf16.msra.mxu0 0
  %318 = vmatprep.subr.bf16.mxu0 0
  %319 = vmatpush1.bf16.msra.mxu0 0
  %320 = vmatprep.subr.bf16.mxu0 0
  %321 = vmatpush1.bf16.msra.mxu0 0
  %322 = vmatprep.subr.bf16.mxu0 0
  %323 = vmatpush1.bf16.msra.mxu0 0
  %324 = vmatprep.subr.bf16.mxu0 0
  %325 = vmatpush1.bf16.msra.mxu0 0
  %326 = vmatprep.subr.bf16.mxu0 0
  %327 = vmatpush1.bf16.msra.mxu0 0
  %328 = vmatprep.subr.bf16.mxu0 0
  %329 = vmatpush1.bf16.msra.mxu0 0
  %330 = vmatprep.subr.bf16.mxu0 0
  %331 = vmatpush1.bf16.msra.mxu0 0
  %332 = vmatprep.subr.bf16.mxu0 0
  %333 = vmatpush1.bf16.msra.mxu0 0
  %334 = vmatprep.subr.bf16.mxu0 0
  %335 = vmatpush1.bf16.msra.mxu0 0
  %336 = vmatprep.mubr.bf16.mxu0 0
  %337 = vmatmul.mubr.bf16.gmra.mrb[0].mxu0 %v174
  %v338 = vpop.f32.mrb[0].mxu0
  %v339 = vadd.f32 %v290, %v338
  %v340 = vpop.f32.mrb[0].mxu0
  %v341 = vpop.f32.mrb[0].mxu0
  %v342 = vadd.f32 %v290, %v341
  %v343 = vpop.f32.mrb[0].mxu0
  %344 = vdwg.mxu0
  %v345 = vpack.c.bf16 %v211, %v211
  %v346 = vpack.c.bf16 %v214, %v214
  %v347 = vpack.c.bf16 %v275, %v275
  %v348 = vpack.c.bf16 %v278, %v278
  %vm349 = vcmask 64512
  %v351 = vsel %vm349, %v345, 0
  %v354 = vsel %vm349, %v347, 0
  %356 = vmatprep.subr.bf16.mxu0 0
  %357 = vmatpush1.bf16.xpose.msra.mxu0 %v354
  %358 = vmatprep.subr.bf16.mxu0 0
  %359 = vmatpush1.bf16.xpose.msra.mxu0 0
  %360 = vmatprep.subr.bf16.mxu0 0
  %361 = vmatpush1.bf16.xpose.msra.mxu0 0
  %362 = vmatprep.subr.bf16.mxu0 0
  %363 = vmatpush1.bf16.xpose.msra.mxu0 0
  %364 = vmatprep.subr.bf16.mxu0 0
  %365 = vmatpush1.bf16.xpose.msra.mxu0 0
  %366 = vmatprep.subr.bf16.mxu0 0
  %367 = vmatpush1.bf16.xpose.msra.mxu0 0
  %368 = vmatprep.subr.bf16.mxu0 0
  %369 = vmatpush1.bf16.xpose.msra.mxu0 0
  %370 = vmatprep.subr.bf16.mxu0 0
  %371 = vmatpush1.bf16.xpose.msra.mxu0 0
  %372 = vmatprep.subr.bf16.mxu0 0
  %373 = vmatpush1.bf16.xpose.msra.mxu0 0
  %374 = vmatprep.subr.bf16.mxu0 0
  %375 = vmatpush1.bf16.xpose.msra.mxu0 0
  %376 = vmatprep.subr.bf16.mxu0 0
  %377 = vmatpush1.bf16.xpose.msra.mxu0 0
  %378 = vmatprep.subr.bf16.mxu0 0
  %379 = vmatpush1.bf16.xpose.msra.mxu0 0
  %380 = vmatprep.subr.bf16.mxu0 0
  %381 = vmatpush1.bf16.xpose.msra.mxu0 0
  %382 = vmatprep.subr.bf16.mxu0 0
  %383 = vmatpush1.bf16.xpose.msra.mxu0 0
  %384 = vmatprep.subr.bf16.mxu0 0
  %385 = vmatpush1.bf16.xpose.msra.mxu0 0
  %386 = vmatprep.subr.bf16.mxu0 0
  %387 = vmatpush1.bf16.xpose.msra.mxu0 0
  %388 = vmatprep.mubr.bf16.mxu0 0
  %389 = vmatmul.mubr.bf16.gmra.mrb[0].mxu0 %v351
  %v390 = vpop.f32.mrb[0].mxu0
  %v391 = vadd.f32 %v101, %v390
  %v392 = vpop.f32.mrb[0].mxu0
  %v393 = vpop.f32.mrb[0].mxu0
  %v394 = vpop.f32.mrb[0].mxu0
  %395 = vdwg.mxu0
  %v397 = vsel %vm349, %v346, 0
  %v400 = vsel %vm349, %v348, 0
  %402 = vmatprep.subr.bf16.mxu0 0
  %403 = vmatpush1.bf16.xpose.msra.mxu0 %v400
  %404 = vmatprep.subr.bf16.mxu0 0
  %405 = vmatpush1.bf16.xpose.msra.mxu0 0
  %406 = vmatprep.subr.bf16.mxu0 0
  %407 = vmatpush1.bf16.xpose.msra.mxu0 0
  %408 = vmatprep.subr.bf16.mxu0 0
  %409 = vmatpush1.bf16.xpose.msra.mxu0 0
  %410 = vmatprep.subr.bf16.mxu0 0
  %411 = vmatpush1.bf16.xpose.msra.mxu0 0
  %412 = vmatprep.subr.bf16.mxu0 0
  %413 = vmatpush1.bf16.xpose.msra.mxu0 0
  %414 = vmatprep.subr.bf16.mxu0 0
  %415 = vmatpush1.bf16.xpose.msra.mxu0 0
  %416 = vmatprep.subr.bf16.mxu0 0
  %417 = vmatpush1.bf16.xpose.msra.mxu0 0
  %418 = vmatprep.subr.bf16.mxu0 0
  %419 = vmatpush1.bf16.xpose.msra.mxu0 0
  %420 = vmatprep.subr.bf16.mxu0 0
  %421 = vmatpush1.bf16.xpose.msra.mxu0 0
  %422 = vmatprep.subr.bf16.mxu0 0
  %423 = vmatpush1.bf16.xpose.msra.mxu0 0
  %424 = vmatprep.subr.bf16.mxu0 0
  %425 = vmatpush1.bf16.xpose.msra.mxu0 0
  %426 = vmatprep.subr.bf16.mxu0 0
  %427 = vmatpush1.bf16.xpose.msra.mxu0 0
  %428 = vmatprep.subr.bf16.mxu0 0
  %429 = vmatpush1.bf16.xpose.msra.mxu0 0
  %430 = vmatprep.subr.bf16.mxu0 0
  %431 = vmatpush1.bf16.xpose.msra.mxu0 0
  %432 = vmatprep.subr.bf16.mxu0 0
  %433 = vmatpush1.bf16.xpose.msra.mxu0 0
  %434 = vmatprep.mubr.bf16.mxu0 0
  %435 = vmatmul.mubr.bf16.gmra.mrb[0].mxu0 %v397
  %v436 = vpop.f32.mrb[0].mxu0
  %v437 = vadd.f32 %v102, %v436
  %v438 = vpop.f32.mrb[0].mxu0
  %v439 = vpop.f32.mrb[0].mxu0
  %v440 = vpop.f32.mrb[0].mxu0
  %441 = vdwg.mxu0
  %v442 = vsel %vm349, %v391, -inf
  %443 = vmax.xlane.f32.xlu0 %v442
  %v444 = vpop.xlane.xlu0 %443
  %v445 = vsel %vm349, %v437, -inf
  %446 = vmax.xlane.f32.xlu0 %v445
  %v447 = vpop.xlane.xlu0 %446
  %v448 = vsub.f32 %v391, %v444
  %v449 = vsub.f32 %v437, %v447
  %v450 = vmul.f32 %v448, 1.442695
  %v451 = vpow.pop %v450
  %v452 = vmul.f32 %v449, 1.442695
  %v453 = vpow.pop %v452
  %v454 = vsel %vm349, %v451, 0.0
  %455 = vadd.xlane.f32.xlu0 %v454
  %v456 = vpop.xlane.xlu0 %455
  %v457 = vsel %vm349, %v453, 0.0
  %458 = vadd.xlane.f32.xlu0 %v457
  %v459 = vpop.xlane.xlu0 %458
  %v460 = vrcp.pop %v456
  %v461 = vrcp.pop %v459
  %v462 = vmul.f32 %v451, %v460
  %v463 = vmul.f32 %v453, %v461
  %v464 = vpack.c.bf16 %v462, %v462
  %v465 = vpack.c.bf16 %v463, %v463
  %v466 = vpack.c.bf16 %v339, %v339
  %v467 = vpack.c.bf16 %v342, %v342
  %v469 = vsel %vm349, %v464, 0
  %vm471 = vcmask 1043456
  %v473 = vsel %vm471, %v466, 0
  %475 = vmatprep.subr.bf16.mxu0 0
  %476 = vmatpush1.bf16.msra.mxu0 %v473
  %477 = vmatprep.subr.bf16.mxu0 0
  %478 = vmatpush1.bf16.msra.mxu0 0
  %479 = vmatprep.subr.bf16.mxu0 0
  %480 = vmatpush1.bf16.msra.mxu0 0
  %481 = vmatprep.subr.bf16.mxu0 0
  %482 = vmatpush1.bf16.msra.mxu0 0
  %483 = vmatprep.subr.bf16.mxu0 0
  %484 = vmatpush1.bf16.msra.mxu0 0
  %485 = vmatprep.subr.bf16.mxu0 0
  %486 = vmatpush1.bf16.msra.mxu0 0
  %487 = vmatprep.subr.bf16.mxu0 0
  %488 = vmatpush1.bf16.msra.mxu0 0
  %489 = vmatprep.subr.bf16.mxu0 0
  %490 = vmatpush1.bf16.msra.mxu0 0
  %491 = vmatprep.subr.bf16.mxu0 0
  %492 = vmatpush1.bf16.msra.mxu0 0
  %493 = vmatprep.subr.bf16.mxu0 0
  %494 = vmatpush1.bf16.msra.mxu0 0
  %495 = vmatprep.subr.bf16.mxu0 0
  %496 = vmatpush1.bf16.msra.mxu0 0
  %497 = vmatprep.subr.bf16.mxu0 0
  %498 = vmatpush1.bf16.msra.mxu0 0
  %499 = vmatprep.subr.bf16.mxu0 0
  %500 = vmatpush1.bf16.msra.mxu0 0
  %501 = vmatprep.subr.bf16.mxu0 0
  %502 = vmatpush1.bf16.msra.mxu0 0
  %503 = vmatprep.subr.bf16.mxu0 0
  %504 = vmatpush1.bf16.msra.mxu0 0
  %505 = vmatprep.subr.bf16.mxu0 0
  %506 = vmatpush1.bf16.msra.mxu0 0
  %507 = vmatprep.mubr.bf16.mxu0 0
  %508 = vmatmul.mubr.bf16.gmra.mrb[0].mxu0 %v469
  %v509 = vpop.f32.mrb[0].mxu0
  %v510 = vadd.f32 0.0, %v509
  %v511 = vpop.f32.mrb[0].mxu0
  %v512 = vpop.f32.mrb[0].mxu0
  %v513 = vpop.f32.mrb[0].mxu0
  %514 = vdwg.mxu0
  %v516 = vsel %vm349, %v465, 0
  %v519 = vsel %vm471, %v467, 0
  %521 = vmatprep.subr.bf16.mxu0 0
  %522 = vmatpush1.bf16.msra.mxu0 %v519
  %523 = vmatprep.subr.bf16.mxu0 0
  %524 = vmatpush1.bf16.msra.mxu0 0
  %525 = vmatprep.subr.bf16.mxu0 0
  %526 = vmatpush1.bf16.msra.mxu0 0
  %527 = vmatprep.subr.bf16.mxu0 0
  %528 = vmatpush1.bf16.msra.mxu0 0
  %529 = vmatprep.subr.bf16.mxu0 0
  %530 = vmatpush1.bf16.msra.mxu0 0
  %531 = vmatprep.subr.bf16.mxu0 0
  %532 = vmatpush1.bf16.msra.mxu0 0
  %533 = vmatprep.subr.bf16.mxu0 0
  %534 = vmatpush1.bf16.msra.mxu0 0
  %535 = vmatprep.subr.bf16.mxu0 0
  %536 = vmatpush1.bf16.msra.mxu0 0
  %537 = vmatprep.subr.bf16.mxu0 0
  %538 = vmatpush1.bf16.msra.mxu0 0
  %539 = vmatprep.subr.bf16.mxu0 0
  %540 = vmatpush1.bf16.msra.mxu0 0
  %541 = vmatprep.subr.bf16.mxu0 0
  %542 = vmatpush1.bf16.msra.mxu0 0
  %543 = vmatprep.subr.bf16.mxu0 0
  %544 = vmatpush1.bf16.msra.mxu0 0
  %545 = vmatprep.subr.bf16.mxu0 0
  %546 = vmatpush1.bf16.msra.mxu0 0
  %547 = vmatprep.subr.bf16.mxu0 0
  %548 = vmatpush1.bf16.msra.mxu0 0
  %549 = vmatprep.subr.bf16.mxu0 0
  %550 = vmatpush1.bf16.msra.mxu0 0
  %551 = vmatprep.subr.bf16.mxu0 0
  %552 = vmatpush1.bf16.msra.mxu0 0
  %553 = vmatprep.mubr.bf16.mxu0 0
  %554 = vmatmul.mubr.bf16.gmra.mrb[0].mxu0 %v516
  %v555 = vpop.f32.mrb[0].mxu0
  %v556 = vadd.f32 0.0, %v555
  %v557 = vpop.f32.mrb[0].mxu0
  %v558 = vpop.f32.mrb[0].mxu0
  %v559 = vpop.f32.mrb[0].mxu0
  %560 = vdwg.mxu0
  %v561 = vpack.c.bf16 %v556, %v510
  %v562 = vld [vmem:[%s10] sm:$0xf]
  %s563 = scalar_lea.vmem %s4, 16
  %v564 = vld [vmem:[%s563] sm:$0xf]
  %v565 = vld [vmem:[%s563 + $0x4] sm:$0xf]
  %v566 = vld [vmem:[%s563 + $0x8] sm:$0xf]
  %v567 = vld [vmem:[%s563 + $0xc] sm:$0xf]
  %s568 = scalar_lea.vmem %s5, 1
  %v569 = vld [vmem:[%s568] sm:$0x1]
  %v571 = vlaneseq
  %v572 = vshrl.u32 %v571, 7
  %v573 = vsub.s32 0, %v572
  %v574 = vrot.slane %v569, %v573
  %v580 = vunpack.c.l.b16 %v564
  %v581 = vunpack.c.l.b16 %v565
  %v582 = vunpack.c.l.b16 %v566
  %v583 = vunpack.c.l.b16 %v567
  %v584 = vpack.c.b16 %v581, %v580
  %v585 = vpack.c.b16 %v583, %v582
  %588 = vmatprep.subr.bf16.mxu0 0
  %589 = vmatpush1.bf16.msra.mxu0 %v584
  %590 = vmatprep.subr.bf16.mxu0 0
  %591 = vmatpush1.bf16.msra.mxu0 %v585
  %592 = vmatprep.subr.bf16.mxu0 0
  %593 = vmatpush1.bf16.msra.mxu0 0
  %594 = vmatprep.subr.bf16.mxu0 0
  %595 = vmatpush1.bf16.msra.mxu0 0
  %596 = vmatprep.subr.bf16.mxu0 0
  %597 = vmatpush1.bf16.msra.mxu0 0
  %598 = vmatprep.subr.bf16.mxu0 0
  %599 = vmatpush1.bf16.msra.mxu0 0
  %600 = vmatprep.subr.bf16.mxu0 0
  %601 = vmatpush1.bf16.msra.mxu0 0
  %602 = vmatprep.subr.bf16.mxu0 0
  %603 = vmatpush1.bf16.msra.mxu0 0
  %604 = vmatprep.subr.bf16.mxu0 0
  %605 = vmatpush1.bf16.msra.mxu0 0
  %606 = vmatprep.subr.bf16.mxu0 0
  %607 = vmatpush1.bf16.msra.mxu0 0
  %608 = vmatprep.subr.bf16.mxu0 0
  %609 = vmatpush1.bf16.msra.mxu0 0
  %610 = vmatprep.subr.bf16.mxu0 0
  %611 = vmatpush1.bf16.msra.mxu0 0
  %612 = vmatprep.subr.bf16.mxu0 0
  %613 = vmatpush1.bf16.msra.mxu0 0
  %614 = vmatprep.subr.bf16.mxu0 0
  %615 = vmatpush1.bf16.msra.mxu0 0
  %616 = vmatprep.subr.bf16.mxu0 0
  %617 = vmatpush1.bf16.msra.mxu0 0
  %618 = vmatprep.subr.bf16.mxu0 0
  %619 = vmatpush1.bf16.msra.mxu0 0
  %620 = vmatprep.mubr.bf16.mxu0 0
  %621 = vmatmul.mubr.bf16.gmra.mrb[0].mxu0 %v174
  %v622 = vpop.f32.mrb[0].mxu0
  %v623 = vadd.f32 %v574, %v622
  %v624 = vpop.f32.mrb[0].mxu0
  %v625 = vpop.f32.mrb[0].mxu0
  %v626 = vadd.f32 %v574, %v625
  %v627 = vpop.f32.mrb[0].mxu0
  %628 = vdwg.mxu0
  %s629 = scalar_lea.vmem %s6, 16
  %v630 = vld [vmem:[%s629] sm:$0xf]
  %v631 = vld [vmem:[%s629 + $0x4] sm:$0xf]
  %v632 = vld [vmem:[%s629 + $0x8] sm:$0xf]
  %v633 = vld [vmem:[%s629 + $0xc] sm:$0xf]
  %s634 = scalar_lea.vmem %s7, 1
  %v635 = vld [vmem:[%s634] sm:$0x1]
  %v637 = vlaneseq
  %v638 = vshrl.u32 %v637, 7
  %v639 = vsub.s32 0, %v638
  %v640 = vrot.slane %v635, %v639
  %v646 = vunpack.c.l.b16 %v630
  %v647 = vunpack.c.l.b16 %v631
  %v648 = vunpack.c.l.b16 %v632
  %v649 = vunpack.c.l.b16 %v633
  %v650 = vpack.c.b16 %v647, %v646
  %v651 = vpack.c.b16 %v649, %v648
  %654 = vmatprep.subr.bf16.mxu0 0
  %655 = vmatpush1.bf16.msra.mxu0 %v650
  %656 = vmatprep.subr.bf16.mxu0 0
  %657 = vmatpush1.bf16.msra.mxu0 %v651
  %658 = vmatprep.subr.bf16.mxu0 0
  %659 = vmatpush1.bf16.msra.mxu0 0
  %660 = vmatprep.subr.bf16.mxu0 0
  %661 = vmatpush1.bf16.msra.mxu0 0
  %662 = vmatprep.subr.bf16.mxu0 0
  %663 = vmatpush1.bf16.msra.mxu0 0
  %664 = vmatprep.subr.bf16.mxu0 0
  %665 = vmatpush1.bf16.msra.mxu0 0
  %666 = vmatprep.subr.bf16.mxu0 0
  %667 = vmatpush1.bf16.msra.mxu0 0
  %668 = vmatprep.subr.bf16.mxu0 0
  %669 = vmatpush1.bf16.msra.mxu0 0
  %670 = vmatprep.subr.bf16.mxu0 0
  %671 = vmatpush1.bf16.msra.mxu0 0
  %672 = vmatprep.subr.bf16.mxu0 0
  %673 = vmatpush1.bf16.msra.mxu0 0
  %674 = vmatprep.subr.bf16.mxu0 0
  %675 = vmatpush1.bf16.msra.mxu0 0
  %676 = vmatprep.subr.bf16.mxu0 0
  %677 = vmatpush1.bf16.msra.mxu0 0
  %678 = vmatprep.subr.bf16.mxu0 0
  %679 = vmatpush1.bf16.msra.mxu0 0
  %680 = vmatprep.subr.bf16.mxu0 0
  %681 = vmatpush1.bf16.msra.mxu0 0
  %682 = vmatprep.subr.bf16.mxu0 0
  %683 = vmatpush1.bf16.msra.mxu0 0
  %684 = vmatprep.subr.bf16.mxu0 0
  %685 = vmatpush1.bf16.msra.mxu0 0
  %686 = vmatprep.mubr.bf16.mxu0 0
  %687 = vmatmul.mubr.bf16.gmra.mrb[0].mxu0 %v174
  %v688 = vpop.f32.mrb[0].mxu0
  %v689 = vadd.f32 %v640, %v688
  %v690 = vpop.f32.mrb[0].mxu0
  %v691 = vpop.f32.mrb[0].mxu0
  %v692 = vadd.f32 %v640, %v691
  %v693 = vpop.f32.mrb[0].mxu0
  %694 = vdwg.mxu0
  %s695 = scalar_lea.vmem %s8, 16
  %v696 = vld [vmem:[%s695] sm:$0xf]
  %v697 = vld [vmem:[%s695 + $0x4] sm:$0xf]
  %v698 = vld [vmem:[%s695 + $0x8] sm:$0xf]
  %v699 = vld [vmem:[%s695 + $0xc] sm:$0xf]
  %s700 = scalar_lea.vmem %s9, 1
  %v701 = vld [vmem:[%s700] sm:$0x1]
  %v703 = vlaneseq
  %v704 = vshrl.u32 %v703, 7
  %v705 = vsub.s32 0, %v704
  %v706 = vrot.slane %v701, %v705
  %v712 = vunpack.c.l.b16 %v696
  %v713 = vunpack.c.l.b16 %v697
  %v714 = vunpack.c.l.b16 %v698
  %v715 = vunpack.c.l.b16 %v699
  %v716 = vpack.c.b16 %v713, %v712
  %v717 = vpack.c.b16 %v715, %v714
  %720 = vmatprep.subr.bf16.mxu0 0
  %721 = vmatpush1.bf16.msra.mxu0 %v716
  %722 = vmatprep.subr.bf16.mxu0 0
  %723 = vmatpush1.bf16.msra.mxu0 %v717
  %724 = vmatprep.subr.bf16.mxu0 0
  %725 = vmatpush1.bf16.msra.mxu0 0
  %726 = vmatprep.subr.bf16.mxu0 0
  %727 = vmatpush1.bf16.msra.mxu0 0
  %728 = vmatprep.subr.bf16.mxu0 0
  %729 = vmatpush1.bf16.msra.mxu0 0
  %730 = vmatprep.subr.bf16.mxu0 0
  %731 = vmatpush1.bf16.msra.mxu0 0
  %732 = vmatprep.subr.bf16.mxu0 0
  %733 = vmatpush1.bf16.msra.mxu0 0
  %734 = vmatprep.subr.bf16.mxu0 0
  %735 = vmatpush1.bf16.msra.mxu0 0
  %736 = vmatprep.subr.bf16.mxu0 0
  %737 = vmatpush1.bf16.msra.mxu0 0
  %738 = vmatprep.subr.bf16.mxu0 0
  %739 = vmatpush1.bf16.msra.mxu0 0
  %740 = vmatprep.subr.bf16.mxu0 0
  %741 = vmatpush1.bf16.msra.mxu0 0
  %742 = vmatprep.subr.bf16.mxu0 0
  %743 = vmatpush1.bf16.msra.mxu0 0
  %744 = vmatprep.subr.bf16.mxu0 0
  %745 = vmatpush1.bf16.msra.mxu0 0
  %746 = vmatprep.subr.bf16.mxu0 0
  %747 = vmatpush1.bf16.msra.mxu0 0
  %748 = vmatprep.subr.bf16.mxu0 0
  %749 = vmatpush1.bf16.msra.mxu0 0
  %750 = vmatprep.subr.bf16.mxu0 0
  %751 = vmatpush1.bf16.msra.mxu0 0
  %752 = vmatprep.mubr.bf16.mxu0 0
  %753 = vmatmul.mubr.bf16.gmra.mrb[0].mxu0 %v174
  %v754 = vpop.f32.mrb[0].mxu0
  %v755 = vadd.f32 %v706, %v754
  %v756 = vpop.f32.mrb[0].mxu0
  %v757 = vpop.f32.mrb[0].mxu0
  %v758 = vadd.f32 %v706, %v757
  %v759 = vpop.f32.mrb[0].mxu0
  %760 = vdwg.mxu0
  %v761 = vpack.c.bf16 %v623, %v623
  %v762 = vpack.c.bf16 %v626, %v626
  %v763 = vpack.c.bf16 %v689, %v689
  %v764 = vpack.c.bf16 %v692, %v692
  %v766 = vsel %vm349, %v761, 0
  %v769 = vsel %vm349, %v763, 0
  %771 = vmatprep.subr.bf16.mxu0 0
  %772 = vmatpush1.bf16.xpose.msra.mxu0 %v769
  %773 = vmatprep.subr.bf16.mxu0 0
  %774 = vmatpush1.bf16.xpose.msra.mxu0 0
  %775 = vmatprep.subr.bf16.mxu0 0
  %776 = vmatpush1.bf16.xpose.msra.mxu0 0
  %777 = vmatprep.subr.bf16.mxu0 0
  %778 = vmatpush1.bf16.xpose.msra.mxu0 0
  %779 = vmatprep.subr.bf16.mxu0 0
  %780 = vmatpush1.bf16.xpose.msra.mxu0 0
  %781 = vmatprep.subr.bf16.mxu0 0
  %782 = vmatpush1.bf16.xpose.msra.mxu0 0
  %783 = vmatprep.subr.bf16.mxu0 0
  %784 = vmatpush1.bf16.xpose.msra.mxu0 0
  %785 = vmatprep.subr.bf16.mxu0 0
  %786 = vmatpush1.bf16.xpose.msra.mxu0 0
  %787 = vmatprep.subr.bf16.mxu0 0
  %788 = vmatpush1.bf16.xpose.msra.mxu0 0
  %789 = vmatprep.subr.bf16.mxu0 0
  %790 = vmatpush1.bf16.xpose.msra.mxu0 0
  %791 = vmatprep.subr.bf16.mxu0 0
  %792 = vmatpush1.bf16.xpose.msra.mxu0 0
  %793 = vmatprep.subr.bf16.mxu0 0
  %794 = vmatpush1.bf16.xpose.msra.mxu0 0
  %795 = vmatprep.subr.bf16.mxu0 0
  %796 = vmatpush1.bf16.xpose.msra.mxu0 0
  %797 = vmatprep.subr.bf16.mxu0 0
  %798 = vmatpush1.bf16.xpose.msra.mxu0 0
  %799 = vmatprep.subr.bf16.mxu0 0
  %800 = vmatpush1.bf16.xpose.msra.mxu0 0
  %801 = vmatprep.subr.bf16.mxu0 0
  %802 = vmatpush1.bf16.xpose.msra.mxu0 0
  %803 = vmatprep.mubr.bf16.mxu0 0
  %804 = vmatmul.mubr.bf16.gmra.mrb[0].mxu0 %v766
  %v805 = vpop.f32.mrb[0].mxu0
  %v806 = vadd.f32 %v101, %v805
  %v807 = vpop.f32.mrb[0].mxu0
  %v808 = vpop.f32.mrb[0].mxu0
  %v809 = vpop.f32.mrb[0].mxu0
  %810 = vdwg.mxu0
  %v812 = vsel %vm349, %v762, 0
  %v815 = vsel %vm349, %v764, 0
  %817 = vmatprep.subr.bf16.mxu0 0
  %818 = vmatpush1.bf16.xpose.msra.mxu0 %v815
  %819 = vmatprep.subr.bf16.mxu0 0
  %820 = vmatpush1.bf16.xpose.msra.mxu0 0
  %821 = vmatprep.subr.bf16.mxu0 0
  %822 = vmatpush1.bf16.xpose.msra.mxu0 0
  %823 = vmatprep.subr.bf16.mxu0 0
  %824 = vmatpush1.bf16.xpose.msra.mxu0 0
  %825 = vmatprep.subr.bf16.mxu0 0
  %826 = vmatpush1.bf16.xpose.msra.mxu0 0
  %827 = vmatprep.subr.bf16.mxu0 0
  %828 = vmatpush1.bf16.xpose.msra.mxu0 0
  %829 = vmatprep.subr.bf16.mxu0 0
  %830 = vmatpush1.bf16.xpose.msra.mxu0 0
  %831 = vmatprep.subr.bf16.mxu0 0
  %832 = vmatpush1.bf16.xpose.msra.mxu0 0
  %833 = vmatprep.subr.bf16.mxu0 0
  %834 = vmatpush1.bf16.xpose.msra.mxu0 0
  %835 = vmatprep.subr.bf16.mxu0 0
  %836 = vmatpush1.bf16.xpose.msra.mxu0 0
  %837 = vmatprep.subr.bf16.mxu0 0
  %838 = vmatpush1.bf16.xpose.msra.mxu0 0
  %839 = vmatprep.subr.bf16.mxu0 0
  %840 = vmatpush1.bf16.xpose.msra.mxu0 0
  %841 = vmatprep.subr.bf16.mxu0 0
  %842 = vmatpush1.bf16.xpose.msra.mxu0 0
  %843 = vmatprep.subr.bf16.mxu0 0
  %844 = vmatpush1.bf16.xpose.msra.mxu0 0
  %845 = vmatprep.subr.bf16.mxu0 0
  %846 = vmatpush1.bf16.xpose.msra.mxu0 0
  %847 = vmatprep.subr.bf16.mxu0 0
  %848 = vmatpush1.bf16.xpose.msra.mxu0 0
  %849 = vmatprep.mubr.bf16.mxu0 0
  %850 = vmatmul.mubr.bf16.gmra.mrb[0].mxu0 %v812
  %v851 = vpop.f32.mrb[0].mxu0
  %v852 = vadd.f32 %v102, %v851
  %v853 = vpop.f32.mrb[0].mxu0
  %v854 = vpop.f32.mrb[0].mxu0
  %v855 = vpop.f32.mrb[0].mxu0
  %856 = vdwg.mxu0
  %v857 = vsel %vm349, %v806, -inf
  %858 = vmax.xlane.f32.xlu0 %v857
  %v859 = vpop.xlane.xlu0 %858
  %v860 = vsel %vm349, %v852, -inf
  %861 = vmax.xlane.f32.xlu0 %v860
  %v862 = vpop.xlane.xlu0 %861
  %v863 = vsub.f32 %v806, %v859
  %v864 = vsub.f32 %v852, %v862
  %v865 = vmul.f32 %v863, 1.442695
  %v866 = vpow.pop %v865
  %v867 = vmul.f32 %v864, 1.442695
  %v868 = vpow.pop %v867
  %v869 = vsel %vm349, %v866, 0.0
  %870 = vadd.xlane.f32.xlu0 %v869
  %v871 = vpop.xlane.xlu0 %870
  %v872 = vsel %vm349, %v868, 0.0
  %873 = vadd.xlane.f32.xlu0 %v872
  %v874 = vpop.xlane.xlu0 %873
  %v875 = vrcp.pop %v871
  %v876 = vrcp.pop %v874
  %v877 = vmul.f32 %v866, %v875
  %v878 = vmul.f32 %v868, %v876
  %v879 = vpack.c.bf16 %v877, %v877
  %v880 = vpack.c.bf16 %v878, %v878
  %v881 = vpack.c.bf16 %v755, %v755
  %v882 = vpack.c.bf16 %v758, %v758
  %v884 = vsel %vm349, %v879, 0
  %v887 = vsel %vm471, %v881, 0
  %889 = vmatprep.subr.bf16.mxu0 0
  %890 = vmatpush1.bf16.msra.mxu0 %v887
  %891 = vmatprep.subr.bf16.mxu0 0
  %892 = vmatpush1.bf16.msra.mxu0 0
  %893 = vmatprep.subr.bf16.mxu0 0
  %894 = vmatpush1.bf16.msra.mxu0 0
  %895 = vmatprep.subr.bf16.mxu0 0
  %896 = vmatpush1.bf16.msra.mxu0 0
  %897 = vmatprep.subr.bf16.mxu0 0
  %898 = vmatpush1.bf16.msra.mxu0 0
  %899 = vmatprep.subr.bf16.mxu0 0
  %900 = vmatpush1.bf16.msra.mxu0 0
  %901 = vmatprep.subr.bf16.mxu0 0
  %902 = vmatpush1.bf16.msra.mxu0 0
  %903 = vmatprep.subr.bf16.mxu0 0
  %904 = vmatpush1.bf16.msra.mxu0 0
  %905 = vmatprep.subr.bf16.mxu0 0
  %906 = vmatpush1.bf16.msra.mxu0 0
  %907 = vmatprep.subr.bf16.mxu0 0
  %908 = vmatpush1.bf16.msra.mxu0 0
  %909 = vmatprep.subr.bf16.mxu0 0
  %910 = vmatpush1.bf16.msra.mxu0 0
  %911 = vmatprep.subr.bf16.mxu0 0
  %912 = vmatpush1.bf16.msra.mxu0 0
  %913 = vmatprep.subr.bf16.mxu0 0
  %914 = vmatpush1.bf16.msra.mxu0 0
  %915 = vmatprep.subr.bf16.mxu0 0
  %916 = vmatpush1.bf16.msra.mxu0 0
  %917 = vmatprep.subr.bf16.mxu0 0
  %918 = vmatpush1.bf16.msra.mxu0 0
  %919 = vmatprep.subr.bf16.mxu0 0
  %920 = vmatpush1.bf16.msra.mxu0 0
  %921 = vmatprep.mubr.bf16.mxu0 0
  %922 = vmatmul.mubr.bf16.gmra.mrb[0].mxu0 %v884
  %v923 = vpop.f32.mrb[0].mxu0
  %v924 = vadd.f32 0.0, %v923
  %v925 = vpop.f32.mrb[0].mxu0
  %v926 = vpop.f32.mrb[0].mxu0
  %v927 = vpop.f32.mrb[0].mxu0
  %928 = vdwg.mxu0
  %v930 = vsel %vm349, %v880, 0
  %v933 = vsel %vm471, %v882, 0
  %935 = vmatprep.subr.bf16.mxu0 0
  %936 = vmatpush1.bf16.msra.mxu0 %v933
  %937 = vmatprep.subr.bf16.mxu0 0
  %938 = vmatpush1.bf16.msra.mxu0 0
  %939 = vmatprep.subr.bf16.mxu0 0
  %940 = vmatpush1.bf16.msra.mxu0 0
  %941 = vmatprep.subr.bf16.mxu0 0
  %942 = vmatpush1.bf16.msra.mxu0 0
  %943 = vmatprep.subr.bf16.mxu0 0
  %944 = vmatpush1.bf16.msra.mxu0 0
  %945 = vmatprep.subr.bf16.mxu0 0
  %946 = vmatpush1.bf16.msra.mxu0 0
  %947 = vmatprep.subr.bf16.mxu0 0
  %948 = vmatpush1.bf16.msra.mxu0 0
  %949 = vmatprep.subr.bf16.mxu0 0
  %950 = vmatpush1.bf16.msra.mxu0 0
  %951 = vmatprep.subr.bf16.mxu0 0
  %952 = vmatpush1.bf16.msra.mxu0 0
  %953 = vmatprep.subr.bf16.mxu0 0
  %954 = vmatpush1.bf16.msra.mxu0 0
  %955 = vmatprep.subr.bf16.mxu0 0
  %956 = vmatpush1.bf16.msra.mxu0 0
  %957 = vmatprep.subr.bf16.mxu0 0
  %958 = vmatpush1.bf16.msra.mxu0 0
  %959 = vmatprep.subr.bf16.mxu0 0
  %960 = vmatpush1.bf16.msra.mxu0 0
  %961 = vmatprep.subr.bf16.mxu0 0
  %962 = vmatpush1.bf16.msra.mxu0 0
  %963 = vmatprep.subr.bf16.mxu0 0
  %964 = vmatpush1.bf16.msra.mxu0 0
  %965 = vmatprep.subr.bf16.mxu0 0
  %966 = vmatpush1.bf16.msra.mxu0 0
  %967 = vmatprep.mubr.bf16.mxu0 0
  %968 = vmatmul.mubr.bf16.gmra.mrb[0].mxu0 %v930
  %v969 = vpop.f32.mrb[0].mxu0
  %v970 = vadd.f32 0.0, %v969
  %v971 = vpop.f32.mrb[0].mxu0
  %v972 = vpop.f32.mrb[0].mxu0
  %v973 = vpop.f32.mrb[0].mxu0
  %974 = vdwg.mxu0
  %v975 = vpack.c.bf16 %v970, %v924
  %s976 = scalar_lea.vmem %s10, 4
  %v977 = vld [vmem:[%s976] sm:$0xf]
  %v979 = vsel %vm349, %v975, 0
  %v982 = vsel %vm471, %v977, 0
  %984 = vmatprep.subr.bf16.mxu0 0
  %985 = vmatpush1.bf16.msra.mxu0 %v982
  %986 = vmatprep.subr.bf16.mxu0 0
  %987 = vmatpush1.bf16.msra.mxu0 0
  %988 = vmatprep.subr.bf16.mxu0 0
  %989 = vmatpush1.bf16.msra.mxu0 0
  %990 = vmatprep.subr.bf16.mxu0 0
  %991 = vmatpush1.bf16.msra.mxu0 0
  %992 = vmatprep.subr.bf16.mxu0 0
  %993 = vmatpush1.bf16.msra.mxu0 0
  %994 = vmatprep.subr.bf16.mxu0 0
  %995 = vmatpush1.bf16.msra.mxu0 0
  %996 = vmatprep.subr.bf16.mxu0 0
  %997 = vmatpush1.bf16.msra.mxu0 0
  %998 = vmatprep.subr.bf16.mxu0 0
  %999 = vmatpush1.bf16.msra.mxu0 0
  %1000 = vmatprep.subr.bf16.mxu0 0
  %1001 = vmatpush1.bf16.msra.mxu0 0
  %1002 = vmatprep.subr.bf16.mxu0 0
  %1003 = vmatpush1.bf16.msra.mxu0 0
  %1004 = vmatprep.subr.bf16.mxu0 0
  %1005 = vmatpush1.bf16.msra.mxu0 0
  %1006 = vmatprep.subr.bf16.mxu0 0
  %1007 = vmatpush1.bf16.msra.mxu0 0
  %1008 = vmatprep.subr.bf16.mxu0 0
  %1009 = vmatpush1.bf16.msra.mxu0 0
  %1010 = vmatprep.subr.bf16.mxu0 0
  %1011 = vmatpush1.bf16.msra.mxu0 0
  %1012 = vmatprep.subr.bf16.mxu0 0
  %1013 = vmatpush1.bf16.msra.mxu0 0
  %1014 = vmatprep.subr.bf16.mxu0 0
  %1015 = vmatpush1.bf16.msra.mxu0 0
  %1016 = vmatprep.mubr.bf16.mxu0 0
  %1017 = vmatmul.mubr.bf16.gmra.mrb[0].mxu0 %v979
  %v1018 = vpop.f32.mrb[0].mxu0
  %v1019 = vadd.f32 0.0, %v1018
  %v1020 = vpop.f32.mrb[0].mxu0
  %v1021 = vpop.f32.mrb[0].mxu0
  %v1022 = vadd.f32 0.0, %v1021
  %v1023 = vpop.f32.mrb[0].mxu0
  %1024 = vdwg.mxu0
  %v1026 = vsel %vm349, %v561, 0
  %v1029 = vsel %vm471, %v562, 0
  %1031 = vmatprep.subr.bf16.mxu0 0
  %1032 = vmatpush1.bf16.msra.mxu0 %v1029
  %1033 = vmatprep.subr.bf16.mxu0 0
  %1034 = vmatpush1.bf16.msra.mxu0 0
  %1035 = vmatprep.subr.bf16.mxu0 0
  %1036 = vmatpush1.bf16.msra.mxu0 0
  %1037 = vmatprep.subr.bf16.mxu0 0
  %1038 = vmatpush1.bf16.msra.mxu0 0
  %1039 = vmatprep.subr.bf16.mxu0 0
  %1040 = vmatpush1.bf16.msra.mxu0 0
  %1041 = vmatprep.subr.bf16.mxu0 0
  %1042 = vmatpush1.bf16.msra.mxu0 0
  %1043 = vmatprep.subr.bf16.mxu0 0
  %1044 = vmatpush1.bf16.msra.mxu0 0
  %1045 = vmatprep.subr.bf16.mxu0 0
  %1046 = vmatpush1.bf16.msra.mxu0 0
  %1047 = vmatprep.subr.bf16.mxu0 0
  %1048 = vmatpush1.bf16.msra.mxu0 0
  %1049 = vmatprep.subr.bf16.mxu0 0
  %1050 = vmatpush1.bf16.msra.mxu0 0
  %1051 = vmatprep.subr.bf16.mxu0 0
  %1052 = vmatpush1.bf16.msra.mxu0 0
  %1053 = vmatprep.subr.bf16.mxu0 0
  %1054 = vmatpush1.bf16.msra.mxu0 0
  %1055 = vmatprep.subr.bf16.mxu0 0
  %1056 = vmatpush1.bf16.msra.mxu0 0
  %1057 = vmatprep.subr.bf16.mxu0 0
  %1058 = vmatpush1.bf16.msra.mxu0 0
  %1059 = vmatprep.subr.bf16.mxu0 0
  %1060 = vmatpush1.bf16.msra.mxu0 0
  %1061 = vmatprep.subr.bf16.mxu0 0
  %1062 = vmatpush1.bf16.msra.mxu0 0
  %1063 = vmatprep.mubr.bf16.mxu0 0
  %1064 = vmatmul.mubr.bf16.gmra.mrb[0].mxu0 %v1026
  %v1065 = vpop.f32.mrb[0].mxu0
  %v1066 = vadd.f32 %v1019, %v1065
  %v1067 = vpop.f32.mrb[0].mxu0
  %v1068 = vpop.f32.mrb[0].mxu0
  %v1069 = vadd.f32 %v1022, %v1068
  %v1070 = vpop.f32.mrb[0].mxu0
  %1071 = vdwg.mxu0
  %s1072 = scalar_lea.vmem %s4, 32
  %v1073 = vld [vmem:[%s1072] sm:$0xf]
  %v1074 = vld [vmem:[%s1072 + $0x4] sm:$0xf]
  %v1075 = vld [vmem:[%s1072 + $0x8] sm:$0xf]
  %v1076 = vld [vmem:[%s1072 + $0xc] sm:$0xf]
  %s1077 = scalar_lea.vmem %s5, 2
  %v1078 = vld [vmem:[%s1077] sm:$0x1]
  %v1080 = vlaneseq
  %v1081 = vshrl.u32 %v1080, 7
  %v1082 = vsub.s32 0, %v1081
  %v1083 = vrot.slane %v1078, %v1082
  %v1089 = vunpack.c.l.b16 %v1073
  %v1090 = vunpack.c.l.b16 %v1074
  %v1091 = vunpack.c.l.b16 %v1075
  %v1092 = vunpack.c.l.b16 %v1076
  %v1093 = vpack.c.b16 %v1090, %v1089
  %v1094 = vpack.c.b16 %v1092, %v1091
  %1097 = vmatprep.subr.bf16.mxu0 0
  %1098 = vmatpush1.bf16.msra.mxu0 %v1093
  %1099 = vmatprep.subr.bf16.mxu0 0
  %1100 = vmatpush1.bf16.msra.mxu0 %v1094
  %1101 = vmatprep.subr.bf16.mxu0 0
  %1102 = vmatpush1.bf16.msra.mxu0 0
  %1103 = vmatprep.subr.bf16.mxu0 0
  %1104 = vmatpush1.bf16.msra.mxu0 0
  %1105 = vmatprep.subr.bf16.mxu0 0
  %1106 = vmatpush1.bf16.msra.mxu0 0
  %1107 = vmatprep.subr.bf16.mxu0 0
  %1108 = vmatpush1.bf16.msra.mxu0 0
  %1109 = vmatprep.subr.bf16.mxu0 0
  %1110 = vmatpush1.bf16.msra.mxu0 0
  %1111 = vmatprep.subr.bf16.mxu0 0
  %1112 = vmatpush1.bf16.msra.mxu0 0
  %1113 = vmatprep.subr.bf16.mxu0 0
  %1114 = vmatpush1.bf16.msra.mxu0 0
  %1115 = vmatprep.subr.bf16.mxu0 0
  %1116 = vmatpush1.bf16.msra.mxu0 0
  %1117 = vmatprep.subr.bf16.mxu0 0
  %1118 = vmatpush1.bf16.msra.mxu0 0
  %1119 = vmatprep.subr.bf16.mxu0 0
  %1120 = vmatpush1.bf16.msra.mxu0 0
  %1121 = vmatprep.subr.bf16.mxu0 0
  %1122 = vmatpush1.bf16.msra.mxu0 0
  %1123 = vmatprep.subr.bf16.mxu0 0
  %1124 = vmatpush1.bf16.msra.mxu0 0
  %1125 = vmatprep.subr.bf16.mxu0 0
  %1126 = vmatpush1.bf16.msra.mxu0 0
  %1127 = vmatprep.subr.bf16.mxu0 0
  %1128 = vmatpush1.bf16.msra.mxu0 0
  %1129 = vmatprep.mubr.bf16.mxu0 0
  %1130 = vmatmul.mubr.bf16.gmra.mrb[0].mxu0 %v174
  %v1131 = vpop.f32.mrb[0].mxu0
  %v1132 = vadd.f32 %v1083, %v1131
  %v1133 = vpop.f32.mrb[0].mxu0
  %v1134 = vpop.f32.mrb[0].mxu0
  %v1135 = vadd.f32 %v1083, %v1134
  %v1136 = vpop.f32.mrb[0].mxu0
  %1137 = vdwg.mxu0
  %s1138 = scalar_lea.vmem %s6, 32
  %v1139 = vld [vmem:[%s1138] sm:$0xf]
  %v1140 = vld [vmem:[%s1138 + $0x4] sm:$0xf]
  %v1141 = vld [vmem:[%s1138 + $0x8] sm:$0xf]
  %v1142 = vld [vmem:[%s1138 + $0xc] sm:$0xf]
  %s1143 = scalar_lea.vmem %s7, 2
  %v1144 = vld [vmem:[%s1143] sm:$0x1]
  %v1146 = vlaneseq
  %v1147 = vshrl.u32 %v1146, 7
  %v1148 = vsub.s32 0, %v1147
  %v1149 = vrot.slane %v1144, %v1148
  %v1155 = vunpack.c.l.b16 %v1139
  %v1156 = vunpack.c.l.b16 %v1140
  %v1157 = vunpack.c.l.b16 %v1141
  %v1158 = vunpack.c.l.b16 %v1142
  %v1159 = vpack.c.b16 %v1156, %v1155
  %v1160 = vpack.c.b16 %v1158, %v1157
  %1163 = vmatprep.subr.bf16.mxu0 0
  %1164 = vmatpush1.bf16.msra.mxu0 %v1159
  %1165 = vmatprep.subr.bf16.mxu0 0
  %1166 = vmatpush1.bf16.msra.mxu0 %v1160
  %1167 = vmatprep.subr.bf16.mxu0 0
  %1168 = vmatpush1.bf16.msra.mxu0 0
  %1169 = vmatprep.subr.bf16.mxu0 0
  %1170 = vmatpush1.bf16.msra.mxu0 0
  %1171 = vmatprep.subr.bf16.mxu0 0
  %1172 = vmatpush1.bf16.msra.mxu0 0
  %1173 = vmatprep.subr.bf16.mxu0 0
  %1174 = vmatpush1.bf16.msra.mxu0 0
  %1175 = vmatprep.subr.bf16.mxu0 0
  %1176 = vmatpush1.bf16.msra.mxu0 0
  %1177 = vmatprep.subr.bf16.mxu0 0
  %1178 = vmatpush1.bf16.msra.mxu0 0
  %1179 = vmatprep.subr.bf16.mxu0 0
  %1180 = vmatpush1.bf16.msra.mxu0 0
  %1181 = vmatprep.subr.bf16.mxu0 0
  %1182 = vmatpush1.bf16.msra.mxu0 0
  %1183 = vmatprep.subr.bf16.mxu0 0
  %1184 = vmatpush1.bf16.msra.mxu0 0
  %1185 = vmatprep.subr.bf16.mxu0 0
  %1186 = vmatpush1.bf16.msra.mxu0 0
  %1187 = vmatprep.subr.bf16.mxu0 0
  %1188 = vmatpush1.bf16.msra.mxu0 0
  %1189 = vmatprep.subr.bf16.mxu0 0
  %1190 = vmatpush1.bf16.msra.mxu0 0
  %1191 = vmatprep.subr.bf16.mxu0 0
  %1192 = vmatpush1.bf16.msra.mxu0 0
  %1193 = vmatprep.subr.bf16.mxu0 0
  %1194 = vmatpush1.bf16.msra.mxu0 0
  %1195 = vmatprep.mubr.bf16.mxu0 0
  %1196 = vmatmul.mubr.bf16.gmra.mrb[0].mxu0 %v174
  %v1197 = vpop.f32.mrb[0].mxu0
  %v1198 = vadd.f32 %v1149, %v1197
  %v1199 = vpop.f32.mrb[0].mxu0
  %v1200 = vpop.f32.mrb[0].mxu0
  %v1201 = vadd.f32 %v1149, %v1200
  %v1202 = vpop.f32.mrb[0].mxu0
  %1203 = vdwg.mxu0
  %s1204 = scalar_lea.vmem %s8, 32
  %v1205 = vld [vmem:[%s1204] sm:$0xf]
  %v1206 = vld [vmem:[%s1204 + $0x4] sm:$0xf]
  %v1207 = vld [vmem:[%s1204 + $0x8] sm:$0xf]
  %v1208 = vld [vmem:[%s1204 + $0xc] sm:$0xf]
  %s1209 = scalar_lea.vmem %s9, 2
  %v1210 = vld [vmem:[%s1209] sm:$0x1]
  %v1212 = vlaneseq
  %v1213 = vshrl.u32 %v1212, 7
  %v1214 = vsub.s32 0, %v1213
  %v1215 = vrot.slane %v1210, %v1214
  %v1221 = vunpack.c.l.b16 %v1205
  %v1222 = vunpack.c.l.b16 %v1206
  %v1223 = vunpack.c.l.b16 %v1207
  %v1224 = vunpack.c.l.b16 %v1208
  %v1225 = vpack.c.b16 %v1222, %v1221
  %v1226 = vpack.c.b16 %v1224, %v1223
  %1229 = vmatprep.subr.bf16.mxu0 0
  %1230 = vmatpush1.bf16.msra.mxu0 %v1225
  %1231 = vmatprep.subr.bf16.mxu0 0
  %1232 = vmatpush1.bf16.msra.mxu0 %v1226
  %1233 = vmatprep.subr.bf16.mxu0 0
  %1234 = vmatpush1.bf16.msra.mxu0 0
  %1235 = vmatprep.subr.bf16.mxu0 0
  %1236 = vmatpush1.bf16.msra.mxu0 0
  %1237 = vmatprep.subr.bf16.mxu0 0
  %1238 = vmatpush1.bf16.msra.mxu0 0
  %1239 = vmatprep.subr.bf16.mxu0 0
  %1240 = vmatpush1.bf16.msra.mxu0 0
  %1241 = vmatprep.subr.bf16.mxu0 0
  %1242 = vmatpush1.bf16.msra.mxu0 0
  %1243 = vmatprep.subr.bf16.mxu0 0
  %1244 = vmatpush1.bf16.msra.mxu0 0
  %1245 = vmatprep.subr.bf16.mxu0 0
  %1246 = vmatpush1.bf16.msra.mxu0 0
  %1247 = vmatprep.subr.bf16.mxu0 0
  %1248 = vmatpush1.bf16.msra.mxu0 0
  %1249 = vmatprep.subr.bf16.mxu0 0
  %1250 = vmatpush1.bf16.msra.mxu0 0
  %1251 = vmatprep.subr.bf16.mxu0 0
  %1252 = vmatpush1.bf16.msra.mxu0 0
  %1253 = vmatprep.subr.bf16.mxu0 0
  %1254 = vmatpush1.bf16.msra.mxu0 0
  %1255 = vmatprep.subr.bf16.mxu0 0
  %1256 = vmatpush1.bf16.msra.mxu0 0
  %1257 = vmatprep.subr.bf16.mxu0 0
  %1258 = vmatpush1.bf16.msra.mxu0 0
  %1259 = vmatprep.subr.bf16.mxu0 0
  %1260 = vmatpush1.bf16.msra.mxu0 0
  %1261 = vmatprep.mubr.bf16.mxu0 0
  %1262 = vmatmul.mubr.bf16.gmra.mrb[0].mxu0 %v174
  %v1263 = vpop.f32.mrb[0].mxu0
  %v1264 = vadd.f32 %v1215, %v1263
  %v1265 = vpop.f32.mrb[0].mxu0
  %v1266 = vpop.f32.mrb[0].mxu0
  %v1267 = vadd.f32 %v1215, %v1266
  %v1268 = vpop.f32.mrb[0].mxu0
  %1269 = vdwg.mxu0
  %v1270 = vpack.c.bf16 %v1132, %v1132
  %v1271 = vpack.c.bf16 %v1135, %v1135
  %v1272 = vpack.c.bf16 %v1198, %v1198
  %v1273 = vpack.c.bf16 %v1201, %v1201
  %v1275 = vsel %vm349, %v1270, 0
  %v1278 = vsel %vm349, %v1272, 0
  %1280 = vmatprep.subr.bf16.mxu0 0
  %1281 = vmatpush1.bf16.xpose.msra.mxu0 %v1278
  %1282 = vmatprep.subr.bf16.mxu0 0
  %1283 = vmatpush1.bf16.xpose.msra.mxu0 0
  %1284 = vmatprep.subr.bf16.mxu0 0
  %1285 = vmatpush1.bf16.xpose.msra.mxu0 0
  %1286 = vmatprep.subr.bf16.mxu0 0
  %1287 = vmatpush1.bf16.xpose.msra.mxu0 0
  %1288 = vmatprep.subr.bf16.mxu0 0
  %1289 = vmatpush1.bf16.xpose.msra.mxu0 0
  %1290 = vmatprep.subr.bf16.mxu0 0
  %1291 = vmatpush1.bf16.xpose.msra.mxu0 0
  %1292 = vmatprep.subr.bf16.mxu0 0
  %1293 = vmatpush1.bf16.xpose.msra.mxu0 0
  %1294 = vmatprep.subr.bf16.mxu0 0
  %1295 = vmatpush1.bf16.xpose.msra.mxu0 0
  %1296 = vmatprep.subr.bf16.mxu0 0
  %1297 = vmatpush1.bf16.xpose.msra.mxu0 0
  %1298 = vmatprep.subr.bf16.mxu0 0
  %1299 = vmatpush1.bf16.xpose.msra.mxu0 0
  %1300 = vmatprep.subr.bf16.mxu0 0
  %1301 = vmatpush1.bf16.xpose.msra.mxu0 0
  %1302 = vmatprep.subr.bf16.mxu0 0
  %1303 = vmatpush1.bf16.xpose.msra.mxu0 0
  %1304 = vmatprep.subr.bf16.mxu0 0
  %1305 = vmatpush1.bf16.xpose.msra.mxu0 0
  %1306 = vmatprep.subr.bf16.mxu0 0
  %1307 = vmatpush1.bf16.xpose.msra.mxu0 0
  %1308 = vmatprep.subr.bf16.mxu0 0
  %1309 = vmatpush1.bf16.xpose.msra.mxu0 0
  %1310 = vmatprep.subr.bf16.mxu0 0
  %1311 = vmatpush1.bf16.xpose.msra.mxu0 0
  %1312 = vmatprep.mubr.bf16.mxu0 0
  %1313 = vmatmul.mubr.bf16.gmra.mrb[0].mxu0 %v1275
  %v1314 = vpop.f32.mrb[0].mxu0
  %v1315 = vadd.f32 %v101, %v1314
  %v1316 = vpop.f32.mrb[0].mxu0
  %v1317 = vpop.f32.mrb[0].mxu0
  %v1318 = vpop.f32.mrb[0].mxu0
  %1319 = vdwg.mxu0
  %v1321 = vsel %vm349, %v1271, 0
  %v1324 = vsel %vm349, %v1273, 0
  %1326 = vmatprep.subr.bf16.mxu0 0
  %1327 = vmatpush1.bf16.xpose.msra.mxu0 %v1324
  %1328 = vmatprep.subr.bf16.mxu0 0
  %1329 = vmatpush1.bf16.xpose.msra.mxu0 0
  %1330 = vmatprep.subr.bf16.mxu0 0
  %1331 = vmatpush1.bf16.xpose.msra.mxu0 0
  %1332 = vmatprep.subr.bf16.mxu0 0
  %1333 = vmatpush1.bf16.xpose.msra.mxu0 0
  %1334 = vmatprep.subr.bf16.mxu0 0
  %1335 = vmatpush1.bf16.xpose.msra.mxu0 0
  %1336 = vmatprep.subr.bf16.mxu0 0
  %1337 = vmatpush1.bf16.xpose.msra.mxu0 0
  %1338 = vmatprep.subr.bf16.mxu0 0
  %1339 = vmatpush1.bf16.xpose.msra.mxu0 0
  %1340 = vmatprep.subr.bf16.mxu0 0
  %1341 = vmatpush1.bf16.xpose.msra.mxu0 0
  %1342 = vmatprep.subr.bf16.mxu0 0
  %1343 = vmatpush1.bf16.xpose.msra.mxu0 0
  %1344 = vmatprep.subr.bf16.mxu0 0
  %1345 = vmatpush1.bf16.xpose.msra.mxu0 0
  %1346 = vmatprep.subr.bf16.mxu0 0
  %1347 = vmatpush1.bf16.xpose.msra.mxu0 0
  %1348 = vmatprep.subr.bf16.mxu0 0
  %1349 = vmatpush1.bf16.xpose.msra.mxu0 0
  %1350 = vmatprep.subr.bf16.mxu0 0
  %1351 = vmatpush1.bf16.xpose.msra.mxu0 0
  %1352 = vmatprep.subr.bf16.mxu0 0
  %1353 = vmatpush1.bf16.xpose.msra.mxu0 0
  %1354 = vmatprep.subr.bf16.mxu0 0
  %1355 = vmatpush1.bf16.xpose.msra.mxu0 0
  %1356 = vmatprep.subr.bf16.mxu0 0
  %1357 = vmatpush1.bf16.xpose.msra.mxu0 0
  %1358 = vmatprep.mubr.bf16.mxu0 0
  %1359 = vmatmul.mubr.bf16.gmra.mrb[0].mxu0 %v1321
  %v1360 = vpop.f32.mrb[0].mxu0
  %v1361 = vadd.f32 %v102, %v1360
  %v1362 = vpop.f32.mrb[0].mxu0
  %v1363 = vpop.f32.mrb[0].mxu0
  %v1364 = vpop.f32.mrb[0].mxu0
  %1365 = vdwg.mxu0
  %v1366 = vsel %vm349, %v1315, -inf
  %1367 = vmax.xlane.f32.xlu0 %v1366
  %v1368 = vpop.xlane.xlu0 %1367
  %v1369 = vsel %vm349, %v1361, -inf
  %1370 = vmax.xlane.f32.xlu0 %v1369
  %v1371 = vpop.xlane.xlu0 %1370
  %v1372 = vsub.f32 %v1315, %v1368
  %v1373 = vsub.f32 %v1361, %v1371
  %v1374 = vmul.f32 %v1372, 1.442695
  %v1375 = vpow.pop %v1374
  %v1376 = vmul.f32 %v1373, 1.442695
  %v1377 = vpow.pop %v1376
  %v1378 = vsel %vm349, %v1375, 0.0
  %1379 = vadd.xlane.f32.xlu0 %v1378
  %v1380 = vpop.xlane.xlu0 %1379
  %v1381 = vsel %vm349, %v1377, 0.0
  %1382 = vadd.xlane.f32.xlu0 %v1381
  %v1383 = vpop.xlane.xlu0 %1382
  %v1384 = vrcp.pop %v1380
  %v1385 = vrcp.pop %v1383
  %v1386 = vmul.f32 %v1375, %v1384
  %v1387 = vmul.f32 %v1377, %v1385
  %v1388 = vpack.c.bf16 %v1386, %v1386
  %v1389 = vpack.c.bf16 %v1387, %v1387
  %v1390 = vpack.c.bf16 %v1264, %v1264
  %v1391 = vpack.c.bf16 %v1267, %v1267
  %v1393 = vsel %vm349, %v1388, 0
  %v1396 = vsel %vm471, %v1390, 0
  %1398 = vmatprep.subr.bf16.mxu0 0
  %1399 = vmatpush1.bf16.msra.mxu0 %v1396
  %1400 = vmatprep.subr.bf16.mxu0 0
  %1401 = vmatpush1.bf16.msra.mxu0 0
  %1402 = vmatprep.subr.bf16.mxu0 0
  %1403 = vmatpush1.bf16.msra.mxu0 0
  %1404 = vmatprep.subr.bf16.mxu0 0
  %1405 = vmatpush1.bf16.msra.mxu0 0
  %1406 = vmatprep.subr.bf16.mxu0 0
  %1407 = vmatpush1.bf16.msra.mxu0 0
  %1408 = vmatprep.subr.bf16.mxu0 0
  %1409 = vmatpush1.bf16.msra.mxu0 0
  %1410 = vmatprep.subr.bf16.mxu0 0
  %1411 = vmatpush1.bf16.msra.mxu0 0
  %1412 = vmatprep.subr.bf16.mxu0 0
  %1413 = vmatpush1.bf16.msra.mxu0 0
  %1414 = vmatprep.subr.bf16.mxu0 0
  %1415 = vmatpush1.bf16.msra.mxu0 0
  %1416 = vmatprep.subr.bf16.mxu0 0
  %1417 = vmatpush1.bf16.msra.mxu0 0
  %1418 = vmatprep.subr.bf16.mxu0 0
  %1419 = vmatpush1.bf16.msra.mxu0 0
  %1420 = vmatprep.subr.bf16.mxu0 0
  %1421 = vmatpush1.bf16.msra.mxu0 0
  %1422 = vmatprep.subr.bf16.mxu0 0
  %1423 = vmatpush1.bf16.msra.mxu0 0
  %1424 = vmatprep.subr.bf16.mxu0 0
  %1425 = vmatpush1.bf16.msra.mxu0 0
  %1426 = vmatprep.subr.bf16.mxu0 0
  %1427 = vmatpush1.bf16.msra.mxu0 0
  %1428 = vmatprep.subr.bf16.mxu0 0
  %1429 = vmatpush1.bf16.msra.mxu0 0
  %1430 = vmatprep.mubr.bf16.mxu0 0
  %1431 = vmatmul.mubr.bf16.gmra.mrb[0].mxu0 %v1393
  %v1432 = vpop.f32.mrb[0].mxu0
  %v1433 = vadd.f32 0.0, %v1432
  %v1434 = vpop.f32.mrb[0].mxu0
  %v1435 = vpop.f32.mrb[0].mxu0
  %v1436 = vpop.f32.mrb[0].mxu0
  %1437 = vdwg.mxu0
  %v1439 = vsel %vm349, %v1389, 0
  %v1442 = vsel %vm471, %v1391, 0
  %1444 = vmatprep.subr.bf16.mxu0 0
  %1445 = vmatpush1.bf16.msra.mxu0 %v1442
  %1446 = vmatprep.subr.bf16.mxu0 0
  %1447 = vmatpush1.bf16.msra.mxu0 0
  %1448 = vmatprep.subr.bf16.mxu0 0
  %1449 = vmatpush1.bf16.msra.mxu0 0
  %1450 = vmatprep.subr.bf16.mxu0 0
  %1451 = vmatpush1.bf16.msra.mxu0 0
  %1452 = vmatprep.subr.bf16.mxu0 0
  %1453 = vmatpush1.bf16.msra.mxu0 0
  %1454 = vmatprep.subr.bf16.mxu0 0
  %1455 = vmatpush1.bf16.msra.mxu0 0
  %1456 = vmatprep.subr.bf16.mxu0 0
  %1457 = vmatpush1.bf16.msra.mxu0 0
  %1458 = vmatprep.subr.bf16.mxu0 0
  %1459 = vmatpush1.bf16.msra.mxu0 0
  %1460 = vmatprep.subr.bf16.mxu0 0
  %1461 = vmatpush1.bf16.msra.mxu0 0
  %1462 = vmatprep.subr.bf16.mxu0 0
  %1463 = vmatpush1.bf16.msra.mxu0 0
  %1464 = vmatprep.subr.bf16.mxu0 0
  %1465 = vmatpush1.bf16.msra.mxu0 0
  %1466 = vmatprep.subr.bf16.mxu0 0
  %1467 = vmatpush1.bf16.msra.mxu0 0
  %1468 = vmatprep.subr.bf16.mxu0 0
  %1469 = vmatpush1.bf16.msra.mxu0 0
  %1470 = vmatprep.subr.bf16.mxu0 0
  %1471 = vmatpush1.bf16.msra.mxu0 0
  %1472 = vmatprep.subr.bf16.mxu0 0
  %1473 = vmatpush1.bf16.msra.mxu0 0
  %1474 = vmatprep.subr.bf16.mxu0 0
  %1475 = vmatpush1.bf16.msra.mxu0 0
  %1476 = vmatprep.mubr.bf16.mxu0 0
  %1477 = vmatmul.mubr.bf16.gmra.mrb[0].mxu0 %v1439
  %v1478 = vpop.f32.mrb[0].mxu0
  %v1479 = vadd.f32 0.0, %v1478
  %v1480 = vpop.f32.mrb[0].mxu0
  %v1481 = vpop.f32.mrb[0].mxu0
  %v1482 = vpop.f32.mrb[0].mxu0
  %1483 = vdwg.mxu0
  %v1484 = vpack.c.bf16 %v1479, %v1433
  %s1485 = scalar_lea.vmem %s10, 8
  %v1486 = vld [vmem:[%s1485] sm:$0xf]
  %v1488 = vsel %vm349, %v1484, 0
  %v1491 = vsel %vm471, %v1486, 0
  %1493 = vmatprep.subr.bf16.mxu0 0
  %1494 = vmatpush1.bf16.msra.mxu0 %v1491
  %1495 = vmatprep.subr.bf16.mxu0 0
  %1496 = vmatpush1.bf16.msra.mxu0 0
  %1497 = vmatprep.subr.bf16.mxu0 0
  %1498 = vmatpush1.bf16.msra.mxu0 0
  %1499 = vmatprep.subr.bf16.mxu0 0
  %1500 = vmatpush1.bf16.msra.mxu0 0
  %1501 = vmatprep.subr.bf16.mxu0 0
  %1502 = vmatpush1.bf16.msra.mxu0 0
  %1503 = vmatprep.subr.bf16.mxu0 0
  %1504 = vmatpush1.bf16.msra.mxu0 0
  %1505 = vmatprep.subr.bf16.mxu0 0
  %1506 = vmatpush1.bf16.msra.mxu0 0
  %1507 = vmatprep.subr.bf16.mxu0 0
  %1508 = vmatpush1.bf16.msra.mxu0 0
  %1509 = vmatprep.subr.bf16.mxu0 0
  %1510 = vmatpush1.bf16.msra.mxu0 0
  %1511 = vmatprep.subr.bf16.mxu0 0
  %1512 = vmatpush1.bf16.msra.mxu0 0
  %1513 = vmatprep.subr.bf16.mxu0 0
  %1514 = vmatpush1.bf16.msra.mxu0 0
  %1515 = vmatprep.subr.bf16.mxu0 0
  %1516 = vmatpush1.bf16.msra.mxu0 0
  %1517 = vmatprep.subr.bf16.mxu0 0
  %1518 = vmatpush1.bf16.msra.mxu0 0
  %1519 = vmatprep.subr.bf16.mxu0 0
  %1520 = vmatpush1.bf16.msra.mxu0 0
  %1521 = vmatprep.subr.bf16.mxu0 0
  %1522 = vmatpush1.bf16.msra.mxu0 0
  %1523 = vmatprep.subr.bf16.mxu0 0
  %1524 = vmatpush1.bf16.msra.mxu0 0
  %1525 = vmatprep.mubr.bf16.mxu0 0
  %1526 = vmatmul.mubr.bf16.gmra.mrb[0].mxu0 %v1488
  %v1527 = vpop.f32.mrb[0].mxu0
  %v1528 = vadd.f32 0.0, %v1527
  %v1529 = vpop.f32.mrb[0].mxu0
  %v1530 = vpop.f32.mrb[0].mxu0
  %v1531 = vadd.f32 0.0, %v1530
  %v1532 = vpop.f32.mrb[0].mxu0
  %1533 = vdwg.mxu0
  %v1534 = vadd.f32 %v1066, %v1528
  %v1535 = vadd.f32 %v1069, %v1531
  %s1536 = scalar_lea.vmem %s4, 48
  %v1537 = vld [vmem:[%s1536] sm:$0xf]
  %v1538 = vld [vmem:[%s1536 + $0x4] sm:$0xf]
  %v1539 = vld [vmem:[%s1536 + $0x8] sm:$0xf]
  %v1540 = vld [vmem:[%s1536 + $0xc] sm:$0xf]
  %s1541 = scalar_lea.vmem %s5, 3
  %v1542 = vld [vmem:[%s1541] sm:$0x1]
  %v1544 = vlaneseq
  %v1545 = vshrl.u32 %v1544, 7
  %v1546 = vsub.s32 0, %v1545
  %v1547 = vrot.slane %v1542, %v1546
  %v1553 = vunpack.c.l.b16 %v1537
  %v1554 = vunpack.c.l.b16 %v1538
  %v1555 = vunpack.c.l.b16 %v1539
  %v1556 = vunpack.c.l.b16 %v1540
  %v1557 = vpack.c.b16 %v1554, %v1553
  %v1558 = vpack.c.b16 %v1556, %v1555
  %1561 = vmatprep.subr.bf16.mxu0 0
  %1562 = vmatpush1.bf16.msra.mxu0 %v1557
  %1563 = vmatprep.subr.bf16.mxu0 0
  %1564 = vmatpush1.bf16.msra.mxu0 %v1558
  %1565 = vmatprep.subr.bf16.mxu0 0
  %1566 = vmatpush1.bf16.msra.mxu0 0
  %1567 = vmatprep.subr.bf16.mxu0 0
  %1568 = vmatpush1.bf16.msra.mxu0 0
  %1569 = vmatprep.subr.bf16.mxu0 0
  %1570 = vmatpush1.bf16.msra.mxu0 0
  %1571 = vmatprep.subr.bf16.mxu0 0
  %1572 = vmatpush1.bf16.msra.mxu0 0
  %1573 = vmatprep.subr.bf16.mxu0 0
  %1574 = vmatpush1.bf16.msra.mxu0 0
  %1575 = vmatprep.subr.bf16.mxu0 0
  %1576 = vmatpush1.bf16.msra.mxu0 0
  %1577 = vmatprep.subr.bf16.mxu0 0
  %1578 = vmatpush1.bf16.msra.mxu0 0
  %1579 = vmatprep.subr.bf16.mxu0 0
  %1580 = vmatpush1.bf16.msra.mxu0 0
  %1581 = vmatprep.subr.bf16.mxu0 0
  %1582 = vmatpush1.bf16.msra.mxu0 0
  %1583 = vmatprep.subr.bf16.mxu0 0
  %1584 = vmatpush1.bf16.msra.mxu0 0
  %1585 = vmatprep.subr.bf16.mxu0 0
  %1586 = vmatpush1.bf16.msra.mxu0 0
  %1587 = vmatprep.subr.bf16.mxu0 0
  %1588 = vmatpush1.bf16.msra.mxu0 0
  %1589 = vmatprep.subr.bf16.mxu0 0
  %1590 = vmatpush1.bf16.msra.mxu0 0
  %1591 = vmatprep.subr.bf16.mxu0 0
  %1592 = vmatpush1.bf16.msra.mxu0 0
  %1593 = vmatprep.mubr.bf16.mxu0 0
  %1594 = vmatmul.mubr.bf16.gmra.mrb[0].mxu0 %v174
  %v1595 = vpop.f32.mrb[0].mxu0
  %v1596 = vadd.f32 %v1547, %v1595
  %v1597 = vpop.f32.mrb[0].mxu0
  %v1598 = vpop.f32.mrb[0].mxu0
  %v1599 = vadd.f32 %v1547, %v1598
  %v1600 = vpop.f32.mrb[0].mxu0
  %1601 = vdwg.mxu0
  %s1602 = scalar_lea.vmem %s6, 48
  %v1603 = vld [vmem:[%s1602] sm:$0xf]
  %v1604 = vld [vmem:[%s1602 + $0x4] sm:$0xf]
  %v1605 = vld [vmem:[%s1602 + $0x8] sm:$0xf]
  %v1606 = vld [vmem:[%s1602 + $0xc] sm:$0xf]
  %s1607 = scalar_lea.vmem %s7, 3
  %v1608 = vld [vmem:[%s1607] sm:$0x1]
  %v1610 = vlaneseq
  %v1611 = vshrl.u32 %v1610, 7
  %v1612 = vsub.s32 0, %v1611
  %v1613 = vrot.slane %v1608, %v1612
  %v1619 = vunpack.c.l.b16 %v1603
  %v1620 = vunpack.c.l.b16 %v1604
  %v1621 = vunpack.c.l.b16 %v1605
  %v1622 = vunpack.c.l.b16 %v1606
  %v1623 = vpack.c.b16 %v1620, %v1619
  %v1624 = vpack.c.b16 %v1622, %v1621
  %1627 = vmatprep.subr.bf16.mxu0 0
  %1628 = vmatpush1.bf16.msra.mxu0 %v1623
  %1629 = vmatprep.subr.bf16.mxu0 0
  %1630 = vmatpush1.bf16.msra.mxu0 %v1624
  %1631 = vmatprep.subr.bf16.mxu0 0
  %1632 = vmatpush1.bf16.msra.mxu0 0
  %1633 = vmatprep.subr.bf16.mxu0 0
  %1634 = vmatpush1.bf16.msra.mxu0 0
  %1635 = vmatprep.subr.bf16.mxu0 0
  %1636 = vmatpush1.bf16.msra.mxu0 0
  %1637 = vmatprep.subr.bf16.mxu0 0
  %1638 = vmatpush1.bf16.msra.mxu0 0
  %1639 = vmatprep.subr.bf16.mxu0 0
  %1640 = vmatpush1.bf16.msra.mxu0 0
  %1641 = vmatprep.subr.bf16.mxu0 0
  %1642 = vmatpush1.bf16.msra.mxu0 0
  %1643 = vmatprep.subr.bf16.mxu0 0
  %1644 = vmatpush1.bf16.msra.mxu0 0
  %1645 = vmatprep.subr.bf16.mxu0 0
  %1646 = vmatpush1.bf16.msra.mxu0 0
  %1647 = vmatprep.subr.bf16.mxu0 0
  %1648 = vmatpush1.bf16.msra.mxu0 0
  %1649 = vmatprep.subr.bf16.mxu0 0
  %1650 = vmatpush1.bf16.msra.mxu0 0
  %1651 = vmatprep.subr.bf16.mxu0 0
  %1652 = vmatpush1.bf16.msra.mxu0 0
  %1653 = vmatprep.subr.bf16.mxu0 0
  %1654 = vmatpush1.bf16.msra.mxu0 0
  %1655 = vmatprep.subr.bf16.mxu0 0
  %1656 = vmatpush1.bf16.msra.mxu0 0
  %1657 = vmatprep.subr.bf16.mxu0 0
  %1658 = vmatpush1.bf16.msra.mxu0 0
  %1659 = vmatprep.mubr.bf16.mxu0 0
  %1660 = vmatmul.mubr.bf16.gmra.mrb[0].mxu0 %v174
  %v1661 = vpop.f32.mrb[0].mxu0
  %v1662 = vadd.f32 %v1613, %v1661
  %v1663 = vpop.f32.mrb[0].mxu0
  %v1664 = vpop.f32.mrb[0].mxu0
  %v1665 = vadd.f32 %v1613, %v1664
  %v1666 = vpop.f32.mrb[0].mxu0
  %1667 = vdwg.mxu0
  %s1668 = scalar_lea.vmem %s8, 48
  %v1669 = vld [vmem:[%s1668] sm:$0xf]
  %v1670 = vld [vmem:[%s1668 + $0x4] sm:$0xf]
  %v1671 = vld [vmem:[%s1668 + $0x8] sm:$0xf]
  %v1672 = vld [vmem:[%s1668 + $0xc] sm:$0xf]
  %s1673 = scalar_lea.vmem %s9, 3
  %v1674 = vld [vmem:[%s1673] sm:$0x1]
  %v1676 = vlaneseq
  %v1677 = vshrl.u32 %v1676, 7
  %v1678 = vsub.s32 0, %v1677
  %v1679 = vrot.slane %v1674, %v1678
  %v1685 = vunpack.c.l.b16 %v1669
  %v1686 = vunpack.c.l.b16 %v1670
  %v1687 = vunpack.c.l.b16 %v1671
  %v1688 = vunpack.c.l.b16 %v1672
  %v1689 = vpack.c.b16 %v1686, %v1685
  %v1690 = vpack.c.b16 %v1688, %v1687
  %1693 = vmatprep.subr.bf16.mxu0 0
  %1694 = vmatpush1.bf16.msra.mxu0 %v1689
  %1695 = vmatprep.subr.bf16.mxu0 0
  %1696 = vmatpush1.bf16.msra.mxu0 %v1690
  %1697 = vmatprep.subr.bf16.mxu0 0
  %1698 = vmatpush1.bf16.msra.mxu0 0
  %1699 = vmatprep.subr.bf16.mxu0 0
  %1700 = vmatpush1.bf16.msra.mxu0 0
  %1701 = vmatprep.subr.bf16.mxu0 0
  %1702 = vmatpush1.bf16.msra.mxu0 0
  %1703 = vmatprep.subr.bf16.mxu0 0
  %1704 = vmatpush1.bf16.msra.mxu0 0
  %1705 = vmatprep.subr.bf16.mxu0 0
  %1706 = vmatpush1.bf16.msra.mxu0 0
  %1707 = vmatprep.subr.bf16.mxu0 0
  %1708 = vmatpush1.bf16.msra.mxu0 0
  %1709 = vmatprep.subr.bf16.mxu0 0
  %1710 = vmatpush1.bf16.msra.mxu0 0
  %1711 = vmatprep.subr.bf16.mxu0 0
  %1712 = vmatpush1.bf16.msra.mxu0 0
  %1713 = vmatprep.subr.bf16.mxu0 0
  %1714 = vmatpush1.bf16.msra.mxu0 0
  %1715 = vmatprep.subr.bf16.mxu0 0
  %1716 = vmatpush1.bf16.msra.mxu0 0
  %1717 = vmatprep.subr.bf16.mxu0 0
  %1718 = vmatpush1.bf16.msra.mxu0 0
  %1719 = vmatprep.subr.bf16.mxu0 0
  %1720 = vmatpush1.bf16.msra.mxu0 0
  %1721 = vmatprep.subr.bf16.mxu0 0
  %1722 = vmatpush1.bf16.msra.mxu0 0
  %1723 = vmatprep.subr.bf16.mxu0 0
  %1724 = vmatpush1.bf16.msra.mxu0 0
  %1725 = vmatprep.mubr.bf16.mxu0 0
  %1726 = vmatmul.mubr.bf16.gmra.mrb[0].mxu0 %v174
  %v1727 = vpop.f32.mrb[0].mxu0
  %v1728 = vadd.f32 %v1679, %v1727
  %v1729 = vpop.f32.mrb[0].mxu0
  %v1730 = vpop.f32.mrb[0].mxu0
  %v1731 = vadd.f32 %v1679, %v1730
  %v1732 = vpop.f32.mrb[0].mxu0
  %1733 = vdwg.mxu0
  %v1734 = vpack.c.bf16 %v1596, %v1596
  %v1735 = vpack.c.bf16 %v1599, %v1599
  %v1736 = vpack.c.bf16 %v1662, %v1662
  %v1737 = vpack.c.bf16 %v1665, %v1665
  %v1739 = vsel %vm349, %v1734, 0
  %v1742 = vsel %vm349, %v1736, 0
  %1744 = vmatprep.subr.bf16.mxu0 0
  %1745 = vmatpush1.bf16.xpose.msra.mxu0 %v1742
  %1746 = vmatprep.subr.bf16.mxu0 0
  %1747 = vmatpush1.bf16.xpose.msra.mxu0 0
  %1748 = vmatprep.subr.bf16.mxu0 0
  %1749 = vmatpush1.bf16.xpose.msra.mxu0 0
  %1750 = vmatprep.subr.bf16.mxu0 0
  %1751 = vmatpush1.bf16.xpose.msra.mxu0 0
  %1752 = vmatprep.subr.bf16.mxu0 0
  %1753 = vmatpush1.bf16.xpose.msra.mxu0 0
  %1754 = vmatprep.subr.bf16.mxu0 0
  %1755 = vmatpush1.bf16.xpose.msra.mxu0 0
  %1756 = vmatprep.subr.bf16.mxu0 0
  %1757 = vmatpush1.bf16.xpose.msra.mxu0 0
  %1758 = vmatprep.subr.bf16.mxu0 0
  %1759 = vmatpush1.bf16.xpose.msra.mxu0 0
  %1760 = vmatprep.subr.bf16.mxu0 0
  %1761 = vmatpush1.bf16.xpose.msra.mxu0 0
  %1762 = vmatprep.subr.bf16.mxu0 0
  %1763 = vmatpush1.bf16.xpose.msra.mxu0 0
  %1764 = vmatprep.subr.bf16.mxu0 0
  %1765 = vmatpush1.bf16.xpose.msra.mxu0 0
  %1766 = vmatprep.subr.bf16.mxu0 0
  %1767 = vmatpush1.bf16.xpose.msra.mxu0 0
  %1768 = vmatprep.subr.bf16.mxu0 0
  %1769 = vmatpush1.bf16.xpose.msra.mxu0 0
  %1770 = vmatprep.subr.bf16.mxu0 0
  %1771 = vmatpush1.bf16.xpose.msra.mxu0 0
  %1772 = vmatprep.subr.bf16.mxu0 0
  %1773 = vmatpush1.bf16.xpose.msra.mxu0 0
  %1774 = vmatprep.subr.bf16.mxu0 0
  %1775 = vmatpush1.bf16.xpose.msra.mxu0 0
  %1776 = vmatprep.mubr.bf16.mxu0 0
  %1777 = vmatmul.mubr.bf16.gmra.mrb[0].mxu0 %v1739
  %v1778 = vpop.f32.mrb[0].mxu0
  %v1779 = vadd.f32 %v101, %v1778
  %v1780 = vpop.f32.mrb[0].mxu0
  %v1781 = vpop.f32.mrb[0].mxu0
  %v1782 = vpop.f32.mrb[0].mxu0
  %1783 = vdwg.mxu0
  %v1785 = vsel %vm349, %v1735, 0
  %v1788 = vsel %vm349, %v1737, 0
  %1790 = vmatprep.subr.bf16.mxu0 0
  %1791 = vmatpush1.bf16.xpose.msra.mxu0 %v1788
  %1792 = vmatprep.subr.bf16.mxu0 0
  %1793 = vmatpush1.bf16.xpose.msra.mxu0 0
  %1794 = vmatprep.subr.bf16.mxu0 0
  %1795 = vmatpush1.bf16.xpose.msra.mxu0 0
  %1796 = vmatprep.subr.bf16.mxu0 0
  %1797 = vmatpush1.bf16.xpose.msra.mxu0 0
  %1798 = vmatprep.subr.bf16.mxu0 0
  %1799 = vmatpush1.bf16.xpose.msra.mxu0 0
  %1800 = vmatprep.subr.bf16.mxu0 0
  %1801 = vmatpush1.bf16.xpose.msra.mxu0 0
  %1802 = vmatprep.subr.bf16.mxu0 0
  %1803 = vmatpush1.bf16.xpose.msra.mxu0 0
  %1804 = vmatprep.subr.bf16.mxu0 0
  %1805 = vmatpush1.bf16.xpose.msra.mxu0 0
  %1806 = vmatprep.subr.bf16.mxu0 0
  %1807 = vmatpush1.bf16.xpose.msra.mxu0 0
  %1808 = vmatprep.subr.bf16.mxu0 0
  %1809 = vmatpush1.bf16.xpose.msra.mxu0 0
  %1810 = vmatprep.subr.bf16.mxu0 0
  %1811 = vmatpush1.bf16.xpose.msra.mxu0 0
  %1812 = vmatprep.subr.bf16.mxu0 0
  %1813 = vmatpush1.bf16.xpose.msra.mxu0 0
  %1814 = vmatprep.subr.bf16.mxu0 0
  %1815 = vmatpush1.bf16.xpose.msra.mxu0 0
  %1816 = vmatprep.subr.bf16.mxu0 0
  %1817 = vmatpush1.bf16.xpose.msra.mxu0 0
  %1818 = vmatprep.subr.bf16.mxu0 0
  %1819 = vmatpush1.bf16.xpose.msra.mxu0 0
  %1820 = vmatprep.subr.bf16.mxu0 0
  %1821 = vmatpush1.bf16.xpose.msra.mxu0 0
  %1822 = vmatprep.mubr.bf16.mxu0 0
  %1823 = vmatmul.mubr.bf16.gmra.mrb[0].mxu0 %v1785
  %v1824 = vpop.f32.mrb[0].mxu0
  %v1825 = vadd.f32 %v102, %v1824
  %v1826 = vpop.f32.mrb[0].mxu0
  %v1827 = vpop.f32.mrb[0].mxu0
  %v1828 = vpop.f32.mrb[0].mxu0
  %1829 = vdwg.mxu0
  %v1830 = vsel %vm349, %v1779, -inf
  %1831 = vmax.xlane.f32.xlu0 %v1830
  %v1832 = vpop.xlane.xlu0 %1831
  %v1833 = vsel %vm349, %v1825, -inf
  %1834 = vmax.xlane.f32.xlu0 %v1833
  %v1835 = vpop.xlane.xlu0 %1834
  %v1836 = vsub.f32 %v1779, %v1832
  %v1837 = vsub.f32 %v1825, %v1835
  %v1838 = vmul.f32 %v1836, 1.442695
  %v1839 = vpow.pop %v1838
  %v1840 = vmul.f32 %v1837, 1.442695
  %v1841 = vpow.pop %v1840
  %v1842 = vsel %vm349, %v1839, 0.0
  %1843 = vadd.xlane.f32.xlu0 %v1842
  %v1844 = vpop.xlane.xlu0 %1843
  %v1845 = vsel %vm349, %v1841, 0.0
  %1846 = vadd.xlane.f32.xlu0 %v1845
  %v1847 = vpop.xlane.xlu0 %1846
  %v1848 = vrcp.pop %v1844
  %v1849 = vrcp.pop %v1847
  %v1850 = vmul.f32 %v1839, %v1848
  %v1851 = vmul.f32 %v1841, %v1849
  %v1852 = vpack.c.bf16 %v1850, %v1850
  %v1853 = vpack.c.bf16 %v1851, %v1851
  %v1854 = vpack.c.bf16 %v1728, %v1728
  %v1855 = vpack.c.bf16 %v1731, %v1731
  %v1857 = vsel %vm349, %v1852, 0
  %v1860 = vsel %vm471, %v1854, 0
  %1862 = vmatprep.subr.bf16.mxu0 0
  %1863 = vmatpush1.bf16.msra.mxu0 %v1860
  %1864 = vmatprep.subr.bf16.mxu0 0
  %1865 = vmatpush1.bf16.msra.mxu0 0
  %1866 = vmatprep.subr.bf16.mxu0 0
  %1867 = vmatpush1.bf16.msra.mxu0 0
  %1868 = vmatprep.subr.bf16.mxu0 0
  %1869 = vmatpush1.bf16.msra.mxu0 0
  %1870 = vmatprep.subr.bf16.mxu0 0
  %1871 = vmatpush1.bf16.msra.mxu0 0
  %1872 = vmatprep.subr.bf16.mxu0 0
  %1873 = vmatpush1.bf16.msra.mxu0 0
  %1874 = vmatprep.subr.bf16.mxu0 0
  %1875 = vmatpush1.bf16.msra.mxu0 0
  %1876 = vmatprep.subr.bf16.mxu0 0
  %1877 = vmatpush1.bf16.msra.mxu0 0
  %1878 = vmatprep.subr.bf16.mxu0 0
  %1879 = vmatpush1.bf16.msra.mxu0 0
  %1880 = vmatprep.subr.bf16.mxu0 0
  %1881 = vmatpush1.bf16.msra.mxu0 0
  %1882 = vmatprep.subr.bf16.mxu0 0
  %1883 = vmatpush1.bf16.msra.mxu0 0
  %1884 = vmatprep.subr.bf16.mxu0 0
  %1885 = vmatpush1.bf16.msra.mxu0 0
  %1886 = vmatprep.subr.bf16.mxu0 0
  %1887 = vmatpush1.bf16.msra.mxu0 0
  %1888 = vmatprep.subr.bf16.mxu0 0
  %1889 = vmatpush1.bf16.msra.mxu0 0
  %1890 = vmatprep.subr.bf16.mxu0 0
  %1891 = vmatpush1.bf16.msra.mxu0 0
  %1892 = vmatprep.subr.bf16.mxu0 0
  %1893 = vmatpush1.bf16.msra.mxu0 0
  %1894 = vmatprep.mubr.bf16.mxu0 0
  %1895 = vmatmul.mubr.bf16.gmra.mrb[0].mxu0 %v1857
  %v1896 = vpop.f32.mrb[0].mxu0
  %v1897 = vadd.f32 0.0, %v1896
  %v1898 = vpop.f32.mrb[0].mxu0
  %v1899 = vpop.f32.mrb[0].mxu0
  %v1900 = vpop.f32.mrb[0].mxu0
  %1901 = vdwg.mxu0
  %v1903 = vsel %vm349, %v1853, 0
  %v1906 = vsel %vm471, %v1855, 0
  %1908 = vmatprep.subr.bf16.mxu0 0
  %1909 = vmatpush1.bf16.msra.mxu0 %v1906
  %1910 = vmatprep.subr.bf16.mxu0 0
  %1911 = vmatpush1.bf16.msra.mxu0 0
  %1912 = vmatprep.subr.bf16.mxu0 0
  %1913 = vmatpush1.bf16.msra.mxu0 0
  %1914 = vmatprep.subr.bf16.mxu0 0
  %1915 = vmatpush1.bf16.msra.mxu0 0
  %1916 = vmatprep.subr.bf16.mxu0 0
  %1917 = vmatpush1.bf16.msra.mxu0 0
  %1918 = vmatprep.subr.bf16.mxu0 0
  %1919 = vmatpush1.bf16.msra.mxu0 0
  %1920 = vmatprep.subr.bf16.mxu0 0
  %1921 = vmatpush1.bf16.msra.mxu0 0
  %1922 = vmatprep.subr.bf16.mxu0 0
  %1923 = vmatpush1.bf16.msra.mxu0 0
  %1924 = vmatprep.subr.bf16.mxu0 0
  %1925 = vmatpush1.bf16.msra.mxu0 0
  %1926 = vmatprep.subr.bf16.mxu0 0
  %1927 = vmatpush1.bf16.msra.mxu0 0
  %1928 = vmatprep.subr.bf16.mxu0 0
  %1929 = vmatpush1.bf16.msra.mxu0 0
  %1930 = vmatprep.subr.bf16.mxu0 0
  %1931 = vmatpush1.bf16.msra.mxu0 0
  %1932 = vmatprep.subr.bf16.mxu0 0
  %1933 = vmatpush1.bf16.msra.mxu0 0
  %1934 = vmatprep.subr.bf16.mxu0 0
  %1935 = vmatpush1.bf16.msra.mxu0 0
  %1936 = vmatprep.subr.bf16.mxu0 0
  %1937 = vmatpush1.bf16.msra.mxu0 0
  %1938 = vmatprep.subr.bf16.mxu0 0
  %1939 = vmatpush1.bf16.msra.mxu0 0
  %1940 = vmatprep.mubr.bf16.mxu0 0
  %1941 = vmatmul.mubr.bf16.gmra.mrb[0].mxu0 %v1903
  %v1942 = vpop.f32.mrb[0].mxu0
  %v1943 = vadd.f32 0.0, %v1942
  %v1944 = vpop.f32.mrb[0].mxu0
  %v1945 = vpop.f32.mrb[0].mxu0
  %v1946 = vpop.f32.mrb[0].mxu0
  %1947 = vdwg.mxu0
  %v1948 = vpack.c.bf16 %v1943, %v1897
  %s1949 = scalar_lea.vmem %s10, 12
  %v1950 = vld [vmem:[%s1949] sm:$0xf]
  %v1952 = vsel %vm349, %v1948, 0
  %v1955 = vsel %vm471, %v1950, 0
  %1957 = vmatprep.subr.bf16.mxu0 0
  %1958 = vmatpush1.bf16.msra.mxu0 %v1955
  %1959 = vmatprep.subr.bf16.mxu0 0
  %1960 = vmatpush1.bf16.msra.mxu0 0
  %1961 = vmatprep.subr.bf16.mxu0 0
  %1962 = vmatpush1.bf16.msra.mxu0 0
  %1963 = vmatprep.subr.bf16.mxu0 0
  %1964 = vmatpush1.bf16.msra.mxu0 0
  %1965 = vmatprep.subr.bf16.mxu0 0
  %1966 = vmatpush1.bf16.msra.mxu0 0
  %1967 = vmatprep.subr.bf16.mxu0 0
  %1968 = vmatpush1.bf16.msra.mxu0 0
  %1969 = vmatprep.subr.bf16.mxu0 0
  %1970 = vmatpush1.bf16.msra.mxu0 0
  %1971 = vmatprep.subr.bf16.mxu0 0
  %1972 = vmatpush1.bf16.msra.mxu0 0
  %1973 = vmatprep.subr.bf16.mxu0 0
  %1974 = vmatpush1.bf16.msra.mxu0 0
  %1975 = vmatprep.subr.bf16.mxu0 0
  %1976 = vmatpush1.bf16.msra.mxu0 0
  %1977 = vmatprep.subr.bf16.mxu0 0
  %1978 = vmatpush1.bf16.msra.mxu0 0
  %1979 = vmatprep.subr.bf16.mxu0 0
  %1980 = vmatpush1.bf16.msra.mxu0 0
  %1981 = vmatprep.subr.bf16.mxu0 0
  %1982 = vmatpush1.bf16.msra.mxu0 0
  %1983 = vmatprep.subr.bf16.mxu0 0
  %1984 = vmatpush1.bf16.msra.mxu0 0
  %1985 = vmatprep.subr.bf16.mxu0 0
  %1986 = vmatpush1.bf16.msra.mxu0 0
  %1987 = vmatprep.subr.bf16.mxu0 0
  %1988 = vmatpush1.bf16.msra.mxu0 0
  %1989 = vmatprep.mubr.bf16.mxu0 0
  %1990 = vmatmul.mubr.bf16.gmra.mrb[0].mxu0 %v1952
  %v1991 = vpop.f32.mrb[0].mxu0
  %v1992 = vadd.f32 0.0, %v1991
  %v1993 = vpop.f32.mrb[0].mxu0
  %v1994 = vpop.f32.mrb[0].mxu0
  %v1995 = vadd.f32 0.0, %v1994
  %v1996 = vpop.f32.mrb[0].mxu0
  %1997 = vdwg.mxu0
  %v1998 = vadd.f32 %v1534, %v1992
  %v1999 = vadd.f32 %v1535, %v1995
  %v2000 = vadd.f32 %v74, %v1998
  %v2001 = vadd.f32 %v75, %v1999
  %v2002 = vld [vmem:[%s11] sm:$0x1]
  %v2004 = vlaneseq
  %v2005 = vshrl.u32 %v2004, 7
  %v2006 = vsub.s32 0, %v2005
  %v2007 = vrot.slane %v2002, %v2006
  %v2009 = vadd.f32 %v2000, %v2007
  %v2010 = vadd.f32 %v2001, %v2007
  %v2011 = vld [vmem:[%s12] sm:$0x1]
  %v2012 = vld [vmem:[%s13] sm:$0x1]
  %v2013 = vsel %vm105, %v2009, 0.0
  %2014 = vadd.xlane.f32.xlu0 %v2013
  %v2015 = vpop.xlane.xlu0 %2014
  %v2016 = vsel %vm105, %v2010, 0.0
  %2017 = vadd.xlane.f32.xlu0 %v2016
  %v2018 = vpop.xlane.xlu0 %2017
  %v2019 = vmul.f32 %v2015, %v112
  %v2020 = vmul.f32 %v2018, %v112
  %v2021 = vsub.f32 %v2009, %v2019
  %v2022 = vsub.f32 %v2010, %v2020
  %v2023 = vmul.f32 %v2021, %v2021
  %v2024 = vmul.f32 %v2022, %v2022
  %v2025 = vsel %vm105, %v2023, 0.0
  %2026 = vadd.xlane.f32.xlu0 %v2025
  %v2027 = vpop.xlane.xlu0 %2026
  %v2028 = vsel %vm105, %v2024, 0.0
  %2029 = vadd.xlane.f32.xlu0 %v2028
  %v2030 = vpop.xlane.xlu0 %2029
  %v2031 = vmul.f32 %v2027, %v112
  %v2032 = vmul.f32 %v2030, %v112
  %v2033 = vadd.f32 %v2031, 1e-05
  %v2034 = vadd.f32 %v2032, 1e-05
  %v2035 = vrsqrt.pop %v2033
  %v2036 = vrsqrt.pop %v2034
  %v2037 = vmul.f32 %v2021, %v2035
  %v2038 = vmul.f32 %v2022, %v2036
  %v2040 = vlaneseq
  %v2041 = vshrl.u32 %v2040, 7
  %v2042 = vsub.s32 0, %v2041
  %v2043 = vrot.slane %v2011, %v2042
  %v2045 = vmul.f32 %v2037, %v2043
  %v2046 = vmul.f32 %v2038, %v2043
  %v2048 = vlaneseq
  %v2049 = vshrl.u32 %v2048, 7
  %v2050 = vsub.s32 0, %v2049
  %v2051 = vrot.slane %v2012, %v2050
  %v2053 = vadd.f32 %v2045, %v2051
  %v2054 = vadd.f32 %v2046, %v2051
  %v2055 = vld [vmem:[%s14] sm:$0xf]
  %v2056 = vld [vmem:[%s14 + $0x4] sm:$0xf]
  %v2057 = vld [vmem:[%s14 + $0x8] sm:$0xf]
  %v2058 = vld [vmem:[%s14 + $0xc] sm:$0xf]
  %v2059 = vpack.c.bf16 %v2054, %v2053
  %v2060 = vld [vmem:[%s15] sm:$0x1]
  %v2062 = vlaneseq
  %v2063 = vshrl.u32 %v2062, 7
  %v2064 = vsub.s32 0, %v2063
  %v2065 = vrot.slane %v2060, %v2064
  %v2071 = vunpack.c.l.b16 %v2055
  %v2072 = vunpack.c.l.b16 %v2056
  %v2073 = vunpack.c.l.b16 %v2057
  %v2074 = vunpack.c.l.b16 %v2058
  %v2075 = vpack.c.b16 %v2072, %v2071
  %v2076 = vpack.c.b16 %v2074, %v2073
  %v2080 = vsel %vm105, %v2059, 0
  %2082 = vmatprep.subr.bf16.mxu0 0
  %2083 = vmatpush1.bf16.msra.mxu0 %v2075
  %2084 = vmatprep.subr.bf16.mxu0 0
  %2085 = vmatpush1.bf16.msra.mxu0 %v2076
  %2086 = vmatprep.subr.bf16.mxu0 0
  %2087 = vmatpush1.bf16.msra.mxu0 0
  %2088 = vmatprep.subr.bf16.mxu0 0
  %2089 = vmatpush1.bf16.msra.mxu0 0
  %2090 = vmatprep.subr.bf16.mxu0 0
  %2091 = vmatpush1.bf16.msra.mxu0 0
  %2092 = vmatprep.subr.bf16.mxu0 0
  %2093 = vmatpush1.bf16.msra.mxu0 0
  %2094 = vmatprep.subr.bf16.mxu0 0
  %2095 = vmatpush1.bf16.msra.mxu0 0
  %2096 = vmatprep.subr.bf16.mxu0 0
  %2097 = vmatpush1.bf16.msra.mxu0 0
  %2098 = vmatprep.subr.bf16.mxu0 0
  %2099 = vmatpush1.bf16.msra.mxu0 0
  %2100 = vmatprep.subr.bf16.mxu0 0
  %2101 = vmatpush1.bf16.msra.mxu0 0
  %2102 = vmatprep.subr.bf16.mxu0 0
  %2103 = vmatpush1.bf16.msra.mxu0 0
  %2104 = vmatprep.subr.bf16.mxu0 0
  %2105 = vmatpush1.bf16.msra.mxu0 0
  %2106 = vmatprep.subr.bf16.mxu0 0
  %2107 = vmatpush1.bf16.msra.mxu0 0
  %2108 = vmatprep.subr.bf16.mxu0 0
  %2109 = vmatpush1.bf16.msra.mxu0 0
  %2110 = vmatprep.subr.bf16.mxu0 0
  %2111 = vmatpush1.bf16.msra.mxu0 0
  %2112 = vmatprep.subr.bf16.mxu0 0
  %2113 = vmatpush1.bf16.msra.mxu0 0
  %2114 = vmatprep.mubr.bf16.mxu0 0
  %2115 = vmatmul.mubr.bf16.gmra.mrb[0].mxu0 %v2080
  %v2116 = vpop.f32.mrb[0].mxu0
  %v2117 = vadd.f32 %v2065, %v2116
  %v2118 = vpop.f32.mrb[0].mxu0
  %v2119 = vpop.f32.mrb[0].mxu0
  %v2120 = vadd.f32 %v2065, %v2119
  %v2121 = vpop.f32.mrb[0].mxu0
  %2122 = vdwg.mxu0
  %v2123 = vmul.f32 %v2117, %v2117
  %v2124 = vmul.f32 %v2120, %v2120
  %v2125 = vmul.f32 %v2117, %v2123
  %v2126 = vmul.f32 %v2120, %v2124
  %v2127 = vmul.f32 %v2125, 0.044715
  %v2128 = vmul.f32 %v2126, 0.044715
  %v2129 = vadd.f32 %v2117, %v2127
  %v2130 = vadd.f32 %v2120, %v2128
  %v2131 = vmul.f32 %v2129, 0.7978846
  %v2132 = vmul.f32 %v2130, 0.7978846
  %v2133 = vtanh.pop %v2131
  %v2134 = vtanh.pop %v2132
  %v2135 = vadd.f32 %v2133, 1.0
  %v2136 = vadd.f32 %v2134, 1.0
  %v2137 = vmul.f32 %v2135, 0.5
  %v2138 = vmul.f32 %v2136, 0.5
  %v2139 = vmul.f32 %v2117, %v2137
  %v2140 = vmul.f32 %v2120, %v2138
  %v2141 = vld [vmem:[%s16] sm:$0xf]
  %v2142 = vld [vmem:[%s16 + $0x4] sm:$0xf]
  %v2143 = vld [vmem:[%s16 + $0x8] sm:$0xf]
  %v2144 = vld [vmem:[%s16 + $0xc] sm:$0xf]
  %v2145 = vld [vmem:[%s16 + $0x10] sm:$0xf]
  %v2146 = vld [vmem:[%s16 + $0x14] sm:$0xf]
  %v2147 = vld [vmem:[%s16 + $0x18] sm:$0xf]
  %v2148 = vld [vmem:[%s16 + $0x1c] sm:$0xf]
  %v2149 = vld [vmem:[%s16 + $0x20] sm:$0xf]
  %v2150 = vld [vmem:[%s16 + $0x24] sm:$0xf]
  %v2151 = vld [vmem:[%s16 + $0x28] sm:$0xf]
  %v2152 = vld [vmem:[%s16 + $0x2c] sm:$0xf]
  %v2153 = vld [vmem:[%s16 + $0x30] sm:$0xf]
  %v2154 = vld [vmem:[%s16 + $0x34] sm:$0xf]
  %v2155 = vld [vmem:[%s16 + $0x38] sm:$0xf]
  %v2156 = vld [vmem:[%s16 + $0x3c] sm:$0xf]
  %v2157 = vpack.c.bf16 %v2140, %v2139
  %v2158 = vld [vmem:[%s17] sm:$0x1]
  %v2160 = vlaneseq
  %v2161 = vshrl.u32 %v2160, 7
  %v2162 = vsub.s32 0, %v2161
  %v2163 = vrot.slane %v2158, %v2162
  %v2181 = vunpack.c.l.b16 %v2141
  %v2182 = vunpack.c.l.b16 %v2142
  %v2183 = vunpack.c.l.b16 %v2143
  %v2184 = vunpack.c.l.b16 %v2144
  %v2185 = vunpack.c.l.b16 %v2145
  %v2186 = vunpack.c.l.b16 %v2146
  %v2187 = vunpack.c.l.b16 %v2147
  %v2188 = vunpack.c.l.b16 %v2148
  %v2189 = vunpack.c.l.b16 %v2149
  %v2190 = vunpack.c.l.b16 %v2150
  %v2191 = vunpack.c.l.b16 %v2151
  %v2192 = vunpack.c.l.b16 %v2152
  %v2193 = vunpack.c.l.b16 %v2153
  %v2194 = vunpack.c.l.b16 %v2154
  %v2195 = vunpack.c.l.b16 %v2155
  %v2196 = vunpack.c.l.b16 %v2156
  %v2197 = vpack.c.b16 %v2182, %v2181
  %v2198 = vpack.c.b16 %v2184, %v2183
  %v2199 = vpack.c.b16 %v2186, %v2185
  %v2200 = vpack.c.b16 %v2188, %v2187
  %v2201 = vpack.c.b16 %v2190, %v2189
  %v2202 = vpack.c.b16 %v2192, %v2191
  %v2203 = vpack.c.b16 %v2194, %v2193
  %v2204 = vpack.c.b16 %v2196, %v2195
  %2213 = vmatprep.subr.bf16.mxu0 0
  %2214 = vmatpush1.bf16.msra.mxu0 %v2197
  %2215 = vmatprep.subr.bf16.mxu0 0
  %2216 = vmatpush1.bf16.msra.mxu0 %v2198
  %2217 = vmatprep.subr.bf16.mxu0 0
  %2218 = vmatpush1.bf16.msra.mxu0 %v2199
  %2219 = vmatprep.subr.bf16.mxu0 0
  %2220 = vmatpush1.bf16.msra.mxu0 %v2200
  %2221 = vmatprep.subr.bf16.mxu0 0
  %2222 = vmatpush1.bf16.msra.mxu0 %v2201
  %2223 = vmatprep.subr.bf16.mxu0 0
  %2224 = vmatpush1.bf16.msra.mxu0 %v2202
  %2225 = vmatprep.subr.bf16.mxu0 0
  %2226 = vmatpush1.bf16.msra.mxu0 %v2203
  %2227 = vmatprep.subr.bf16.mxu0 0
  %2228 = vmatpush1.bf16.msra.mxu0 %v2204
  %2229 = vmatprep.subr.bf16.mxu0 0
  %2230 = vmatpush1.bf16.msra.mxu0 0
  %2231 = vmatprep.subr.bf16.mxu0 0
  %2232 = vmatpush1.bf16.msra.mxu0 0
  %2233 = vmatprep.subr.bf16.mxu0 0
  %2234 = vmatpush1.bf16.msra.mxu0 0
  %2235 = vmatprep.subr.bf16.mxu0 0
  %2236 = vmatpush1.bf16.msra.mxu0 0
  %2237 = vmatprep.subr.bf16.mxu0 0
  %2238 = vmatpush1.bf16.msra.mxu0 0
  %2239 = vmatprep.subr.bf16.mxu0 0
  %2240 = vmatpush1.bf16.msra.mxu0 0
  %2241 = vmatprep.subr.bf16.mxu0 0
  %2242 = vmatpush1.bf16.msra.mxu0 0
  %2243 = vmatprep.subr.bf16.mxu0 0
  %2244 = vmatpush1.bf16.msra.mxu0 0
  %2245 = vmatprep.mubr.bf16.mxu0 0
  %2246 = vmatmul.mubr.bf16.gmra.mrb[0].mxu0 %v2157
  %v2247 = vpop.f32.mrb[0].mxu0
  %v2248 = vadd.f32 %v2163, %v2247
  %v2249 = vpop.f32.mrb[0].mxu0
  %v2250 = vpop.f32.mrb[0].mxu0
  %v2251 = vadd.f32 %v2163, %v2250
  %v2252 = vpop.f32.mrb[0].mxu0
  %2253 = vdwg.mxu0
  %v2254 = vadd.f32 %v2009, %v2248
  %v2255 = vadd.f32 %v2010, %v2251
  %s2256 = scalar_lea.vmem %s2, 1
  %v2257 = vld [vmem:[%s2256] sm:$0x1]
  %s2258 = scalar_lea.vmem %s3, 1
  %v2259 = vld [vmem:[%s2258] sm:$0x1]
  %v2260 = vsel %vm105, %v2254, 0.0
  %2261 = vadd.xlane.f32.xlu0 %v2260
  %v2262 = vpop.xlane.xlu0 %2261
  %v2263 = vsel %vm105, %v2255, 0.0
  %2264 = vadd.xlane.f32.xlu0 %v2263
  %v2265 = vpop.xlane.xlu0 %2264
  %v2266 = vmul.f32 %v2262, %v112
  %v2267 = vmul.f32 %v2265, %v112
  %v2268 = vsub.f32 %v2254, %v2266
  %v2269 = vsub.f32 %v2255, %v2267
  %v2270 = vmul.f32 %v2268, %v2268
  %v2271 = vmul.f32 %v2269, %v2269
  %v2272 = vsel %vm105, %v2270, 0.0
  %2273 = vadd.xlane.f32.xlu0 %v2272
  %v2274 = vpop.xlane.xlu0 %2273
  %v2275 = vsel %vm105, %v2271, 0.0
  %2276 = vadd.xlane.f32.xlu0 %v2275
  %v2277 = vpop.xlane.xlu0 %2276
  %v2278 = vmul.f32 %v2274, %v112
  %v2279 = vmul.f32 %v2277, %v112
  %v2280 = vadd.f32 %v2278, 1e-05
  %v2281 = vadd.f32 %v2279, 1e-05
  %v2282 = vrsqrt.pop %v2280
  %v2283 = vrsqrt.pop %v2281
  %v2284 = vmul.f32 %v2268, %v2282
  %v2285 = vmul.f32 %v2269, %v2283
  %v2287 = vlaneseq
  %v2288 = vshrl.u32 %v2287, 7
  %v2289 = vsub.s32 0, %v2288
  %v2290 = vrot.slane %v2257, %v2289
  %v2292 = vmul.f32 %v2284, %v2290
  %v2293 = vmul.f32 %v2285, %v2290
  %v2295 = vlaneseq
  %v2296 = vshrl.u32 %v2295, 7
  %v2297 = vsub.s32 0, %v2296
  %v2298 = vrot.slane %v2259, %v2297
  %v2300 = vadd.f32 %v2292, %v2298
  %v2301 = vadd.f32 %v2293, %v2298
  %v2302 = vpack.c.bf16 %v2301, %v2300
  %s2303 = scalar_lea.vmem %s4, 64
  %v2304 = vld [vmem:[%s2303] sm:$0xf]
  %v2305 = vld [vmem:[%s2303 + $0x4] sm:$0xf]
  %v2306 = vld [vmem:[%s2303 + $0x8] sm:$0xf]
  %v2307 = vld [vmem:[%s2303 + $0xc] sm:$0xf]
  %s2308 = scalar_lea.vmem %s5, 4
  %v2309 = vld [vmem:[%s2308] sm:$0x1]
  %v2311 = vlaneseq
  %v2312 = vshrl.u32 %v2311, 7
  %v2313 = vsub.s32 0, %v2312
  %v2314 = vrot.slane %v2309, %v2313
  %v2320 = vunpack.c.l.b16 %v2304
  %v2321 = vunpack.c.l.b16 %v2305
  %v2322 = vunpack.c.l.b16 %v2306
  %v2323 = vunpack.c.l.b16 %v2307
  %v2324 = vpack.c.b16 %v2321, %v2320
  %v2325 = vpack.c.b16 %v2323, %v2322
  %v2329 = vsel %vm105, %v2302, 0
  %2331 = vmatprep.subr.bf16.mxu0 0
  %2332 = vmatpush1.bf16.msra.mxu0 %v2324
  %2333 = vmatprep.subr.bf16.mxu0 0
  %2334 = vmatpush1.bf16.msra.mxu0 %v2325
  %2335 = vmatprep.subr.bf16.mxu0 0
  %2336 = vmatpush1.bf16.msra.mxu0 0
  %2337 = vmatprep.subr.bf16.mxu0 0
  %2338 = vmatpush1.bf16.msra.mxu0 0
  %2339 = vmatprep.subr.bf16.mxu0 0
  %2340 = vmatpush1.bf16.msra.mxu0 0
  %2341 = vmatprep.subr.bf16.mxu0 0
  %2342 = vmatpush1.bf16.msra.mxu0 0
  %2343 = vmatprep.subr.bf16.mxu0 0
  %2344 = vmatpush1.bf16.msra.mxu0 0
  %2345 = vmatprep.subr.bf16.mxu0 0
  %2346 = vmatpush1.bf16.msra.mxu0 0
  %2347 = vmatprep.subr.bf16.mxu0 0
  %2348 = vmatpush1.bf16.msra.mxu0 0
  %2349 = vmatprep.subr.bf16.mxu0 0
  %2350 = vmatpush1.bf16.msra.mxu0 0
  %2351 = vmatprep.subr.bf16.mxu0 0
  %2352 = vmatpush1.bf16.msra.mxu0 0
  %2353 = vmatprep.subr.bf16.mxu0 0
  %2354 = vmatpush1.bf16.msra.mxu0 0
  %2355 = vmatprep.subr.bf16.mxu0 0
  %2356 = vmatpush1.bf16.msra.mxu0 0
  %2357 = vmatprep.subr.bf16.mxu0 0
  %2358 = vmatpush1.bf16.msra.mxu0 0
  %2359 = vmatprep.subr.bf16.mxu0 0
  %2360 = vmatpush1.bf16.msra.mxu0 0
  %2361 = vmatprep.subr.bf16.mxu0 0
  %2362 = vmatpush1.bf16.msra.mxu0 0
  %2363 = vmatprep.mubr.bf16.mxu0 0
  %2364 = vmatmul.mubr.bf16.gmra.mrb[0].mxu0 %v2329
  %v2365 = vpop.f32.mrb[0].mxu0
  %v2366 = vadd.f32 %v2314, %v2365
  %v2367 = vpop.f32.mrb[0].mxu0
  %v2368 = vpop.f32.mrb[0].mxu0
  %v2369 = vadd.f32 %v2314, %v2368
  %v2370 = vpop.f32.mrb[0].mxu0
  %2371 = vdwg.mxu0
  %s2372 = scalar_lea.vmem %s6, 64
  %v2373 = vld [vmem:[%s2372] sm:$0xf]
  %v2374 = vld [vmem:[%s2372 + $0x4] sm:$0xf]
  %v2375 = vld [vmem:[%s2372 + $0x8] sm:$0xf]
  %v2376 = vld [vmem:[%s2372 + $0xc] sm:$0xf]
  %s2377 = scalar_lea.vmem %s7, 4
  %v2378 = vld [vmem:[%s2377] sm:$0x1]
  %v2380 = vlaneseq
  %v2381 = vshrl.u32 %v2380, 7
  %v2382 = vsub.s32 0, %v2381
  %v2383 = vrot.slane %v2378, %v2382
  %v2389 = vunpack.c.l.b16 %v2373
  %v2390 = vunpack.c.l.b16 %v2374
  %v2391 = vunpack.c.l.b16 %v2375
  %v2392 = vunpack.c.l.b16 %v2376
  %v2393 = vpack.c.b16 %v2390, %v2389
  %v2394 = vpack.c.b16 %v2392, %v2391
  %2397 = vmatprep.subr.bf16.mxu0 0
  %2398 = vmatpush1.bf16.msra.mxu0 %v2393
  %2399 = vmatprep.subr.bf16.mxu0 0
  %2400 = vmatpush1.bf16.msra.mxu0 %v2394
  %2401 = vmatprep.subr.bf16.mxu0 0
  %2402 = vmatpush1.bf16.msra.mxu0 0
  %2403 = vmatprep.subr.bf16.mxu0 0
  %2404 = vmatpush1.bf16.msra.mxu0 0
  %2405 = vmatprep.subr.bf16.mxu0 0
  %2406 = vmatpush1.bf16.msra.mxu0 0
  %2407 = vmatprep.subr.bf16.mxu0 0
  %2408 = vmatpush1.bf16.msra.mxu0 0
  %2409 = vmatprep.subr.bf16.mxu0 0
  %2410 = vmatpush1.bf16.msra.mxu0 0
  %2411 = vmatprep.subr.bf16.mxu0 0
  %2412 = vmatpush1.bf16.msra.mxu0 0
  %2413 = vmatprep.subr.bf16.mxu0 0
  %2414 = vmatpush1.bf16.msra.mxu0 0
  %2415 = vmatprep.subr.bf16.mxu0 0
  %2416 = vmatpush1.bf16.msra.mxu0 0
  %2417 = vmatprep.subr.bf16.mxu0 0
  %2418 = vmatpush1.bf16.msra.mxu0 0
  %2419 = vmatprep.subr.bf16.mxu0 0
  %2420 = vmatpush1.bf16.msra.mxu0 0
  %2421 = vmatprep.subr.bf16.mxu0 0
  %2422 = vmatpush1.bf16.msra.mxu0 0
  %2423 = vmatprep.subr.bf16.mxu0 0
  %2424 = vmatpush1.bf16.msra.mxu0 0
  %2425 = vmatprep.subr.bf16.mxu0 0
  %2426 = vmatpush1.bf16.msra.mxu0 0
  %2427 = vmatprep.subr.bf16.mxu0 0
  %2428 = vmatpush1.bf16.msra.mxu0 0
  %2429 = vmatprep.mubr.bf16.mxu0 0
  %2430 = vmatmul.mubr.bf16.gmra.mrb[0].mxu0 %v2329
  %v2431 = vpop.f32.mrb[0].mxu0
  %v2432 = vadd.f32 %v2383, %v2431
  %v2433 = vpop.f32.mrb[0].mxu0
  %v2434 = vpop.f32.mrb[0].mxu0
  %v2435 = vadd.f32 %v2383, %v2434
  %v2436 = vpop.f32.mrb[0].mxu0
  %2437 = vdwg.mxu0
  %s2438 = scalar_lea.vmem %s8, 64
  %v2439 = vld [vmem:[%s2438] sm:$0xf]
  %v2440 = vld [vmem:[%s2438 + $0x4] sm:$0xf]
  %v2441 = vld [vmem:[%s2438 + $0x8] sm:$0xf]
  %v2442 = vld [vmem:[%s2438 + $0xc] sm:$0xf]
  %s2443 = scalar_lea.vmem %s9, 4
  %v2444 = vld [vmem:[%s2443] sm:$0x1]
  %v2446 = vlaneseq
  %v2447 = vshrl.u32 %v2446, 7
  %v2448 = vsub.s32 0, %v2447
  %v2449 = vrot.slane %v2444, %v2448
  %v2455 = vunpack.c.l.b16 %v2439
  %v2456 = vunpack.c.l.b16 %v2440
  %v2457 = vunpack.c.l.b16 %v2441
  %v2458 = vunpack.c.l.b16 %v2442
  %v2459 = vpack.c.b16 %v2456, %v2455
  %v2460 = vpack.c.b16 %v2458, %v2457
  %2463 = vmatprep.subr.bf16.mxu0 0
  %2464 = vmatpush1.bf16.msra.mxu0 %v2459
  %2465 = vmatprep.subr.bf16.mxu0 0
  %2466 = vmatpush1.bf16.msra.mxu0 %v2460
  %2467 = vmatprep.subr.bf16.mxu0 0
  %2468 = vmatpush1.bf16.msra.mxu0 0
  %2469 = vmatprep.subr.bf16.mxu0 0
  %2470 = vmatpush1.bf16.msra.mxu0 0
  %2471 = vmatprep.subr.bf16.mxu0 0
  %2472 = vmatpush1.bf16.msra.mxu0 0
  %2473 = vmatprep.subr.bf16.mxu0 0
  %2474 = vmatpush1.bf16.msra.mxu0 0
  %2475 = vmatprep.subr.bf16.mxu0 0
  %2476 = vmatpush1.bf16.msra.mxu0 0
  %2477 = vmatprep.subr.bf16.mxu0 0
  %2478 = vmatpush1.bf16.msra.mxu0 0
  %2479 = vmatprep.subr.bf16.mxu0 0
  %2480 = vmatpush1.bf16.msra.mxu0 0
  %2481 = vmatprep.subr.bf16.mxu0 0
  %2482 = vmatpush1.bf16.msra.mxu0 0
  %2483 = vmatprep.subr.bf16.mxu0 0
  %2484 = vmatpush1.bf16.msra.mxu0 0
  %2485 = vmatprep.subr.bf16.mxu0 0
  %2486 = vmatpush1.bf16.msra.mxu0 0
  %2487 = vmatprep.subr.bf16.mxu0 0
  %2488 = vmatpush1.bf16.msra.mxu0 0
  %2489 = vmatprep.subr.bf16.mxu0 0
  %2490 = vmatpush1.bf16.msra.mxu0 0
  %2491 = vmatprep.subr.bf16.mxu0 0
  %2492 = vmatpush1.bf16.msra.mxu0 0
  %2493 = vmatprep.subr.bf16.mxu0 0
  %2494 = vmatpush1.bf16.msra.mxu0 0
  %2495 = vmatprep.mubr.bf16.mxu0 0
  %2496 = vmatmul.mubr.bf16.gmra.mrb[0].mxu0 %v2329
  %v2497 = vpop.f32.mrb[0].mxu0
  %v2498 = vadd.f32 %v2449, %v2497
  %v2499 = vpop.f32.mrb[0].mxu0
  %v2500 = vpop.f32.mrb[0].mxu0
  %v2501 = vadd.f32 %v2449, %v2500
  %v2502 = vpop.f32.mrb[0].mxu0
  %2503 = vdwg.mxu0
  %v2504 = vpack.c.bf16 %v2366, %v2366
  %v2505 = vpack.c.bf16 %v2369, %v2369
  %v2506 = vpack.c.bf16 %v2432, %v2432
  %v2507 = vpack.c.bf16 %v2435, %v2435
  %v2509 = vsel %vm349, %v2504, 0
  %v2512 = vsel %vm349, %v2506, 0
  %2514 = vmatprep.subr.bf16.mxu0 0
  %2515 = vmatpush1.bf16.xpose.msra.mxu0 %v2512
  %2516 = vmatprep.subr.bf16.mxu0 0
  %2517 = vmatpush1.bf16.xpose.msra.mxu0 0
  %2518 = vmatprep.subr.bf16.mxu0 0
  %2519 = vmatpush1.bf16.xpose.msra.mxu0 0
  %2520 = vmatprep.subr.bf16.mxu0 0
  %2521 = vmatpush1.bf16.xpose.msra.mxu0 0
  %2522 = vmatprep.subr.bf16.mxu0 0
  %2523 = vmatpush1.bf16.xpose.msra.mxu0 0
  %2524 = vmatprep.subr.bf16.mxu0 0
  %2525 = vmatpush1.bf16.xpose.msra.mxu0 0
  %2526 = vmatprep.subr.bf16.mxu0 0
  %2527 = vmatpush1.bf16.xpose.msra.mxu0 0
  %2528 = vmatprep.subr.bf16.mxu0 0
  %2529 = vmatpush1.bf16.xpose.msra.mxu0 0
  %2530 = vmatprep.subr.bf16.mxu0 0
  %2531 = vmatpush1.bf16.xpose.msra.mxu0 0
  %2532 = vmatprep.subr.bf16.mxu0 0
  %2533 = vmatpush1.bf16.xpose.msra.mxu0 0
  %2534 = vmatprep.subr.bf16.mxu0 0
  %2535 = vmatpush1.bf16.xpose.msra.mxu0 0
  %2536 = vmatprep.subr.bf16.mxu0 0
  %2537 = vmatpush1.bf16.xpose.msra.mxu0 0
  %2538 = vmatprep.subr.bf16.mxu0 0
  %2539 = vmatpush1.bf16.xpose.msra.mxu0 0
  %2540 = vmatprep.subr.bf16.mxu0 0
  %2541 = vmatpush1.bf16.xpose.msra.mxu0 0
  %2542 = vmatprep.subr.bf16.mxu0 0
  %2543 = vmatpush1.bf16.xpose.msra.mxu0 0
  %2544 = vmatprep.subr.bf16.mxu0 0
  %2545 = vmatpush1.bf16.xpose.msra.mxu0 0
  %2546 = vmatprep.mubr.bf16.mxu0 0
  %2547 = vmatmul.mubr.bf16.gmra.mrb[0].mxu0 %v2509
  %v2548 = vpop.f32.mrb[0].mxu0
  %v2549 = vadd.f32 %v101, %v2548
  %v2550 = vpop.f32.mrb[0].mxu0
  %v2551 = vpop.f32.mrb[0].mxu0
  %v2552 = vpop.f32.mrb[0].mxu0
  %2553 = vdwg.mxu0
  %v2555 = vsel %vm349, %v2505, 0
  %v2558 = vsel %vm349, %v2507, 0
  %2560 = vmatprep.subr.bf16.mxu0 0
  %2561 = vmatpush1.bf16.xpose.msra.mxu0 %v2558
  %2562 = vmatprep.subr.bf16.mxu0 0
  %2563 = vmatpush1.bf16.xpose.msra.mxu0 0
  %2564 = vmatprep.subr.bf16.mxu0 0
  %2565 = vmatpush1.bf16.xpose.msra.mxu0 0
  %2566 = vmatprep.subr.bf16.mxu0 0
  %2567 = vmatpush1.bf16.xpose.msra.mxu0 0
  %2568 = vmatprep.subr.bf16.mxu0 0
  %2569 = vmatpush1.bf16.xpose.msra.mxu0 0
  %2570 = vmatprep.subr.bf16.mxu0 0
  %2571 = vmatpush1.bf16.xpose.msra.mxu0 0
  %2572 = vmatprep.subr.bf16.mxu0 0
  %2573 = vmatpush1.bf16.xpose.msra.mxu0 0
  %2574 = vmatprep.subr.bf16.mxu0 0
  %2575 = vmatpush1.bf16.xpose.msra.mxu0 0
  %2576 = vmatprep.subr.bf16.mxu0 0
  %2577 = vmatpush1.bf16.xpose.msra.mxu0 0
  %2578 = vmatprep.subr.bf16.mxu0 0
  %2579 = vmatpush1.bf16.xpose.msra.mxu0 0
  %2580 = vmatprep.subr.bf16.mxu0 0
  %2581 = vmatpush1.bf16.xpose.msra.mxu0 0
  %2582 = vmatprep.subr.bf16.mxu0 0
  %2583 = vmatpush1.bf16.xpose.msra.mxu0 0
  %2584 = vmatprep.subr.bf16.mxu0 0
  %2585 = vmatpush1.bf16.xpose.msra.mxu0 0
  %2586 = vmatprep.subr.bf16.mxu0 0
  %2587 = vmatpush1.bf16.xpose.msra.mxu0 0
  %2588 = vmatprep.subr.bf16.mxu0 0
  %2589 = vmatpush1.bf16.xpose.msra.mxu0 0
  %2590 = vmatprep.subr.bf16.mxu0 0
  %2591 = vmatpush1.bf16.xpose.msra.mxu0 0
  %2592 = vmatprep.mubr.bf16.mxu0 0
  %2593 = vmatmul.mubr.bf16.gmra.mrb[0].mxu0 %v2555
  %v2594 = vpop.f32.mrb[0].mxu0
  %v2595 = vadd.f32 %v102, %v2594
  %v2596 = vpop.f32.mrb[0].mxu0
  %v2597 = vpop.f32.mrb[0].mxu0
  %v2598 = vpop.f32.mrb[0].mxu0
  %2599 = vdwg.mxu0
  %v2600 = vsel %vm349, %v2549, -inf
  %2601 = vmax.xlane.f32.xlu0 %v2600
  %v2602 = vpop.xlane.xlu0 %2601
  %v2603 = vsel %vm349, %v2595, -inf
  %2604 = vmax.xlane.f32.xlu0 %v2603
  %v2605 = vpop.xlane.xlu0 %2604
  %v2606 = vsub.f32 %v2549, %v2602
  %v2607 = vsub.f32 %v2595, %v2605
  %v2608 = vmul.f32 %v2606, 1.442695
  %v2609 = vpow.pop %v2608
  %v2610 = vmul.f32 %v2607, 1.442695
  %v2611 = vpow.pop %v2610
  %v2612 = vsel %vm349, %v2609, 0.0
  %2613 = vadd.xlane.f32.xlu0 %v2612
  %v2614 = vpop.xlane.xlu0 %2613
  %v2615 = vsel %vm349, %v2611, 0.0
  %2616 = vadd.xlane.f32.xlu0 %v2615
  %v2617 = vpop.xlane.xlu0 %2616
  %v2618 = vrcp.pop %v2614
  %v2619 = vrcp.pop %v2617
  %v2620 = vmul.f32 %v2609, %v2618
  %v2621 = vmul.f32 %v2611, %v2619
  %v2622 = vpack.c.bf16 %v2620, %v2620
  %v2623 = vpack.c.bf16 %v2621, %v2621
  %v2624 = vpack.c.bf16 %v2498, %v2498
  %v2625 = vpack.c.bf16 %v2501, %v2501
  %v2627 = vsel %vm349, %v2622, 0
  %v2630 = vsel %vm471, %v2624, 0
  %2632 = vmatprep.subr.bf16.mxu0 0
  %2633 = vmatpush1.bf16.msra.mxu0 %v2630
  %2634 = vmatprep.subr.bf16.mxu0 0
  %2635 = vmatpush1.bf16.msra.mxu0 0
  %2636 = vmatprep.subr.bf16.mxu0 0
  %2637 = vmatpush1.bf16.msra.mxu0 0
  %2638 = vmatprep.subr.bf16.mxu0 0
  %2639 = vmatpush1.bf16.msra.mxu0 0
  %2640 = vmatprep.subr.bf16.mxu0 0
  %2641 = vmatpush1.bf16.msra.mxu0 0
  %2642 = vmatprep.subr.bf16.mxu0 0
  %2643 = vmatpush1.bf16.msra.mxu0 0
  %2644 = vmatprep.subr.bf16.mxu0 0
  %2645 = vmatpush1.bf16.msra.mxu0 0
  %2646 = vmatprep.subr.bf16.mxu0 0
  %2647 = vmatpush1.bf16.msra.mxu0 0
  %2648 = vmatprep.subr.bf16.mxu0 0
  %2649 = vmatpush1.bf16.msra.mxu0 0
  %2650 = vmatprep.subr.bf16.mxu0 0
  %2651 = vmatpush1.bf16.msra.mxu0 0
  %2652 = vmatprep.subr.bf16.mxu0 0
  %2653 = vmatpush1.bf16.msra.mxu0 0
  %2654 = vmatprep.subr.bf16.mxu0 0
  %2655 = vmatpush1.bf16.msra.mxu0 0
  %2656 = vmatprep.subr.bf16.mxu0 0
  %2657 = vmatpush1.bf16.msra.mxu0 0
  %2658 = vmatprep.subr.bf16.mxu0 0
  %2659 = vmatpush1.bf16.msra.mxu0 0
  %2660 = vmatprep.subr.bf16.mxu0 0
  %2661 = vmatpush1.bf16.msra.mxu0 0
  %2662 = vmatprep.subr.bf16.mxu0 0
  %2663 = vmatpush1.bf16.msra.mxu0 0
  %2664 = vmatprep.mubr.bf16.mxu0 0
  %2665 = vmatmul.mubr.bf16.gmra.mrb[0].mxu0 %v2627
  %v2666 = vpop.f32.mrb[0].mxu0
  %v2667 = vadd.f32 0.0, %v2666
  %v2668 = vpop.f32.mrb[0].mxu0
  %v2669 = vpop.f32.mrb[0].mxu0
  %v2670 = vpop.f32.mrb[0].mxu0
  %2671 = vdwg.mxu0
  %v2673 = vsel %vm349, %v2623, 0
  %v2676 = vsel %vm471, %v2625, 0
  %2678 = vmatprep.subr.bf16.mxu0 0
  %2679 = vmatpush1.bf16.msra.mxu0 %v2676
  %2680 = vmatprep.subr.bf16.mxu0 0
  %2681 = vmatpush1.bf16.msra.mxu0 0
  %2682 = vmatprep.subr.bf16.mxu0 0
  %2683 = vmatpush1.bf16.msra.mxu0 0
  %2684 = vmatprep.subr.bf16.mxu0 0
  %2685 = vmatpush1.bf16.msra.mxu0 0
  %2686 = vmatprep.subr.bf16.mxu0 0
  %2687 = vmatpush1.bf16.msra.mxu0 0
  %2688 = vmatprep.subr.bf16.mxu0 0
  %2689 = vmatpush1.bf16.msra.mxu0 0
  %2690 = vmatprep.subr.bf16.mxu0 0
  %2691 = vmatpush1.bf16.msra.mxu0 0
  %2692 = vmatprep.subr.bf16.mxu0 0
  %2693 = vmatpush1.bf16.msra.mxu0 0
  %2694 = vmatprep.subr.bf16.mxu0 0
  %2695 = vmatpush1.bf16.msra.mxu0 0
  %2696 = vmatprep.subr.bf16.mxu0 0
  %2697 = vmatpush1.bf16.msra.mxu0 0
  %2698 = vmatprep.subr.bf16.mxu0 0
  %2699 = vmatpush1.bf16.msra.mxu0 0
  %2700 = vmatprep.subr.bf16.mxu0 0
  %2701 = vmatpush1.bf16.msra.mxu0 0
  %2702 = vmatprep.subr.bf16.mxu0 0
  %2703 = vmatpush1.bf16.msra.mxu0 0
  %2704 = vmatprep.subr.bf16.mxu0 0
  %2705 = vmatpush1.bf16.msra.mxu0 0
  %2706 = vmatprep.subr.bf16.mxu0 0
  %2707 = vmatpush1.bf16.msra.mxu0 0
  %2708 = vmatprep.subr.bf16.mxu0 0
  %2709 = vmatpush1.bf16.msra.mxu0 0
  %2710 = vmatprep.mubr.bf16.mxu0 0
  %2711 = vmatmul.mubr.bf16.gmra.mrb[0].mxu0 %v2673
  %v2712 = vpop.f32.mrb[0].mxu0
  %v2713 = vadd.f32 0.0, %v2712
  %v2714 = vpop.f32.mrb[0].mxu0
  %v2715 = vpop.f32.mrb[0].mxu0
  %v2716 = vpop.f32.mrb[0].mxu0
  %2717 = vdwg.mxu0
  %v2718 = vpack.c.bf16 %v2713, %v2667
  %s2719 = scalar_lea.vmem %s10, 16
  %v2720 = vld [vmem:[%s2719] sm:$0xf]
  %s2721 = scalar_lea.vmem %s4, 80
  %v2722 = vld [vmem:[%s2721] sm:$0xf]
  %v2723 = vld [vmem:[%s2721 + $0x4] sm:$0xf]
  %v2724 = vld [vmem:[%s2721 + $0x8] sm:$0xf]
  %v2725 = vld [vmem:[%s2721 + $0xc] sm:$0xf]
  %s2726 = scalar_lea.vmem %s5, 5
  %v2727 = vld [vmem:[%s2726] sm:$0x1]
  %v2729 = vlaneseq
  %v2730 = vshrl.u32 %v2729, 7
  %v2731 = vsub.s32 0, %v2730
  %v2732 = vrot.slane %v2727, %v2731
  %v2738 = vunpack.c.l.b16 %v2722
  %v2739 = vunpack.c.l.b16 %v2723
  %v2740 = vunpack.c.l.b16 %v2724
  %v2741 = vunpack.c.l.b16 %v2725
  %v2742 = vpack.c.b16 %v2739, %v2738
  %v2743 = vpack.c.b16 %v2741, %v2740
  %2746 = vmatprep.subr.bf16.mxu0 0
  %2747 = vmatpush1.bf16.msra.mxu0 %v2742
  %2748 = vmatprep.subr.bf16.mxu0 0
  %2749 = vmatpush1.bf16.msra.mxu0 %v2743
  %2750 = vmatprep.subr.bf16.mxu0 0
  %2751 = vmatpush1.bf16.msra.mxu0 0
  %2752 = vmatprep.subr.bf16.mxu0 0
  %2753 = vmatpush1.bf16.msra.mxu0 0
  %2754 = vmatprep.subr.bf16.mxu0 0
  %2755 = vmatpush1.bf16.msra.mxu0 0
  %2756 = vmatprep.subr.bf16.mxu0 0
  %2757 = vmatpush1.bf16.msra.mxu0 0
  %2758 = vmatprep.subr.bf16.mxu0 0
  %2759 = vmatpush1.bf16.msra.mxu0 0
  %2760 = vmatprep.subr.bf16.mxu0 0
  %2761 = vmatpush1.bf16.msra.mxu0 0
  %2762 = vmatprep.subr.bf16.mxu0 0
  %2763 = vmatpush1.bf16.msra.mxu0 0
  %2764 = vmatprep.subr.bf16.mxu0 0
  %2765 = vmatpush1.bf16.msra.mxu0 0
  %2766 = vmatprep.subr.bf16.mxu0 0
  %2767 = vmatpush1.bf16.msra.mxu0 0
  %2768 = vmatprep.subr.bf16.mxu0 0
  %2769 = vmatpush1.bf16.msra.mxu0 0
  %2770 = vmatprep.subr.bf16.mxu0 0
  %2771 = vmatpush1.bf16.msra.mxu0 0
  %2772 = vmatprep.subr.bf16.mxu0 0
  %2773 = vmatpush1.bf16.msra.mxu0 0
  %2774 = vmatprep.subr.bf16.mxu0 0
  %2775 = vmatpush1.bf16.msra.mxu0 0
  %2776 = vmatprep.subr.bf16.mxu0 0
  %2777 = vmatpush1.bf16.msra.mxu0 0
  %2778 = vmatprep.mubr.bf16.mxu0 0
  %2779 = vmatmul.mubr.bf16.gmra.mrb[0].mxu0 %v2329
  %v2780 = vpop.f32.mrb[0].mxu0
  %v2781 = vadd.f32 %v2732, %v2780
  %v2782 = vpop.f32.mrb[0].mxu0
  %v2783 = vpop.f32.mrb[0].mxu0
  %v2784 = vadd.f32 %v2732, %v2783
  %v2785 = vpop.f32.mrb[0].mxu0
  %2786 = vdwg.mxu0
  %s2787 = scalar_lea.vmem %s6, 80
  %v2788 = vld [vmem:[%s2787] sm:$0xf]
  %v2789 = vld [vmem:[%s2787 + $0x4] sm:$0xf]
  %v2790 = vld [vmem:[%s2787 + $0x8] sm:$0xf]
  %v2791 = vld [vmem:[%s2787 + $0xc] sm:$0xf]
  %s2792 = scalar_lea.vmem %s7, 5
  %v2793 = vld [vmem:[%s2792] sm:$0x1]
  %v2795 = vlaneseq
  %v2796 = vshrl.u32 %v2795, 7
  %v2797 = vsub.s32 0, %v2796
  %v2798 = vrot.slane %v2793, %v2797
  %v2804 = vunpack.c.l.b16 %v2788
  %v2805 = vunpack.c.l.b16 %v2789
  %v2806 = vunpack.c.l.b16 %v2790
  %v2807 = vunpack.c.l.b16 %v2791
  %v2808 = vpack.c.b16 %v2805, %v2804
  %v2809 = vpack.c.b16 %v2807, %v2806
  %2812 = vmatprep.subr.bf16.mxu0 0
  %2813 = vmatpush1.bf16.msra.mxu0 %v2808
  %2814 = vmatprep.subr.bf16.mxu0 0
  %2815 = vmatpush1.bf16.msra.mxu0 %v2809
  %2816 = vmatprep.subr.bf16.mxu0 0
  %2817 = vmatpush1.bf16.msra.mxu0 0
  %2818 = vmatprep.subr.bf16.mxu0 0
  %2819 = vmatpush1.bf16.msra.mxu0 0
  %2820 = vmatprep.subr.bf16.mxu0 0
  %2821 = vmatpush1.bf16.msra.mxu0 0
  %2822 = vmatprep.subr.bf16.mxu0 0
  %2823 = vmatpush1.bf16.msra.mxu0 0
  %2824 = vmatprep.subr.bf16.mxu0 0
  %2825 = vmatpush1.bf16.msra.mxu0 0
  %2826 = vmatprep.subr.bf16.mxu0 0
  %2827 = vmatpush1.bf16.msra.mxu0 0
  %2828 = vmatprep.subr.bf16.mxu0 0
  %2829 = vmatpush1.bf16.msra.mxu0 0
  %2830 = vmatprep.subr.bf16.mxu0 0
  %2831 = vmatpush1.bf16.msra.mxu0 0
  %2832 = vmatprep.subr.bf16.mxu0 0
  %2833 = vmatpush1.bf16.msra.mxu0 0
  %2834 = vmatprep.subr.bf16.mxu0 0
  %2835 = vmatpush1.bf16.msra.mxu0 0
  %2836 = vmatprep.subr.bf16.mxu0 0
  %2837 = vmatpush1.bf16.msra.mxu0 0
  %2838 = vmatprep.subr.bf16.mxu0 0
  %2839 = vmatpush1.bf16.msra.mxu0 0
  %2840 = vmatprep.subr.bf16.mxu0 0
  %2841 = vmatpush1.bf16.msra.mxu0 0
  %2842 = vmatprep.subr.bf16.mxu0 0
  %2843 = vmatpush1.bf16.msra.mxu0 0
  %2844 = vmatprep.mubr.bf16.mxu0 0
  %2845 = vmatmul.mubr.bf16.gmra.mrb[0].mxu0 %v2329
  %v2846 = vpop.f32.mrb[0].mxu0
  %v2847 = vadd.f32 %v2798, %v2846
  %v2848 = vpop.f32.mrb[0].mxu0
  %v2849 = vpop.f32.mrb[0].mxu0
  %v2850 = vadd.f32 %v2798, %v2849
  %v2851 = vpop.f32.mrb[0].mxu0
  %2852 = vdwg.mxu0
  %s2853 = scalar_lea.vmem %s8, 80
  %v2854 = vld [vmem:[%s2853] sm:$0xf]
  %v2855 = vld [vmem:[%s2853 + $0x4] sm:$0xf]
  %v2856 = vld [vmem:[%s2853 + $0x8] sm:$0xf]
  %v2857 = vld [vmem:[%s2853 + $0xc] sm:$0xf]
  %s2858 = scalar_lea.vmem %s9, 5
  %v2859 = vld [vmem:[%s2858] sm:$0x1]
  %v2861 = vlaneseq
  %v2862 = vshrl.u32 %v2861, 7
  %v2863 = vsub.s32 0, %v2862
  %v2864 = vrot.slane %v2859, %v2863
  %v2870 = vunpack.c.l.b16 %v2854
  %v2871 = vunpack.c.l.b16 %v2855
  %v2872 = vunpack.c.l.b16 %v2856
  %v2873 = vunpack.c.l.b16 %v2857
  %v2874 = vpack.c.b16 %v2871, %v2870
  %v2875 = vpack.c.b16 %v2873, %v2872
  %2878 = vmatprep.subr.bf16.mxu0 0
  %2879 = vmatpush1.bf16.msra.mxu0 %v2874
  %2880 = vmatprep.subr.bf16.mxu0 0
  %2881 = vmatpush1.bf16.msra.mxu0 %v2875
  %2882 = vmatprep.subr.bf16.mxu0 0
  %2883 = vmatpush1.bf16.msra.mxu0 0
  %2884 = vmatprep.subr.bf16.mxu0 0
  %2885 = vmatpush1.bf16.msra.mxu0 0
  %2886 = vmatprep.subr.bf16.mxu0 0
  %2887 = vmatpush1.bf16.msra.mxu0 0
  %2888 = vmatprep.subr.bf16.mxu0 0
  %2889 = vmatpush1.bf16.msra.mxu0 0
  %2890 = vmatprep.subr.bf16.mxu0 0
  %2891 = vmatpush1.bf16.msra.mxu0 0
  %2892 = vmatprep.subr.bf16.mxu0 0
  %2893 = vmatpush1.bf16.msra.mxu0 0
  %2894 = vmatprep.subr.bf16.mxu0 0
  %2895 = vmatpush1.bf16.msra.mxu0 0
  %2896 = vmatprep.subr.bf16.mxu0 0
  %2897 = vmatpush1.bf16.msra.mxu0 0
  %2898 = vmatprep.subr.bf16.mxu0 0
  %2899 = vmatpush1.bf16.msra.mxu0 0
  %2900 = vmatprep.subr.bf16.mxu0 0
  %2901 = vmatpush1.bf16.msra.mxu0 0
  %2902 = vmatprep.subr.bf16.mxu0 0
  %2903 = vmatpush1.bf16.msra.mxu0 0
  %2904 = vmatprep.subr.bf16.mxu0 0
  %2905 = vmatpush1.bf16.msra.mxu0 0
  %2906 = vmatprep.subr.bf16.mxu0 0
  %2907 = vmatpush1.bf16.msra.mxu0 0
  %2908 = vmatprep.subr.bf16.mxu0 0
  %2909 = vmatpush1.bf16.msra.mxu0 0
  %2910 = vmatprep.mubr.bf16.mxu0 0
  %2911 = vmatmul.mubr.bf16.gmra.mrb[0].mxu0 %v2329
  %v2912 = vpop.f32.mrb[0].mxu0
  %v2913 = vadd.f32 %v2864, %v2912
  %v2914 = vpop.f32.mrb[0].mxu0
  %v2915 = vpop.f32.mrb[0].mxu0
  %v2916 = vadd.f32 %v2864, %v2915
  %v2917 = vpop.f32.mrb[0].mxu0
  %2918 = vdwg.mxu0
  %v2919 = vpack.c.bf16 %v2781, %v2781
  %v2920 = vpack.c.bf16 %v2784, %v2784
  %v2921 = vpack.c.bf16 %v2847, %v2847
  %v2922 = vpack.c.bf16 %v2850, %v2850
  %v2924 = vsel %vm349, %v2919, 0
  %v2927 = vsel %vm349, %v2921, 0
  %2929 = vmatprep.subr.bf16.mxu0 0
  %2930 = vmatpush1.bf16.xpose.msra.mxu0 %v2927
  %2931 = vmatprep.subr.bf16.mxu0 0
  %2932 = vmatpush1.bf16.xpose.msra.mxu0 0
  %2933 = vmatprep.subr.bf16.mxu0 0
  %2934 = vmatpush1.bf16.xpose.msra.mxu0 0
  %2935 = vmatprep.subr.bf16.mxu0 0
  %2936 = vmatpush1.bf16.xpose.msra.mxu0 0
  %2937 = vmatprep.subr.bf16.mxu0 0
  %2938 = vmatpush1.bf16.xpose.msra.mxu0 0
  %2939 = vmatprep.subr.bf16.mxu0 0
  %2940 = vmatpush1.bf16.xpose.msra.mxu0 0
  %2941 = vmatprep.subr.bf16.mxu0 0
  %2942 = vmatpush1.bf16.xpose.msra.mxu0 0
  %2943 = vmatprep.subr.bf16.mxu0 0
  %2944 = vmatpush1.bf16.xpose.msra.mxu0 0
  %2945 = vmatprep.subr.bf16.mxu0 0
  %2946 = vmatpush1.bf16.xpose.msra.mxu0 0
  %2947 = vmatprep.subr.bf16.mxu0 0
  %2948 = vmatpush1.bf16.xpose.msra.mxu0 0
  %2949 = vmatprep.subr.bf16.mxu0 0
  %2950 = vmatpush1.bf16.xpose.msra.mxu0 0
  %2951 = vmatprep.subr.bf16.mxu0 0
  %2952 = vmatpush1.bf16.xpose.msra.mxu0 0
  %2953 = vmatprep.subr.bf16.mxu0 0
  %2954 = vmatpush1.bf16.xpose.msra.mxu0 0
  %2955 = vmatprep.subr.bf16.mxu0 0
  %2956 = vmatpush1.bf16.xpose.msra.mxu0 0
  %2957 = vmatprep.subr.bf16.mxu0 0
  %2958 = vmatpush1.bf16.xpose.msra.mxu0 0
  %2959 = vmatprep.subr.bf16.mxu0 0
  %2960 = vmatpush1.bf16.xpose.msra.mxu0 0
  %2961 = vmatprep.mubr.bf16.mxu0 0
  %2962 = vmatmul.mubr.bf16.gmra.mrb[0].mxu0 %v2924
  %v2963 = vpop.f32.mrb[0].mxu0
  %v2964 = vadd.f32 %v101, %v2963
  %v2965 = vpop.f32.mrb[0].mxu0
  %v2966 = vpop.f32.mrb[0].mxu0
  %v2967 = vpop.f32.mrb[0].mxu0
  %2968 = vdwg.mxu0
  %v2970 = vsel %vm349, %v2920, 0
  %v2973 = vsel %vm349, %v2922, 0
  %2975 = vmatprep.subr.bf16.mxu0 0
  %2976 = vmatpush1.bf16.xpose.msra.mxu0 %v2973
  %2977 = vmatprep.subr.bf16.mxu0 0
  %2978 = vmatpush1.bf16.xpose.msra.mxu0 0
  %2979 = vmatprep.subr.bf16.mxu0 0
  %2980 = vmatpush1.bf16.xpose.msra.mxu0 0
  %2981 = vmatprep.subr.bf16.mxu0 0
  %2982 = vmatpush1.bf16.xpose.msra.mxu0 0
  %2983 = vmatprep.subr.bf16.mxu0 0
  %2984 = vmatpush1.bf16.xpose.msra.mxu0 0
  %2985 = vmatprep.subr.bf16.mxu0 0
  %2986 = vmatpush1.bf16.xpose.msra.mxu0 0
  %2987 = vmatprep.subr.bf16.mxu0 0
  %2988 = vmatpush1.bf16.xpose.msra.mxu0 0
  %2989 = vmatprep.subr.bf16.mxu0 0
  %2990 = vmatpush1.bf16.xpose.msra.mxu0 0
  %2991 = vmatprep.subr.bf16.mxu0 0
  %2992 = vmatpush1.bf16.xpose.msra.mxu0 0
  %2993 = vmatprep.subr.bf16.mxu0 0
  %2994 = vmatpush1.bf16.xpose.msra.mxu0 0
  %2995 = vmatprep.subr.bf16.mxu0 0
  %2996 = vmatpush1.bf16.xpose.msra.mxu0 0
  %2997 = vmatprep.subr.bf16.mxu0 0
  %2998 = vmatpush1.bf16.xpose.msra.mxu0 0
  %2999 = vmatprep.subr.bf16.mxu0 0
  %3000 = vmatpush1.bf16.xpose.msra.mxu0 0
  %3001 = vmatprep.subr.bf16.mxu0 0
  %3002 = vmatpush1.bf16.xpose.msra.mxu0 0
  %3003 = vmatprep.subr.bf16.mxu0 0
  %3004 = vmatpush1.bf16.xpose.msra.mxu0 0
  %3005 = vmatprep.subr.bf16.mxu0 0
  %3006 = vmatpush1.bf16.xpose.msra.mxu0 0
  %3007 = vmatprep.mubr.bf16.mxu0 0
  %3008 = vmatmul.mubr.bf16.gmra.mrb[0].mxu0 %v2970
  %v3009 = vpop.f32.mrb[0].mxu0
  %v3010 = vadd.f32 %v102, %v3009
  %v3011 = vpop.f32.mrb[0].mxu0
  %v3012 = vpop.f32.mrb[0].mxu0
  %v3013 = vpop.f32.mrb[0].mxu0
  %3014 = vdwg.mxu0
  %v3015 = vsel %vm349, %v2964, -inf
  %3016 = vmax.xlane.f32.xlu0 %v3015
  %v3017 = vpop.xlane.xlu0 %3016
  %v3018 = vsel %vm349, %v3010, -inf
  %3019 = vmax.xlane.f32.xlu0 %v3018
  %v3020 = vpop.xlane.xlu0 %3019
  %v3021 = vsub.f32 %v2964, %v3017
  %v3022 = vsub.f32 %v3010, %v3020
  %v3023 = vmul.f32 %v3021, 1.442695
  %v3024 = vpow.pop %v3023
  %v3025 = vmul.f32 %v3022, 1.442695
  %v3026 = vpow.pop %v3025
  %v3027 = vsel %vm349, %v3024, 0.0
  %3028 = vadd.xlane.f32.xlu0 %v3027
  %v3029 = vpop.xlane.xlu0 %3028
  %v3030 = vsel %vm349, %v3026, 0.0
  %3031 = vadd.xlane.f32.xlu0 %v3030
  %v3032 = vpop.xlane.xlu0 %3031
  %v3033 = vrcp.pop %v3029
  %v3034 = vrcp.pop %v3032
  %v3035 = vmul.f32 %v3024, %v3033
  %v3036 = vmul.f32 %v3026, %v3034
  %v3037 = vpack.c.bf16 %v3035, %v3035
  %v3038 = vpack.c.bf16 %v3036, %v3036
  %v3039 = vpack.c.bf16 %v2913, %v2913
  %v3040 = vpack.c.bf16 %v2916, %v2916
  %v3042 = vsel %vm349, %v3037, 0
  %v3045 = vsel %vm471, %v3039, 0
  %3047 = vmatprep.subr.bf16.mxu0 0
  %3048 = vmatpush1.bf16.msra.mxu0 %v3045
  %3049 = vmatprep.subr.bf16.mxu0 0
  %3050 = vmatpush1.bf16.msra.mxu0 0
  %3051 = vmatprep.subr.bf16.mxu0 0
  %3052 = vmatpush1.bf16.msra.mxu0 0
  %3053 = vmatprep.subr.bf16.mxu0 0
  %3054 = vmatpush1.bf16.msra.mxu0 0
  %3055 = vmatprep.subr.bf16.mxu0 0
  %3056 = vmatpush1.bf16.msra.mxu0 0
  %3057 = vmatprep.subr.bf16.mxu0 0
  %3058 = vmatpush1.bf16.msra.mxu0 0
  %3059 = vmatprep.subr.bf16.mxu0 0
  %3060 = vmatpush1.bf16.msra.mxu0 0
  %3061 = vmatprep.subr.bf16.mxu0 0
  %3062 = vmatpush1.bf16.msra.mxu0 0
  %3063 = vmatprep.subr.bf16.mxu0 0
  %3064 = vmatpush1.bf16.msra.mxu0 0
  %3065 = vmatprep.subr.bf16.mxu0 0
  %3066 = vmatpush1.bf16.msra.mxu0 0
  %3067 = vmatprep.subr.bf16.mxu0 0
  %3068 = vmatpush1.bf16.msra.mxu0 0
  %3069 = vmatprep.subr.bf16.mxu0 0
  %3070 = vmatpush1.bf16.msra.mxu0 0
  %3071 = vmatprep.subr.bf16.mxu0 0
  %3072 = vmatpush1.bf16.msra.mxu0 0
  %3073 = vmatprep.subr.bf16.mxu0 0
  %3074 = vmatpush1.bf16.msra.mxu0 0
  %3075 = vmatprep.subr.bf16.mxu0 0
  %3076 = vmatpush1.bf16.msra.mxu0 0
  %3077 = vmatprep.subr.bf16.mxu0 0
  %3078 = vmatpush1.bf16.msra.mxu0 0
  %3079 = vmatprep.mubr.bf16.mxu0 0
  %3080 = vmatmul.mubr.bf16.gmra.mrb[0].mxu0 %v3042
  %v3081 = vpop.f32.mrb[0].mxu0
  %v3082 = vadd.f32 0.0, %v3081
  %v3083 = vpop.f32.mrb[0].mxu0
  %v3084 = vpop.f32.mrb[0].mxu0
  %v3085 = vpop.f32.mrb[0].mxu0
  %3086 = vdwg.mxu0
  %v3088 = vsel %vm349, %v3038, 0
  %v3091 = vsel %vm471, %v3040, 0
  %3093 = vmatprep.subr.bf16.mxu0 0
  %3094 = vmatpush1.bf16.msra.mxu0 %v3091
  %3095 = vmatprep.subr.bf16.mxu0 0
  %3096 = vmatpush1.bf16.msra.mxu0 0
  %3097 = vmatprep.subr.bf16.mxu0 0
  %3098 = vmatpush1.bf16.msra.mxu0 0
  %3099 = vmatprep.subr.bf16.mxu0 0
  %3100 = vmatpush1.bf16.msra.mxu0 0
  %3101 = vmatprep.subr.bf16.mxu0 0
  %3102 = vmatpush1.bf16.msra.mxu0 0
  %3103 = vmatprep.subr.bf16.mxu0 0
  %3104 = vmatpush1.bf16.msra.mxu0 0
  %3105 = vmatprep.subr.bf16.mxu0 0
  %3106 = vmatpush1.bf16.msra.mxu0 0
  %3107 = vmatprep.subr.bf16.mxu0 0
  %3108 = vmatpush1.bf16.msra.mxu0 0
  %3109 = vmatprep.subr.bf16.mxu0 0
  %3110 = vmatpush1.bf16.msra.mxu0 0
  %3111 = vmatprep.subr.bf16.mxu0 0
  %3112 = vmatpush1.bf16.msra.mxu0 0
  %3113 = vmatprep.subr.bf16.mxu0 0
  %3114 = vmatpush1.bf16.msra.mxu0 0
  %3115 = vmatprep.subr.bf16.mxu0 0
  %3116 = vmatpush1.bf16.msra.mxu0 0
  %3117 = vmatprep.subr.bf16.mxu0 0
  %3118 = vmatpush1.bf16.msra.mxu0 0
  %3119 = vmatprep.subr.bf16.mxu0 0
  %3120 = vmatpush1.bf16.msra.mxu0 0
  %3121 = vmatprep.subr.bf16.mxu0 0
  %3122 = vmatpush1.bf16.msra.mxu0 0
  %3123 = vmatprep.subr.bf16.mxu0 0
  %3124 = vmatpush1.bf16.msra.mxu0 0
  %3125 = vmatprep.mubr.bf16.mxu0 0
  %3126 = vmatmul.mubr.bf16.gmra.mrb[0].mxu0 %v3088
  %v3127 = vpop.f32.mrb[0].mxu0
  %v3128 = vadd.f32 0.0, %v3127
  %v3129 = vpop.f32.mrb[0].mxu0
  %v3130 = vpop.f32.mrb[0].mxu0
  %v3131 = vpop.f32.mrb[0].mxu0
  %3132 = vdwg.mxu0
  %v3133 = vpack.c.bf16 %v3128, %v3082
  %s3134 = scalar_lea.vmem %s10, 20
  %v3135 = vld [vmem:[%s3134] sm:$0xf]
  %v3137 = vsel %vm349, %v3133, 0
  %v3140 = vsel %vm471, %v3135, 0
  %3142 = vmatprep.subr.bf16.mxu0 0
  %3143 = vmatpush1.bf16.msra.mxu0 %v3140
  %3144 = vmatprep.subr.bf16.mxu0 0
  %3145 = vmatpush1.bf16.msra.mxu0 0
  %3146 = vmatprep.subr.bf16.mxu0 0
  %3147 = vmatpush1.bf16.msra.mxu0 0
  %3148 = vmatprep.subr.bf16.mxu0 0
  %3149 = vmatpush1.bf16.msra.mxu0 0
  %3150 = vmatprep.subr.bf16.mxu0 0
  %3151 = vmatpush1.bf16.msra.mxu0 0
  %3152 = vmatprep.subr.bf16.mxu0 0
  %3153 = vmatpush1.bf16.msra.mxu0 0
  %3154 = vmatprep.subr.bf16.mxu0 0
  %3155 = vmatpush1.bf16.msra.mxu0 0
  %3156 = vmatprep.subr.bf16.mxu0 0
  %3157 = vmatpush1.bf16.msra.mxu0 0
  %3158 = vmatprep.subr.bf16.mxu0 0
  %3159 = vmatpush1.bf16.msra.mxu0 0
  %3160 = vmatprep.subr.bf16.mxu0 0
  %3161 = vmatpush1.bf16.msra.mxu0 0
  %3162 = vmatprep.subr.bf16.mxu0 0
  %3163 = vmatpush1.bf16.msra.mxu0 0
  %3164 = vmatprep.subr.bf16.mxu0 0
  %3165 = vmatpush1.bf16.msra.mxu0 0
  %3166 = vmatprep.subr.bf16.mxu0 0
  %3167 = vmatpush1.bf16.msra.mxu0 0
  %3168 = vmatprep.subr.bf16.mxu0 0
  %3169 = vmatpush1.bf16.msra.mxu0 0
  %3170 = vmatprep.subr.bf16.mxu0 0
  %3171 = vmatpush1.bf16.msra.mxu0 0
  %3172 = vmatprep.subr.bf16.mxu0 0
  %3173 = vmatpush1.bf16.msra.mxu0 0
  %3174 = vmatprep.mubr.bf16.mxu0 0
  %3175 = vmatmul.mubr.bf16.gmra.mrb[0].mxu0 %v3137
  %v3176 = vpop.f32.mrb[0].mxu0
  %v3177 = vadd.f32 0.0, %v3176
  %v3178 = vpop.f32.mrb[0].mxu0
  %v3179 = vpop.f32.mrb[0].mxu0
  %v3180 = vadd.f32 0.0, %v3179
  %v3181 = vpop.f32.mrb[0].mxu0
  %3182 = vdwg.mxu0
  %v3184 = vsel %vm349, %v2718, 0
  %v3187 = vsel %vm471, %v2720, 0
  %3189 = vmatprep.subr.bf16.mxu0 0
  %3190 = vmatpush1.bf16.msra.mxu0 %v3187
  %3191 = vmatprep.subr.bf16.mxu0 0
  %3192 = vmatpush1.bf16.msra.mxu0 0
  %3193 = vmatprep.subr.bf16.mxu0 0
  %3194 = vmatpush1.bf16.msra.mxu0 0
  %3195 = vmatprep.subr.bf16.mxu0 0
  %3196 = vmatpush1.bf16.msra.mxu0 0
  %3197 = vmatprep.subr.bf16.mxu0 0
  %3198 = vmatpush1.bf16.msra.mxu0 0
  %3199 = vmatprep.subr.bf16.mxu0 0
  %3200 = vmatpush1.bf16.msra.mxu0 0
  %3201 = vmatprep.subr.bf16.mxu0 0
  %3202 = vmatpush1.bf16.msra.mxu0 0
  %3203 = vmatprep.subr.bf16.mxu0 0
  %3204 = vmatpush1.bf16.msra.mxu0 0
  %3205 = vmatprep.subr.bf16.mxu0 0
  %3206 = vmatpush1.bf16.msra.mxu0 0
  %3207 = vmatprep.subr.bf16.mxu0 0
  %3208 = vmatpush1.bf16.msra.mxu0 0
  %3209 = vmatprep.subr.bf16.mxu0 0
  %3210 = vmatpush1.bf16.msra.mxu0 0
  %3211 = vmatprep.subr.bf16.mxu0 0
  %3212 = vmatpush1.bf16.msra.mxu0 0
  %3213 = vmatprep.subr.bf16.mxu0 0
  %3214 = vmatpush1.bf16.msra.mxu0 0
  %3215 = vmatprep.subr.bf16.mxu0 0
  %3216 = vmatpush1.bf16.msra.mxu0 0
  %3217 = vmatprep.subr.bf16.mxu0 0
  %3218 = vmatpush1.bf16.msra.mxu0 0
  %3219 = vmatprep.subr.bf16.mxu0 0
  %3220 = vmatpush1.bf16.msra.mxu0 0
  %3221 = vmatprep.mubr.bf16.mxu0 0
  %3222 = vmatmul.mubr.bf16.gmra.mrb[0].mxu0 %v3184
  %v3223 = vpop.f32.mrb[0].mxu0
  %v3224 = vadd.f32 %v3177, %v3223
  %v3225 = vpop.f32.mrb[0].mxu0
  %v3226 = vpop.f32.mrb[0].mxu0
  %v3227 = vadd.f32 %v3180, %v3226
  %v3228 = vpop.f32.mrb[0].mxu0
  %3229 = vdwg.mxu0
  %s3230 = scalar_lea.vmem %s4, 96
  %v3231 = vld [vmem:[%s3230] sm:$0xf]
  %v3232 = vld [vmem:[%s3230 + $0x4] sm:$0xf]
  %v3233 = vld [vmem:[%s3230 + $0x8] sm:$0xf]
  %v3234 = vld [vmem:[%s3230 + $0xc] sm:$0xf]
  %s3235 = scalar_lea.vmem %s5, 6
  %v3236 = vld [vmem:[%s3235] sm:$0x1]
  %v3238 = vlaneseq
  %v3239 = vshrl.u32 %v3238, 7
  %v3240 = vsub.s32 0, %v3239
  %v3241 = vrot.slane %v3236, %v3240
  %v3247 = vunpack.c.l.b16 %v3231
  %v3248 = vunpack.c.l.b16 %v3232
  %v3249 = vunpack.c.l.b16 %v3233
  %v3250 = vunpack.c.l.b16 %v3234
  %v3251 = vpack.c.b16 %v3248, %v3247
  %v3252 = vpack.c.b16 %v3250, %v3249
  %3255 = vmatprep.subr.bf16.mxu0 0
  %3256 = vmatpush1.bf16.msra.mxu0 %v3251
  %3257 = vmatprep.subr.bf16.mxu0 0
  %3258 = vmatpush1.bf16.msra.mxu0 %v3252
  %3259 = vmatprep.subr.bf16.mxu0 0
  %3260 = vmatpush1.bf16.msra.mxu0 0
  %3261 = vmatprep.subr.bf16.mxu0 0
  %3262 = vmatpush1.bf16.msra.mxu0 0
  %3263 = vmatprep.subr.bf16.mxu0 0
  %3264 = vmatpush1.bf16.msra.mxu0 0
  %3265 = vmatprep.subr.bf16.mxu0 0
  %3266 = vmatpush1.bf16.msra.mxu0 0
  %3267 = vmatprep.subr.bf16.mxu0 0
  %3268 = vmatpush1.bf16.msra.mxu0 0
  %3269 = vmatprep.subr.bf16.mxu0 0
  %3270 = vmatpush1.bf16.msra.mxu0 0
  %3271 = vmatprep.subr.bf16.mxu0 0
  %3272 = vmatpush1.bf16.msra.mxu0 0
  %3273 = vmatprep.subr.bf16.mxu0 0
  %3274 = vmatpush1.bf16.msra.mxu0 0
  %3275 = vmatprep.subr.bf16.mxu0 0
  %3276 = vmatpush1.bf16.msra.mxu0 0
  %3277 = vmatprep.subr.bf16.mxu0 0
  %3278 = vmatpush1.bf16.msra.mxu0 0
  %3279 = vmatprep.subr.bf16.mxu0 0
  %3280 = vmatpush1.bf16.msra.mxu0 0
  %3281 = vmatprep.subr.bf16.mxu0 0
  %3282 = vmatpush1.bf16.msra.mxu0 0
  %3283 = vmatprep.subr.bf16.mxu0 0
  %3284 = vmatpush1.bf16.msra.mxu0 0
  %3285 = vmatprep.subr.bf16.mxu0 0
  %3286 = vmatpush1.bf16.msra.mxu0 0
  %3287 = vmatprep.mubr.bf16.mxu0 0
  %3288 = vmatmul.mubr.bf16.gmra.mrb[0].mxu0 %v2329
  %v3289 = vpop.f32.mrb[0].mxu0
  %v3290 = vadd.f32 %v3241, %v3289
  %v3291 = vpop.f32.mrb[0].mxu0
  %v3292 = vpop.f32.mrb[0].mxu0
  %v3293 = vadd.f32 %v3241, %v3292
  %v3294 = vpop.f32.mrb[0].mxu0
  %3295 = vdwg.mxu0
  %s3296 = scalar_lea.vmem %s6, 96
  %v3297 = vld [vmem:[%s3296] sm:$0xf]
  %v3298 = vld [vmem:[%s3296 + $0x4] sm:$0xf]
  %v3299 = vld [vmem:[%s3296 + $0x8] sm:$0xf]
  %v3300 = vld [vmem:[%s3296 + $0xc] sm:$0xf]
  %s3301 = scalar_lea.vmem %s7, 6
  %v3302 = vld [vmem:[%s3301] sm:$0x1]
  %v3304 = vlaneseq
  %v3305 = vshrl.u32 %v3304, 7
  %v3306 = vsub.s32 0, %v3305
  %v3307 = vrot.slane %v3302, %v3306
  %v3313 = vunpack.c.l.b16 %v3297
  %v3314 = vunpack.c.l.b16 %v3298
  %v3315 = vunpack.c.l.b16 %v3299
  %v3316 = vunpack.c.l.b16 %v3300
  %v3317 = vpack.c.b16 %v3314, %v3313
  %v3318 = vpack.c.b16 %v3316, %v3315
  %3321 = vmatprep.subr.bf16.mxu0 0
  %3322 = vmatpush1.bf16.msra.mxu0 %v3317
  %3323 = vmatprep.subr.bf16.mxu0 0
  %3324 = vmatpush1.bf16.msra.mxu0 %v3318
  %3325 = vmatprep.subr.bf16.mxu0 0
  %3326 = vmatpush1.bf16.msra.mxu0 0
  %3327 = vmatprep.subr.bf16.mxu0 0
  %3328 = vmatpush1.bf16.msra.mxu0 0
  %3329 = vmatprep.subr.bf16.mxu0 0
  %3330 = vmatpush1.bf16.msra.mxu0 0
  %3331 = vmatprep.subr.bf16.mxu0 0
  %3332 = vmatpush1.bf16.msra.mxu0 0
  %3333 = vmatprep.subr.bf16.mxu0 0
  %3334 = vmatpush1.bf16.msra.mxu0 0
  %3335 = vmatprep.subr.bf16.mxu0 0
  %3336 = vmatpush1.bf16.msra.mxu0 0
  %3337 = vmatprep.subr.bf16.mxu0 0
  %3338 = vmatpush1.bf16.msra.mxu0 0
  %3339 = vmatprep.subr.bf16.mxu0 0
  %3340 = vmatpush1.bf16.msra.mxu0 0
  %3341 = vmatprep.subr.bf16.mxu0 0
  %3342 = vmatpush1.bf16.msra.mxu0 0
  %3343 = vmatprep.subr.bf16.mxu0 0
  %3344 = vmatpush1.bf16.msra.mxu0 0
  %3345 = vmatprep.subr.bf16.mxu0 0
  %3346 = vmatpush1.bf16.msra.mxu0 0
  %3347 = vmatprep.subr.bf16.mxu0 0
  %3348 = vmatpush1.bf16.msra.mxu0 0
  %3349 = vmatprep.subr.bf16.mxu0 0
  %3350 = vmatpush1.bf16.msra.mxu0 0
  %3351 = vmatprep.subr.bf16.mxu0 0
  %3352 = vmatpush1.bf16.msra.mxu0 0
  %3353 = vmatprep.mubr.bf16.mxu0 0
  %3354 = vmatmul.mubr.bf16.gmra.mrb[0].mxu0 %v2329
  %v3355 = vpop.f32.mrb[0].mxu0
  %v3356 = vadd.f32 %v3307, %v3355
  %v3357 = vpop.f32.mrb[0].mxu0
  %v3358 = vpop.f32.mrb[0].mxu0
  %v3359 = vadd.f32 %v3307, %v3358
  %v3360 = vpop.f32.mrb[0].mxu0
  %3361 = vdwg.mxu0
  %s3362 = scalar_lea.vmem %s8, 96
  %v3363 = vld [vmem:[%s3362] sm:$0xf]
  %v3364 = vld [vmem:[%s3362 + $0x4] sm:$0xf]
  %v3365 = vld [vmem:[%s3362 + $0x8] sm:$0xf]
  %v3366 = vld [vmem:[%s3362 + $0xc] sm:$0xf]
  %s3367 = scalar_lea.vmem %s9, 6
  %v3368 = vld [vmem:[%s3367] sm:$0x1]
  %v3370 = vlaneseq
  %v3371 = vshrl.u32 %v3370, 7
  %v3372 = vsub.s32 0, %v3371
  %v3373 = vrot.slane %v3368, %v3372
  %v3379 = vunpack.c.l.b16 %v3363
  %v3380 = vunpack.c.l.b16 %v3364
  %v3381 = vunpack.c.l.b16 %v3365
  %v3382 = vunpack.c.l.b16 %v3366
  %v3383 = vpack.c.b16 %v3380, %v3379
  %v3384 = vpack.c.b16 %v3382, %v3381
  %3387 = vmatprep.subr.bf16.mxu0 0
  %3388 = vmatpush1.bf16.msra.mxu0 %v3383
  %3389 = vmatprep.subr.bf16.mxu0 0
  %3390 = vmatpush1.bf16.msra.mxu0 %v3384
  %3391 = vmatprep.subr.bf16.mxu0 0
  %3392 = vmatpush1.bf16.msra.mxu0 0
  %3393 = vmatprep.subr.bf16.mxu0 0
  %3394 = vmatpush1.bf16.msra.mxu0 0
  %3395 = vmatprep.subr.bf16.mxu0 0
  %3396 = vmatpush1.bf16.msra.mxu0 0
  %3397 = vmatprep.subr.bf16.mxu0 0
  %3398 = vmatpush1.bf16.msra.mxu0 0
  %3399 = vmatprep.subr.bf16.mxu0 0
  %3400 = vmatpush1.bf16.msra.mxu0 0
  %3401 = vmatprep.subr.bf16.mxu0 0
  %3402 = vmatpush1.bf16.msra.mxu0 0
  %3403 = vmatprep.subr.bf16.mxu0 0
  %3404 = vmatpush1.bf16.msra.mxu0 0
  %3405 = vmatprep.subr.bf16.mxu0 0
  %3406 = vmatpush1.bf16.msra.mxu0 0
  %3407 = vmatprep.subr.bf16.mxu0 0
  %3408 = vmatpush1.bf16.msra.mxu0 0
  %3409 = vmatprep.subr.bf16.mxu0 0
  %3410 = vmatpush1.bf16.msra.mxu0 0
  %3411 = vmatprep.subr.bf16.mxu0 0
  %3412 = vmatpush1.bf16.msra.mxu0 0
  %3413 = vmatprep.subr.bf16.mxu0 0
  %3414 = vmatpush1.bf16.msra.mxu0 0
  %3415 = vmatprep.subr.bf16.mxu0 0
  %3416 = vmatpush1.bf16.msra.mxu0 0
  %3417 = vmatprep.subr.bf16.mxu0 0
  %3418 = vmatpush1.bf16.msra.mxu0 0
  %3419 = vmatprep.mubr.bf16.mxu0 0
  %3420 = vmatmul.mubr.bf16.gmra.mrb[0].mxu0 %v2329
  %v3421 = vpop.f32.mrb[0].mxu0
  %v3422 = vadd.f32 %v3373, %v3421
  %v3423 = vpop.f32.mrb[0].mxu0
  %v3424 = vpop.f32.mrb[0].mxu0
  %v3425 = vadd.f32 %v3373, %v3424
  %v3426 = vpop.f32.mrb[0].mxu0
  %3427 = vdwg.mxu0
  %v3428 = vpack.c.bf16 %v3290, %v3290
  %v3429 = vpack.c.bf16 %v3293, %v3293
  %v3430 = vpack.c.bf16 %v3356, %v3356
  %v3431 = vpack.c.bf16 %v3359, %v3359
  %v3433 = vsel %vm349, %v3428, 0
  %v3436 = vsel %vm349, %v3430, 0
  %3438 = vmatprep.subr.bf16.mxu0 0
  %3439 = vmatpush1.bf16.xpose.msra.mxu0 %v3436
  %3440 = vmatprep.subr.bf16.mxu0 0
  %3441 = vmatpush1.bf16.xpose.msra.mxu0 0
  %3442 = vmatprep.subr.bf16.mxu0 0
  %3443 = vmatpush1.bf16.xpose.msra.mxu0 0
  %3444 = vmatprep.subr.bf16.mxu0 0
  %3445 = vmatpush1.bf16.xpose.msra.mxu0 0
  %3446 = vmatprep.subr.bf16.mxu0 0
  %3447 = vmatpush1.bf16.xpose.msra.mxu0 0
  %3448 = vmatprep.subr.bf16.mxu0 0
  %3449 = vmatpush1.bf16.xpose.msra.mxu0 0
  %3450 = vmatprep.subr.bf16.mxu0 0
  %3451 = vmatpush1.bf16.xpose.msra.mxu0 0
  %3452 = vmatprep.subr.bf16.mxu0 0
  %3453 = vmatpush1.bf16.xpose.msra.mxu0 0
  %3454 = vmatprep.subr.bf16.mxu0 0
  %3455 = vmatpush1.bf16.xpose.msra.mxu0 0
  %3456 = vmatprep.subr.bf16.mxu0 0
  %3457 = vmatpush1.bf16.xpose.msra.mxu0 0
  %3458 = vmatprep.subr.bf16.mxu0 0
  %3459 = vmatpush1.bf16.xpose.msra.mxu0 0
  %3460 = vmatprep.subr.bf16.mxu0 0
  %3461 = vmatpush1.bf16.xpose.msra.mxu0 0
  %3462 = vmatprep.subr.bf16.mxu0 0
  %3463 = vmatpush1.bf16.xpose.msra.mxu0 0
  %3464 = vmatprep.subr.bf16.mxu0 0
  %3465 = vmatpush1.bf16.xpose.msra.mxu0 0
  %3466 = vmatprep.subr.bf16.mxu0 0
  %3467 = vmatpush1.bf16.xpose.msra.mxu0 0
  %3468 = vmatprep.subr.bf16.mxu0 0
  %3469 = vmatpush1.bf16.xpose.msra.mxu0 0
  %3470 = vmatprep.mubr.bf16.mxu0 0
  %3471 = vmatmul.mubr.bf16.gmra.mrb[0].mxu0 %v3433
  %v3472 = vpop.f32.mrb[0].mxu0
  %v3473 = vadd.f32 %v101, %v3472
  %v3474 = vpop.f32.mrb[0].mxu0
  %v3475 = vpop.f32.mrb[0].mxu0
  %v3476 = vpop.f32.mrb[0].mxu0
  %3477 = vdwg.mxu0
  %v3479 = vsel %vm349, %v3429, 0
  %v3482 = vsel %vm349, %v3431, 0
  %3484 = vmatprep.subr.bf16.mxu0 0
  %3485 = vmatpush1.bf16.xpose.msra.mxu0 %v3482
  %3486 = vmatprep.subr.bf16.mxu0 0
  %3487 = vmatpush1.bf16.xpose.msra.mxu0 0
  %3488 = vmatprep.subr.bf16.mxu0 0
  %3489 = vmatpush1.bf16.xpose.msra.mxu0 0
  %3490 = vmatprep.subr.bf16.mxu0 0
  %3491 = vmatpush1.bf16.xpose.msra.mxu0 0
  %3492 = vmatprep.subr.bf16.mxu0 0
  %3493 = vmatpush1.bf16.xpose.msra.mxu0 0
  %3494 = vmatprep.subr.bf16.mxu0 0
  %3495 = vmatpush1.bf16.xpose.msra.mxu0 0
  %3496 = vmatprep.subr.bf16.mxu0 0
  %3497 = vmatpush1.bf16.xpose.msra.mxu0 0
  %3498 = vmatprep.subr.bf16.mxu0 0
  %3499 = vmatpush1.bf16.xpose.msra.mxu0 0
  %3500 = vmatprep.subr.bf16.mxu0 0
  %3501 = vmatpush1.bf16.xpose.msra.mxu0 0
  %3502 = vmatprep.subr.bf16.mxu0 0
  %3503 = vmatpush1.bf16.xpose.msra.mxu0 0
  %3504 = vmatprep.subr.bf16.mxu0 0
  %3505 = vmatpush1.bf16.xpose.msra.mxu0 0
  %3506 = vmatprep.subr.bf16.mxu0 0
  %3507 = vmatpush1.bf16.xpose.msra.mxu0 0
  %3508 = vmatprep.subr.bf16.mxu0 0
  %3509 = vmatpush1.bf16.xpose.msra.mxu0 0
  %3510 = vmatprep.subr.bf16.mxu0 0
  %3511 = vmatpush1.bf16.xpose.msra.mxu0 0
  %3512 = vmatprep.subr.bf16.mxu0 0
  %3513 = vmatpush1.bf16.xpose.msra.mxu0 0
  %3514 = vmatprep.subr.bf16.mxu0 0
  %3515 = vmatpush1.bf16.xpose.msra.mxu0 0
  %3516 = vmatprep.mubr.bf16.mxu0 0
  %3517 = vmatmul.mubr.bf16.gmra.mrb[0].mxu0 %v3479
  %v3518 = vpop.f32.mrb[0].mxu0
  %v3519 = vadd.f32 %v102, %v3518
  %v3520 = vpop.f32.mrb[0].mxu0
  %v3521 = vpop.f32.mrb[0].mxu0
  %v3522 = vpop.f32.mrb[0].mxu0
  %3523 = vdwg.mxu0
  %v3524 = vsel %vm349, %v3473, -inf
  %3525 = vmax.xlane.f32.xlu0 %v3524
  %v3526 = vpop.xlane.xlu0 %3525
  %v3527 = vsel %vm349, %v3519, -inf
  %3528 = vmax.xlane.f32.xlu0 %v3527
  %v3529 = vpop.xlane.xlu0 %3528
  %v3530 = vsub.f32 %v3473, %v3526
  %v3531 = vsub.f32 %v3519, %v3529
  %v3532 = vmul.f32 %v3530, 1.442695
  %v3533 = vpow.pop %v3532
  %v3534 = vmul.f32 %v3531, 1.442695
  %v3535 = vpow.pop %v3534
  %v3536 = vsel %vm349, %v3533, 0.0
  %3537 = vadd.xlane.f32.xlu0 %v3536
  %v3538 = vpop.xlane.xlu0 %3537
  %v3539 = vsel %vm349, %v3535, 0.0
  %3540 = vadd.xlane.f32.xlu0 %v3539
  %v3541 = vpop.xlane.xlu0 %3540
  %v3542 = vrcp.pop %v3538
  %v3543 = vrcp.pop %v3541
  %v3544 = vmul.f32 %v3533, %v3542
  %v3545 = vmul.f32 %v3535, %v3543
  %v3546 = vpack.c.bf16 %v3544, %v3544
  %v3547 = vpack.c.bf16 %v3545, %v3545
  %v3548 = vpack.c.bf16 %v3422, %v3422
  %v3549 = vpack.c.bf16 %v3425, %v3425
  %v3551 = vsel %vm349, %v3546, 0
  %v3554 = vsel %vm471, %v3548, 0
  %3556 = vmatprep.subr.bf16.mxu0 0
  %3557 = vmatpush1.bf16.msra.mxu0 %v3554
  %3558 = vmatprep.subr.bf16.mxu0 0
  %3559 = vmatpush1.bf16.msra.mxu0 0
  %3560 = vmatprep.subr.bf16.mxu0 0
  %3561 = vmatpush1.bf16.msra.mxu0 0
  %3562 = vmatprep.subr.bf16.mxu0 0
  %3563 = vmatpush1.bf16.msra.mxu0 0
  %3564 = vmatprep.subr.bf16.mxu0 0
  %3565 = vmatpush1.bf16.msra.mxu0 0
  %3566 = vmatprep.subr.bf16.mxu0 0
  %3567 = vmatpush1.bf16.msra.mxu0 0
  %3568 = vmatprep.subr.bf16.mxu0 0
  %3569 = vmatpush1.bf16.msra.mxu0 0
  %3570 = vmatprep.subr.bf16.mxu0 0
  %3571 = vmatpush1.bf16.msra.mxu0 0
  %3572 = vmatprep.subr.bf16.mxu0 0
  %3573 = vmatpush1.bf16.msra.mxu0 0
  %3574 = vmatprep.subr.bf16.mxu0 0
  %3575 = vmatpush1.bf16.msra.mxu0 0
  %3576 = vmatprep.subr.bf16.mxu0 0
  %3577 = vmatpush1.bf16.msra.mxu0 0
  %3578 = vmatprep.subr.bf16.mxu0 0
  %3579 = vmatpush1.bf16.msra.mxu0 0
  %3580 = vmatprep.subr.bf16.mxu0 0
  %3581 = vmatpush1.bf16.msra.mxu0 0
  %3582 = vmatprep.subr.bf16.mxu0 0
  %3583 = vmatpush1.bf16.msra.mxu0 0
  %3584 = vmatprep.subr.bf16.mxu0 0
  %3585 = vmatpush1.bf16.msra.mxu0 0
  %3586 = vmatprep.subr.bf16.mxu0 0
  %3587 = vmatpush1.bf16.msra.mxu0 0
  %3588 = vmatprep.mubr.bf16.mxu0 0
  %3589 = vmatmul.mubr.bf16.gmra.mrb[0].mxu0 %v3551
  %v3590 = vpop.f32.mrb[0].mxu0
  %v3591 = vadd.f32 0.0, %v3590
  %v3592 = vpop.f32.mrb[0].mxu0
  %v3593 = vpop.f32.mrb[0].mxu0
  %v3594 = vpop.f32.mrb[0].mxu0
  %3595 = vdwg.mxu0
  %v3597 = vsel %vm349, %v3547, 0
  %v3600 = vsel %vm471, %v3549, 0
  %3602 = vmatprep.subr.bf16.mxu0 0
  %3603 = vmatpush1.bf16.msra.mxu0 %v3600
  %3604 = vmatprep.subr.bf16.mxu0 0
  %3605 = vmatpush1.bf16.msra.mxu0 0
  %3606 = vmatprep.subr.bf16.mxu0 0
  %3607 = vmatpush1.bf16.msra.mxu0 0
  %3608 = vmatprep.subr.bf16.mxu0 0
  %3609 = vmatpush1.bf16.msra.mxu0 0
  %3610 = vmatprep.subr.bf16.mxu0 0
  %3611 = vmatpush1.bf16.msra.mxu0 0
  %3612 = vmatprep.subr.bf16.mxu0 0
  %3613 = vmatpush1.bf16.msra.mxu0 0
  %3614 = vmatprep.subr.bf16.mxu0 0
  %3615 = vmatpush1.bf16.msra.mxu0 0
  %3616 = vmatprep.subr.bf16.mxu0 0
  %3617 = vmatpush1.bf16.msra.mxu0 0
  %3618 = vmatprep.subr.bf16.mxu0 0
  %3619 = vmatpush1.bf16.msra.mxu0 0
  %3620 = vmatprep.subr.bf16.mxu0 0
  %3621 = vmatpush1.bf16.msra.mxu0 0
  %3622 = vmatprep.subr.bf16.mxu0 0
  %3623 = vmatpush1.bf16.msra.mxu0 0
  %3624 = vmatprep.subr.bf16.mxu0 0
  %3625 = vmatpush1.bf16.msra.mxu0 0
  %3626 = vmatprep.subr.bf16.mxu0 0
  %3627 = vmatpush1.bf16.msra.mxu0 0
  %3628 = vmatprep.subr.bf16.mxu0 0
  %3629 = vmatpush1.bf16.msra.mxu0 0
  %3630 = vmatprep.subr.bf16.mxu0 0
  %3631 = vmatpush1.bf16.msra.mxu0 0
  %3632 = vmatprep.subr.bf16.mxu0 0
  %3633 = vmatpush1.bf16.msra.mxu0 0
  %3634 = vmatprep.mubr.bf16.mxu0 0
  %3635 = vmatmul.mubr.bf16.gmra.mrb[0].mxu0 %v3597
  %v3636 = vpop.f32.mrb[0].mxu0
  %v3637 = vadd.f32 0.0, %v3636
  %v3638 = vpop.f32.mrb[0].mxu0
  %v3639 = vpop.f32.mrb[0].mxu0
  %v3640 = vpop.f32.mrb[0].mxu0
  %3641 = vdwg.mxu0
  %v3642 = vpack.c.bf16 %v3637, %v3591
  %s3643 = scalar_lea.vmem %s10, 24
  %v3644 = vld [vmem:[%s3643] sm:$0xf]
  %v3646 = vsel %vm349, %v3642, 0
  %v3649 = vsel %vm471, %v3644, 0
  %3651 = vmatprep.subr.bf16.mxu0 0
  %3652 = vmatpush1.bf16.msra.mxu0 %v3649
  %3653 = vmatprep.subr.bf16.mxu0 0
  %3654 = vmatpush1.bf16.msra.mxu0 0
  %3655 = vmatprep.subr.bf16.mxu0 0
  %3656 = vmatpush1.bf16.msra.mxu0 0
  %3657 = vmatprep.subr.bf16.mxu0 0
  %3658 = vmatpush1.bf16.msra.mxu0 0
  %3659 = vmatprep.subr.bf16.mxu0 0
  %3660 = vmatpush1.bf16.msra.mxu0 0
  %3661 = vmatprep.subr.bf16.mxu0 0
  %3662 = vmatpush1.bf16.msra.mxu0 0
  %3663 = vmatprep.subr.bf16.mxu0 0
  %3664 = vmatpush1.bf16.msra.mxu0 0
  %3665 = vmatprep.subr.bf16.mxu0 0
  %3666 = vmatpush1.bf16.msra.mxu0 0
  %3667 = vmatprep.subr.bf16.mxu0 0
  %3668 = vmatpush1.bf16.msra.mxu0 0
  %3669 = vmatprep.subr.bf16.mxu0 0
  %3670 = vmatpush1.bf16.msra.mxu0 0
  %3671 = vmatprep.subr.bf16.mxu0 0
  %3672 = vmatpush1.bf16.msra.mxu0 0
  %3673 = vmatprep.subr.bf16.mxu0 0
  %3674 = vmatpush1.bf16.msra.mxu0 0
  %3675 = vmatprep.subr.bf16.mxu0 0
  %3676 = vmatpush1.bf16.msra.mxu0 0
  %3677 = vmatprep.subr.bf16.mxu0 0
  %3678 = vmatpush1.bf16.msra.mxu0 0
  %3679 = vmatprep.subr.bf16.mxu0 0
  %3680 = vmatpush1.bf16.msra.mxu0 0
  %3681 = vmatprep.subr.bf16.mxu0 0
  %3682 = vmatpush1.bf16.msra.mxu0 0
  %3683 = vmatprep.mubr.bf16.mxu0 0
  %3684 = vmatmul.mubr.bf16.gmra.mrb[0].mxu0 %v3646
  %v3685 = vpop.f32.mrb[0].mxu0
  %v3686 = vadd.f32 0.0, %v3685
  %v3687 = vpop.f32.mrb[0].mxu0
  %v3688 = vpop.f32.mrb[0].mxu0
  %v3689 = vadd.f32 0.0, %v3688
  %v3690 = vpop.f32.mrb[0].mxu0
  %3691 = vdwg.mxu0
  %v3692 = vadd.f32 %v3224, %v3686
  %v3693 = vadd.f32 %v3227, %v3689
  %s3694 = scalar_lea.vmem %s4, 112
  %v3695 = vld [vmem:[%s3694] sm:$0xf]
  %v3696 = vld [vmem:[%s3694 + $0x4] sm:$0xf]
  %v3697 = vld [vmem:[%s3694 + $0x8] sm:$0xf]
  %v3698 = vld [vmem:[%s3694 + $0xc] sm:$0xf]
  %s3699 = scalar_lea.vmem %s5, 7
  %v3700 = vld [vmem:[%s3699] sm:$0x1]
  %v3702 = vlaneseq
  %v3703 = vshrl.u32 %v3702, 7
  %v3704 = vsub.s32 0, %v3703
  %v3705 = vrot.slane %v3700, %v3704
  %v3711 = vunpack.c.l.b16 %v3695
  %v3712 = vunpack.c.l.b16 %v3696
  %v3713 = vunpack.c.l.b16 %v3697
  %v3714 = vunpack.c.l.b16 %v3698
  %v3715 = vpack.c.b16 %v3712, %v3711
  %v3716 = vpack.c.b16 %v3714, %v3713
  %3719 = vmatprep.subr.bf16.mxu0 0
  %3720 = vmatpush1.bf16.msra.mxu0 %v3715
  %3721 = vmatprep.subr.bf16.mxu0 0
  %3722 = vmatpush1.bf16.msra.mxu0 %v3716
  %3723 = vmatprep.subr.bf16.mxu0 0
  %3724 = vmatpush1.bf16.msra.mxu0 0
  %3725 = vmatprep.subr.bf16.mxu0 0
  %3726 = vmatpush1.bf16.msra.mxu0 0
  %3727 = vmatprep.subr.bf16.mxu0 0
  %3728 = vmatpush1.bf16.msra.mxu0 0
  %3729 = vmatprep.subr.bf16.mxu0 0
  %3730 = vmatpush1.bf16.msra.mxu0 0
  %3731 = vmatprep.subr.bf16.mxu0 0
  %3732 = vmatpush1.bf16.msra.mxu0 0
  %3733 = vmatprep.subr.bf16.mxu0 0
  %3734 = vmatpush1.bf16.msra.mxu0 0
  %3735 = vmatprep.subr.bf16.mxu0 0
  %3736 = vmatpush1.bf16.msra.mxu0 0
  %3737 = vmatprep.subr.bf16.mxu0 0
  %3738 = vmatpush1.bf16.msra.mxu0 0
  %3739 = vmatprep.subr.bf16.mxu0 0
  %3740 = vmatpush1.bf16.msra.mxu0 0
  %3741 = vmatprep.subr.bf16.mxu0 0
  %3742 = vmatpush1.bf16.msra.mxu0 0
  %3743 = vmatprep.subr.bf16.mxu0 0
  %3744 = vmatpush1.bf16.msra.mxu0 0
  %3745 = vmatprep.subr.bf16.mxu0 0
  %3746 = vmatpush1.bf16.msra.mxu0 0
  %3747 = vmatprep.subr.bf16.mxu0 0
  %3748 = vmatpush1.bf16.msra.mxu0 0
  %3749 = vmatprep.subr.bf16.mxu0 0
  %3750 = vmatpush1.bf16.msra.mxu0 0
  %3751 = vmatprep.mubr.bf16.mxu0 0
  %3752 = vmatmul.mubr.bf16.gmra.mrb[0].mxu0 %v2329
  %v3753 = vpop.f32.mrb[0].mxu0
  %v3754 = vadd.f32 %v3705, %v3753
  %v3755 = vpop.f32.mrb[0].mxu0
  %v3756 = vpop.f32.mrb[0].mxu0
  %v3757 = vadd.f32 %v3705, %v3756
  %v3758 = vpop.f32.mrb[0].mxu0
  %3759 = vdwg.mxu0
  %s3760 = scalar_lea.vmem %s6, 112
  %v3761 = vld [vmem:[%s3760] sm:$0xf]
  %v3762 = vld [vmem:[%s3760 + $0x4] sm:$0xf]
  %v3763 = vld [vmem:[%s3760 + $0x8] sm:$0xf]
  %v3764 = vld [vmem:[%s3760 + $0xc] sm:$0xf]
  %s3765 = scalar_lea.vmem %s7, 7
  %v3766 = vld [vmem:[%s3765] sm:$0x1]
  %v3768 = vlaneseq
  %v3769 = vshrl.u32 %v3768, 7
  %v3770 = vsub.s32 0, %v3769
  %v3771 = vrot.slane %v3766, %v3770
  %v3777 = vunpack.c.l.b16 %v3761
  %v3778 = vunpack.c.l.b16 %v3762
  %v3779 = vunpack.c.l.b16 %v3763
  %v3780 = vunpack.c.l.b16 %v3764
  %v3781 = vpack.c.b16 %v3778, %v3777
  %v3782 = vpack.c.b16 %v3780, %v3779
  %3785 = vmatprep.subr.bf16.mxu0 0
  %3786 = vmatpush1.bf16.msra.mxu0 %v3781
  %3787 = vmatprep.subr.bf16.mxu0 0
  %3788 = vmatpush1.bf16.msra.mxu0 %v3782
  %3789 = vmatprep.subr.bf16.mxu0 0
  %3790 = vmatpush1.bf16.msra.mxu0 0
  %3791 = vmatprep.subr.bf16.mxu0 0
  %3792 = vmatpush1.bf16.msra.mxu0 0
  %3793 = vmatprep.subr.bf16.mxu0 0
  %3794 = vmatpush1.bf16.msra.mxu0 0
  %3795 = vmatprep.subr.bf16.mxu0 0
  %3796 = vmatpush1.bf16.msra.mxu0 0
  %3797 = vmatprep.subr.bf16.mxu0 0
  %3798 = vmatpush1.bf16.msra.mxu0 0
  %3799 = vmatprep.subr.bf16.mxu0 0
  %3800 = vmatpush1.bf16.msra.mxu0 0
  %3801 = vmatprep.subr.bf16.mxu0 0
  %3802 = vmatpush1.bf16.msra.mxu0 0
  %3803 = vmatprep.subr.bf16.mxu0 0
  %3804 = vmatpush1.bf16.msra.mxu0 0
  %3805 = vmatprep.subr.bf16.mxu0 0
  %3806 = vmatpush1.bf16.msra.mxu0 0
  %3807 = vmatprep.subr.bf16.mxu0 0
  %3808 = vmatpush1.bf16.msra.mxu0 0
  %3809 = vmatprep.subr.bf16.mxu0 0
  %3810 = vmatpush1.bf16.msra.mxu0 0
  %3811 = vmatprep.subr.bf16.mxu0 0
  %3812 = vmatpush1.bf16.msra.mxu0 0
  %3813 = vmatprep.subr.bf16.mxu0 0
  %3814 = vmatpush1.bf16.msra.mxu0 0
  %3815 = vmatprep.subr.bf16.mxu0 0
  %3816 = vmatpush1.bf16.msra.mxu0 0
  %3817 = vmatprep.mubr.bf16.mxu0 0
  %3818 = vmatmul.mubr.bf16.gmra.mrb[0].mxu0 %v2329
  %v3819 = vpop.f32.mrb[0].mxu0
  %v3820 = vadd.f32 %v3771, %v3819
  %v3821 = vpop.f32.mrb[0].mxu0
  %v3822 = vpop.f32.mrb[0].mxu0
  %v3823 = vadd.f32 %v3771, %v3822
  %v3824 = vpop.f32.mrb[0].mxu0
  %3825 = vdwg.mxu0
  %s3826 = scalar_lea.vmem %s8, 112
  %v3827 = vld [vmem:[%s3826] sm:$0xf]
  %v3828 = vld [vmem:[%s3826 + $0x4] sm:$0xf]
  %v3829 = vld [vmem:[%s3826 + $0x8] sm:$0xf]
  %v3830 = vld [vmem:[%s3826 + $0xc] sm:$0xf]
  %s3831 = scalar_lea.vmem %s9, 7
  %v3832 = vld [vmem:[%s3831] sm:$0x1]
  %v3834 = vlaneseq
  %v3835 = vshrl.u32 %v3834, 7
  %v3836 = vsub.s32 0, %v3835
  %v3837 = vrot.slane %v3832, %v3836
  %v3843 = vunpack.c.l.b16 %v3827
  %v3844 = vunpack.c.l.b16 %v3828
  %v3845 = vunpack.c.l.b16 %v3829
  %v3846 = vunpack.c.l.b16 %v3830
  %v3847 = vpack.c.b16 %v3844, %v3843
  %v3848 = vpack.c.b16 %v3846, %v3845
  %3851 = vmatprep.subr.bf16.mxu0 0
  %3852 = vmatpush1.bf16.msra.mxu0 %v3847
  %3853 = vmatprep.subr.bf16.mxu0 0
  %3854 = vmatpush1.bf16.msra.mxu0 %v3848
  %3855 = vmatprep.subr.bf16.mxu0 0
  %3856 = vmatpush1.bf16.msra.mxu0 0
  %3857 = vmatprep.subr.bf16.mxu0 0
  %3858 = vmatpush1.bf16.msra.mxu0 0
  %3859 = vmatprep.subr.bf16.mxu0 0
  %3860 = vmatpush1.bf16.msra.mxu0 0
  %3861 = vmatprep.subr.bf16.mxu0 0
  %3862 = vmatpush1.bf16.msra.mxu0 0
  %3863 = vmatprep.subr.bf16.mxu0 0
  %3864 = vmatpush1.bf16.msra.mxu0 0
  %3865 = vmatprep.subr.bf16.mxu0 0
  %3866 = vmatpush1.bf16.msra.mxu0 0
  %3867 = vmatprep.subr.bf16.mxu0 0
  %3868 = vmatpush1.bf16.msra.mxu0 0
  %3869 = vmatprep.subr.bf16.mxu0 0
  %3870 = vmatpush1.bf16.msra.mxu0 0
  %3871 = vmatprep.subr.bf16.mxu0 0
  %3872 = vmatpush1.bf16.msra.mxu0 0
  %3873 = vmatprep.subr.bf16.mxu0 0
  %3874 = vmatpush1.bf16.msra.mxu0 0
  %3875 = vmatprep.subr.bf16.mxu0 0
  %3876 = vmatpush1.bf16.msra.mxu0 0
  %3877 = vmatprep.subr.bf16.mxu0 0
  %3878 = vmatpush1.bf16.msra.mxu0 0
  %3879 = vmatprep.subr.bf16.mxu0 0
  %3880 = vmatpush1.bf16.msra.mxu0 0
  %3881 = vmatprep.subr.bf16.mxu0 0
  %3882 = vmatpush1.bf16.msra.mxu0 0
  %3883 = vmatprep.mubr.bf16.mxu0 0
  %3884 = vmatmul.mubr.bf16.gmra.mrb[0].mxu0 %v2329
  %v3885 = vpop.f32.mrb[0].mxu0
  %v3886 = vadd.f32 %v3837, %v3885
  %v3887 = vpop.f32.mrb[0].mxu0
  %v3888 = vpop.f32.mrb[0].mxu0
  %v3889 = vadd.f32 %v3837, %v3888
  %v3890 = vpop.f32.mrb[0].mxu0
  %3891 = vdwg.mxu0
  %v3892 = vpack.c.bf16 %v3754, %v3754
  %v3893 = vpack.c.bf16 %v3757, %v3757
  %v3894 = vpack.c.bf16 %v3820, %v3820
  %v3895 = vpack.c.bf16 %v3823, %v3823
  %v3897 = vsel %vm349, %v3892, 0
  %v3900 = vsel %vm349, %v3894, 0
  %3902 = vmatprep.subr.bf16.mxu0 0
  %3903 = vmatpush1.bf16.xpose.msra.mxu0 %v3900
  %3904 = vmatprep.subr.bf16.mxu0 0
  %3905 = vmatpush1.bf16.xpose.msra.mxu0 0
  %3906 = vmatprep.subr.bf16.mxu0 0
  %3907 = vmatpush1.bf16.xpose.msra.mxu0 0
  %3908 = vmatprep.subr.bf16.mxu0 0
  %3909 = vmatpush1.bf16.xpose.msra.mxu0 0
  %3910 = vmatprep.subr.bf16.mxu0 0
  %3911 = vmatpush1.bf16.xpose.msra.mxu0 0
  %3912 = vmatprep.subr.bf16.mxu0 0
  %3913 = vmatpush1.bf16.xpose.msra.mxu0 0
  %3914 = vmatprep.subr.bf16.mxu0 0
  %3915 = vmatpush1.bf16.xpose.msra.mxu0 0
  %3916 = vmatprep.subr.bf16.mxu0 0
  %3917 = vmatpush1.bf16.xpose.msra.mxu0 0
  %3918 = vmatprep.subr.bf16.mxu0 0
  %3919 = vmatpush1.bf16.xpose.msra.mxu0 0
  %3920 = vmatprep.subr.bf16.mxu0 0
  %3921 = vmatpush1.bf16.xpose.msra.mxu0 0
  %3922 = vmatprep.subr.bf16.mxu0 0
  %3923 = vmatpush1.bf16.xpose.msra.mxu0 0
  %3924 = vmatprep.subr.bf16.mxu0 0
  %3925 = vmatpush1.bf16.xpose.msra.mxu0 0
  %3926 = vmatprep.subr.bf16.mxu0 0
  %3927 = vmatpush1.bf16.xpose.msra.mxu0 0
  %3928 = vmatprep.subr.bf16.mxu0 0
  %3929 = vmatpush1.bf16.xpose.msra.mxu0 0
  %3930 = vmatprep.subr.bf16.mxu0 0
  %3931 = vmatpush1.bf16.xpose.msra.mxu0 0
  %3932 = vmatprep.subr.bf16.mxu0 0
  %3933 = vmatpush1.bf16.xpose.msra.mxu0 0
  %3934 = vmatprep.mubr.bf16.mxu0 0
  %3935 = vmatmul.mubr.bf16.gmra.mrb[0].mxu0 %v3897
  %v3936 = vpop.f32.mrb[0].mxu0
  %v3937 = vadd.f32 %v101, %v3936
  %v3938 = vpop.f32.mrb[0].mxu0
  %v3939 = vpop.f32.mrb[0].mxu0
  %v3940 = vpop.f32.mrb[0].mxu0
  %3941 = vdwg.mxu0
  %v3943 = vsel %vm349, %v3893, 0
  %v3946 = vsel %vm349, %v3895, 0
  %3948 = vmatprep.subr.bf16.mxu0 0
  %3949 = vmatpush1.bf16.xpose.msra.mxu0 %v3946
  %3950 = vmatprep.subr.bf16.mxu0 0
  %3951 = vmatpush1.bf16.xpose.msra.mxu0 0
  %3952 = vmatprep.subr.bf16.mxu0 0
  %3953 = vmatpush1.bf16.xpose.msra.mxu0 0
  %3954 = vmatprep.subr.bf16.mxu0 0
  %3955 = vmatpush1.bf16.xpose.msra.mxu0 0
  %3956 = vmatprep.subr.bf16.mxu0 0
  %3957 = vmatpush1.bf16.xpose.msra.mxu0 0
  %3958 = vmatprep.subr.bf16.mxu0 0
  %3959 = vmatpush1.bf16.xpose.msra.mxu0 0
  %3960 = vmatprep.subr.bf16.mxu0 0
  %3961 = vmatpush1.bf16.xpose.msra.mxu0 0
  %3962 = vmatprep.subr.bf16.mxu0 0
  %3963 = vmatpush1.bf16.xpose.msra.mxu0 0
  %3964 = vmatprep.subr.bf16.mxu0 0
  %3965 = vmatpush1.bf16.xpose.msra.mxu0 0
  %3966 = vmatprep.subr.bf16.mxu0 0
  %3967 = vmatpush1.bf16.xpose.msra.mxu0 0
  %3968 = vmatprep.subr.bf16.mxu0 0
  %3969 = vmatpush1.bf16.xpose.msra.mxu0 0
  %3970 = vmatprep.subr.bf16.mxu0 0
  %3971 = vmatpush1.bf16.xpose.msra.mxu0 0
  %3972 = vmatprep.subr.bf16.mxu0 0
  %3973 = vmatpush1.bf16.xpose.msra.mxu0 0
  %3974 = vmatprep.subr.bf16.mxu0 0
  %3975 = vmatpush1.bf16.xpose.msra.mxu0 0
  %3976 = vmatprep.subr.bf16.mxu0 0
  %3977 = vmatpush1.bf16.xpose.msra.mxu0 0
  %3978 = vmatprep.subr.bf16.mxu0 0
  %3979 = vmatpush1.bf16.xpose.msra.mxu0 0
  %3980 = vmatprep.mubr.bf16.mxu0 0
  %3981 = vmatmul.mubr.bf16.gmra.mrb[0].mxu0 %v3943
  %v3982 = vpop.f32.mrb[0].mxu0
  %v3983 = vadd.f32 %v102, %v3982
  %v3984 = vpop.f32.mrb[0].mxu0
  %v3985 = vpop.f32.mrb[0].mxu0
  %v3986 = vpop.f32.mrb[0].mxu0
  %3987 = vdwg.mxu0
  %v3988 = vsel %vm349, %v3937, -inf
  %3989 = vmax.xlane.f32.xlu0 %v3988
  %v3990 = vpop.xlane.xlu0 %3989
  %v3991 = vsel %vm349, %v3983, -inf
  %3992 = vmax.xlane.f32.xlu0 %v3991
  %v3993 = vpop.xlane.xlu0 %3992
  %v3994 = vsub.f32 %v3937, %v3990
  %v3995 = vsub.f32 %v3983, %v3993
  %v3996 = vmul.f32 %v3994, 1.442695
  %v3997 = vpow.pop %v3996
  %v3998 = vmul.f32 %v3995, 1.442695
  %v3999 = vpow.pop %v3998
  %v4000 = vsel %vm349, %v3997, 0.0
  %4001 = vadd.xlane.f32.xlu0 %v4000
  %v4002 = vpop.xlane.xlu0 %4001
  %v4003 = vsel %vm349, %v3999, 0.0
  %4004 = vadd.xlane.f32.xlu0 %v4003
  %v4005 = vpop.xlane.xlu0 %4004
  %v4006 = vrcp.pop %v4002
  %v4007 = vrcp.pop %v4005
  %v4008 = vmul.f32 %v3997, %v4006
  %v4009 = vmul.f32 %v3999, %v4007
  %v4010 = vpack.c.bf16 %v4008, %v4008
  %v4011 = vpack.c.bf16 %v4009, %v4009
  %v4012 = vpack.c.bf16 %v3886, %v3886
  %v4013 = vpack.c.bf16 %v3889, %v3889
  %v4015 = vsel %vm349, %v4010, 0
  %v4018 = vsel %vm471, %v4012, 0
  %4020 = vmatprep.subr.bf16.mxu0 0
  %4021 = vmatpush1.bf16.msra.mxu0 %v4018
  %4022 = vmatprep.subr.bf16.mxu0 0
  %4023 = vmatpush1.bf16.msra.mxu0 0
  %4024 = vmatprep.subr.bf16.mxu0 0
  %4025 = vmatpush1.bf16.msra.mxu0 0
  %4026 = vmatprep.subr.bf16.mxu0 0
  %4027 = vmatpush1.bf16.msra.mxu0 0
  %4028 = vmatprep.subr.bf16.mxu0 0
  %4029 = vmatpush1.bf16.msra.mxu0 0
  %4030 = vmatprep.subr.bf16.mxu0 0
  %4031 = vmatpush1.bf16.msra.mxu0 0
  %4032 = vmatprep.subr.bf16.mxu0 0
  %4033 = vmatpush1.bf16.msra.mxu0 0
  %4034 = vmatprep.subr.bf16.mxu0 0
  %4035 = vmatpush1.bf16.msra.mxu0 0
  %4036 = vmatprep.subr.bf16.mxu0 0
  %4037 = vmatpush1.bf16.msra.mxu0 0
  %4038 = vmatprep.subr.bf16.mxu0 0
  %4039 = vmatpush1.bf16.msra.mxu0 0
  %4040 = vmatprep.subr.bf16.mxu0 0
  %4041 = vmatpush1.bf16.msra.mxu0 0
  %4042 = vmatprep.subr.bf16.mxu0 0
  %4043 = vmatpush1.bf16.msra.mxu0 0
  %4044 = vmatprep.subr.bf16.mxu0 0
  %4045 = vmatpush1.bf16.msra.mxu0 0
  %4046 = vmatprep.subr.bf16.mxu0 0
  %4047 = vmatpush1.bf16.msra.mxu0 0
  %4048 = vmatprep.subr.bf16.mxu0 0
  %4049 = vmatpush1.bf16.msra.mxu0 0
  %4050 = vmatprep.subr.bf16.mxu0 0
  %4051 = vmatpush1.bf16.msra.mxu0 0
  %4052 = vmatprep.mubr.bf16.mxu0 0
  %4053 = vmatmul.mubr.bf16.gmra.mrb[0].mxu0 %v4015
  %v4054 = vpop.f32.mrb[0].mxu0
  %v4055 = vadd.f32 0.0, %v4054
  %v4056 = vpop.f32.mrb[0].mxu0
  %v4057 = vpop.f32.mrb[0].mxu0
  %v4058 = vpop.f32.mrb[0].mxu0
  %4059 = vdwg.mxu0
  %v4061 = vsel %vm349, %v4011, 0
  %v4064 = vsel %vm471, %v4013, 0
  %4066 = vmatprep.subr.bf16.mxu0 0
  %4067 = vmatpush1.bf16.msra.mxu0 %v4064
  %4068 = vmatprep.subr.bf16.mxu0 0
  %4069 = vmatpush1.bf16.msra.mxu0 0
  %4070 = vmatprep.subr.bf16.mxu0 0
  %4071 = vmatpush1.bf16.msra.mxu0 0
  %4072 = vmatprep.subr.bf16.mxu0 0
  %4073 = vmatpush1.bf16.msra.mxu0 0
  %4074 = vmatprep.subr.bf16.mxu0 0
  %4075 = vmatpush1.bf16.msra.mxu0 0
  %4076 = vmatprep.subr.bf16.mxu0 0
  %4077 = vmatpush1.bf16.msra.mxu0 0
  %4078 = vmatprep.subr.bf16.mxu0 0
  %4079 = vmatpush1.bf16.msra.mxu0 0
  %4080 = vmatprep.subr.bf16.mxu0 0
  %4081 = vmatpush1.bf16.msra.mxu0 0
  %4082 = vmatprep.subr.bf16.mxu0 0
  %4083 = vmatpush1.bf16.msra.mxu0 0
  %4084 = vmatprep.subr.bf16.mxu0 0
  %4085 = vmatpush1.bf16.msra.mxu0 0
  %4086 = vmatprep.subr.bf16.mxu0 0
  %4087 = vmatpush1.bf16.msra.mxu0 0
  %4088 = vmatprep.subr.bf16.mxu0 0
  %4089 = vmatpush1.bf16.msra.mxu0 0
  %4090 = vmatprep.subr.bf16.mxu0 0
  %4091 = vmatpush1.bf16.msra.mxu0 0
  %4092 = vmatprep.subr.bf16.mxu0 0
  %4093 = vmatpush1.bf16.msra.mxu0 0
  %4094 = vmatprep.subr.bf16.mxu0 0
  %4095 = vmatpush1.bf16.msra.mxu0 0
  %4096 = vmatprep.subr.bf16.mxu0 0
  %4097 = vmatpush1.bf16.msra.mxu0 0
  %4098 = vmatprep.mubr.bf16.mxu0 0
  %4099 = vmatmul.mubr.bf16.gmra.mrb[0].mxu0 %v4061
  %v4100 = vpop.f32.mrb[0].mxu0
  %v4101 = vadd.f32 0.0, %v4100
  %v4102 = vpop.f32.mrb[0].mxu0
  %v4103 = vpop.f32.mrb[0].mxu0
  %v4104 = vpop.f32.mrb[0].mxu0
  %4105 = vdwg.mxu0
  %v4106 = vpack.c.bf16 %v4101, %v4055
  %s4107 = scalar_lea.vmem %s10, 28
  %v4108 = vld [vmem:[%s4107] sm:$0xf]
  %v4110 = vsel %vm349, %v4106, 0
  %v4113 = vsel %vm471, %v4108, 0
  %4115 = vmatprep.subr.bf16.mxu0 0
  %4116 = vmatpush1.bf16.msra.mxu0 %v4113
  %4117 = vmatprep.subr.bf16.mxu0 0
  %4118 = vmatpush1.bf16.msra.mxu0 0
  %4119 = vmatprep.subr.bf16.mxu0 0
  %4120 = vmatpush1.bf16.msra.mxu0 0
  %4121 = vmatprep.subr.bf16.mxu0 0
  %4122 = vmatpush1.bf16.msra.mxu0 0
  %4123 = vmatprep.subr.bf16.mxu0 0
  %4124 = vmatpush1.bf16.msra.mxu0 0
  %4125 = vmatprep.subr.bf16.mxu0 0
  %4126 = vmatpush1.bf16.msra.mxu0 0
  %4127 = vmatprep.subr.bf16.mxu0 0
  %4128 = vmatpush1.bf16.msra.mxu0 0
  %4129 = vmatprep.subr.bf16.mxu0 0
  %4130 = vmatpush1.bf16.msra.mxu0 0
  %4131 = vmatprep.subr.bf16.mxu0 0
  %4132 = vmatpush1.bf16.msra.mxu0 0
  %4133 = vmatprep.subr.bf16.mxu0 0
  %4134 = vmatpush1.bf16.msra.mxu0 0
  %4135 = vmatprep.subr.bf16.mxu0 0
  %4136 = vmatpush1.bf16.msra.mxu0 0
  %4137 = vmatprep.subr.bf16.mxu0 0
  %4138 = vmatpush1.bf16.msra.mxu0 0
  %4139 = vmatprep.subr.bf16.mxu0 0
  %4140 = vmatpush1.bf16.msra.mxu0 0
  %4141 = vmatprep.subr.bf16.mxu0 0
  %4142 = vmatpush1.bf16.msra.mxu0 0
  %4143 = vmatprep.subr.bf16.mxu0 0
  %4144 = vmatpush1.bf16.msra.mxu0 0
  %4145 = vmatprep.subr.bf16.mxu0 0
  %4146 = vmatpush1.bf16.msra.mxu0 0
  %4147 = vmatprep.mubr.bf16.mxu0 0
  %4148 = vmatmul.mubr.bf16.gmra.mrb[0].mxu0 %v4110
  %v4149 = vpop.f32.mrb[0].mxu0
  %v4150 = vadd.f32 0.0, %v4149
  %v4151 = vpop.f32.mrb[0].mxu0
  %v4152 = vpop.f32.mrb[0].mxu0
  %v4153 = vadd.f32 0.0, %v4152
  %v4154 = vpop.f32.mrb[0].mxu0
  %4155 = vdwg.mxu0
  %v4156 = vadd.f32 %v3692, %v4150
  %v4157 = vadd.f32 %v3693, %v4153
  %v4158 = vadd.f32 %v2254, %v4156
  %v4159 = vadd.f32 %v2255, %v4157
  %s4160 = scalar_lea.vmem %s11, 1
  %v4161 = vld [vmem:[%s4160] sm:$0x1]
  %v4163 = vlaneseq
  %v4164 = vshrl.u32 %v4163, 7
  %v4165 = vsub.s32 0, %v4164
  %v4166 = vrot.slane %v4161, %v4165
  %v4168 = vadd.f32 %v4158, %v4166
  %v4169 = vadd.f32 %v4159, %v4166
  %s4170 = scalar_lea.vmem %s12, 1
  %v4171 = vld [vmem:[%s4170] sm:$0x1]
  %s4172 = scalar_lea.vmem %s13, 1
  %v4173 = vld [vmem:[%s4172] sm:$0x1]
  %v4174 = vsel %vm105, %v4168, 0.0
  %4175 = vadd.xlane.f32.xlu0 %v4174
  %v4176 = vpop.xlane.xlu0 %4175
  %v4177 = vsel %vm105, %v4169, 0.0
  %4178 = vadd.xlane.f32.xlu0 %v4177
  %v4179 = vpop.xlane.xlu0 %4178
  %v4180 = vmul.f32 %v4176, %v112
  %v4181 = vmul.f32 %v4179, %v112
  %v4182 = vsub.f32 %v4168, %v4180
  %v4183 = vsub.f32 %v4169, %v4181
  %v4184 = vmul.f32 %v4182, %v4182
  %v4185 = vmul.f32 %v4183, %v4183
  %v4186 = vsel %vm105, %v4184, 0.0
  %4187 = vadd.xlane.f32.xlu0 %v4186
  %v4188 = vpop.xlane.xlu0 %4187
  %v4189 = vsel %vm105, %v4185, 0.0
  %4190 = vadd.xlane.f32.xlu0 %v4189
  %v4191 = vpop.xlane.xlu0 %4190
  %v4192 = vmul.f32 %v4188, %v112
  %v4193 = vmul.f32 %v4191, %v112
  %v4194 = vadd.f32 %v4192, 1e-05
  %v4195 = vadd.f32 %v4193, 1e-05
  %v4196 = vrsqrt.pop %v4194
  %v4197 = vrsqrt.pop %v4195
  %v4198 = vmul.f32 %v4182, %v4196
  %v4199 = vmul.f32 %v4183, %v4197
  %v4201 = vlaneseq
  %v4202 = vshrl.u32 %v4201, 7
  %v4203 = vsub.s32 0, %v4202
  %v4204 = vrot.slane %v4171, %v4203
  %v4206 = vmul.f32 %v4198, %v4204
  %v4207 = vmul.f32 %v4199, %v4204
  %v4209 = vlaneseq
  %v4210 = vshrl.u32 %v4209, 7
  %v4211 = vsub.s32 0, %v4210
  %v4212 = vrot.slane %v4173, %v4211
  %v4214 = vadd.f32 %v4206, %v4212
  %v4215 = vadd.f32 %v4207, %v4212
  %s4216 = scalar_lea.vmem %s14, 16
  %v4217 = vld [vmem:[%s4216] sm:$0xf]
  %v4218 = vld [vmem:[%s4216 + $0x4] sm:$0xf]
  %v4219 = vld [vmem:[%s4216 + $0x8] sm:$0xf]
  %v4220 = vld [vmem:[%s4216 + $0xc] sm:$0xf]
  %v4221 = vpack.c.bf16 %v4215, %v4214
  %s4222 = scalar_lea.vmem %s15, 1
  %v4223 = vld [vmem:[%s4222] sm:$0x1]
  %v4225 = vlaneseq
  %v4226 = vshrl.u32 %v4225, 7
  %v4227 = vsub.s32 0, %v4226
  %v4228 = vrot.slane %v4223, %v4227
  %v4234 = vunpack.c.l.b16 %v4217
  %v4235 = vunpack.c.l.b16 %v4218
  %v4236 = vunpack.c.l.b16 %v4219
  %v4237 = vunpack.c.l.b16 %v4220
  %v4238 = vpack.c.b16 %v4235, %v4234
  %v4239 = vpack.c.b16 %v4237, %v4236
  %v4243 = vsel %vm105, %v4221, 0
  %4245 = vmatprep.subr.bf16.mxu0 0
  %4246 = vmatpush1.bf16.msra.mxu0 %v4238
  %4247 = vmatprep.subr.bf16.mxu0 0
  %4248 = vmatpush1.bf16.msra.mxu0 %v4239
  %4249 = vmatprep.subr.bf16.mxu0 0
  %4250 = vmatpush1.bf16.msra.mxu0 0
  %4251 = vmatprep.subr.bf16.mxu0 0
  %4252 = vmatpush1.bf16.msra.mxu0 0
  %4253 = vmatprep.subr.bf16.mxu0 0
  %4254 = vmatpush1.bf16.msra.mxu0 0
  %4255 = vmatprep.subr.bf16.mxu0 0
  %4256 = vmatpush1.bf16.msra.mxu0 0
  %4257 = vmatprep.subr.bf16.mxu0 0
  %4258 = vmatpush1.bf16.msra.mxu0 0
  %4259 = vmatprep.subr.bf16.mxu0 0
  %4260 = vmatpush1.bf16.msra.mxu0 0
  %4261 = vmatprep.subr.bf16.mxu0 0
  %4262 = vmatpush1.bf16.msra.mxu0 0
  %4263 = vmatprep.subr.bf16.mxu0 0
  %4264 = vmatpush1.bf16.msra.mxu0 0
  %4265 = vmatprep.subr.bf16.mxu0 0
  %4266 = vmatpush1.bf16.msra.mxu0 0
  %4267 = vmatprep.subr.bf16.mxu0 0
  %4268 = vmatpush1.bf16.msra.mxu0 0
  %4269 = vmatprep.subr.bf16.mxu0 0
  %4270 = vmatpush1.bf16.msra.mxu0 0
  %4271 = vmatprep.subr.bf16.mxu0 0
  %4272 = vmatpush1.bf16.msra.mxu0 0
  %4273 = vmatprep.subr.bf16.mxu0 0
  %4274 = vmatpush1.bf16.msra.mxu0 0
  %4275 = vmatprep.subr.bf16.mxu0 0
  %4276 = vmatpush1.bf16.msra.mxu0 0
  %4277 = vmatprep.mubr.bf16.mxu0 0
  %4278 = vmatmul.mubr.bf16.gmra.mrb[0].mxu0 %v4243
  %v4279 = vpop.f32.mrb[0].mxu0
  %v4280 = vadd.f32 %v4228, %v4279
  %v4281 = vpop.f32.mrb[0].mxu0
  %v4282 = vpop.f32.mrb[0].mxu0
  %v4283 = vadd.f32 %v4228, %v4282
  %v4284 = vpop.f32.mrb[0].mxu0
  %4285 = vdwg.mxu0
  %v4286 = vmul.f32 %v4280, %v4280
  %v4287 = vmul.f32 %v4283, %v4283
  %v4288 = vmul.f32 %v4280, %v4286
  %v4289 = vmul.f32 %v4283, %v4287
  %v4290 = vmul.f32 %v4288, 0.044715
  %v4291 = vmul.f32 %v4289, 0.044715
  %v4292 = vadd.f32 %v4280, %v4290
  %v4293 = vadd.f32 %v4283, %v4291
  %v4294 = vmul.f32 %v4292, 0.7978846
  %v4295 = vmul.f32 %v4293, 0.7978846
  %v4296 = vtanh.pop %v4294
  %v4297 = vtanh.pop %v4295
  %v4298 = vadd.f32 %v4296, 1.0
  %v4299 = vadd.f32 %v4297, 1.0
  %v4300 = vmul.f32 %v4298, 0.5
  %v4301 = vmul.f32 %v4299, 0.5
  %v4302 = vmul.f32 %v4280, %v4300
  %v4303 = vmul.f32 %v4283, %v4301
  %s4304 = scalar_lea.vmem %s16, 64
  %v4305 = vld [vmem:[%s4304] sm:$0xf]
  %v4306 = vld [vmem:[%s4304 + $0x4] sm:$0xf]
  %v4307 = vld [vmem:[%s4304 + $0x8] sm:$0xf]
  %v4308 = vld [vmem:[%s4304 + $0xc] sm:$0xf]
  %v4309 = vld [vmem:[%s4304 + $0x10] sm:$0xf]
  %v4310 = vld [vmem:[%s4304 + $0x14] sm:$0xf]
  %v4311 = vld [vmem:[%s4304 + $0x18] sm:$0xf]
  %v4312 = vld [vmem:[%s4304 + $0x1c] sm:$0xf]
  %v4313 = vld [vmem:[%s4304 + $0x20] sm:$0xf]
  %v4314 = vld [vmem:[%s4304 + $0x24] sm:$0xf]
  %v4315 = vld [vmem:[%s4304 + $0x28] sm:$0xf]
  %v4316 = vld [vmem:[%s4304 + $0x2c] sm:$0xf]
  %v4317 = vld [vmem:[%s4304 + $0x30] sm:$0xf]
  %v4318 = vld [vmem:[%s4304 + $0x34] sm:$0xf]
  %v4319 = vld [vmem:[%s4304 + $0x38] sm:$0xf]
  %v4320 = vld [vmem:[%s4304 + $0x3c] sm:$0xf]
  %v4321 = vpack.c.bf16 %v4303, %v4302
  %s4322 = scalar_lea.vmem %s17, 1
  %v4323 = vld [vmem:[%s4322] sm:$0x1]
  %v4325 = vlaneseq
  %v4326 = vshrl.u32 %v4325, 7
  %v4327 = vsub.s32 0, %v4326
  %v4328 = vrot.slane %v4323, %v4327
  %v4346 = vunpack.c.l.b16 %v4305
  %v4347 = vunpack.c.l.b16 %v4306
  %v4348 = vunpack.c.l.b16 %v4307
  %v4349 = vunpack.c.l.b16 %v4308
  %v4350 = vunpack.c.l.b16 %v4309
  %v4351 = vunpack.c.l.b16 %v4310
  %v4352 = vunpack.c.l.b16 %v4311
  %v4353 = vunpack.c.l.b16 %v4312
  %v4354 = vunpack.c.l.b16 %v4313
  %v4355 = vunpack.c.l.b16 %v4314
  %v4356 = vunpack.c.l.b16 %v4315
  %v4357 = vunpack.c.l.b16 %v4316
  %v4358 = vunpack.c.l.b16 %v4317
  %v4359 = vunpack.c.l.b16 %v4318
  %v4360 = vunpack.c.l.b16 %v4319
  %v4361 = vunpack.c.l.b16 %v4320
  %v4362 = vpack.c.b16 %v4347, %v4346
  %v4363 = vpack.c.b16 %v4349, %v4348
  %v4364 = vpack.c.b16 %v4351, %v4350
  %v4365 = vpack.c.b16 %v4353, %v4352
  %v4366 = vpack.c.b16 %v4355, %v4354
  %v4367 = vpack.c.b16 %v4357, %v4356
  %v4368 = vpack.c.b16 %v4359, %v4358
  %v4369 = vpack.c.b16 %v4361, %v4360
  %4378 = vmatprep.subr.bf16.mxu0 0
  %4379 = vmatpush1.bf16.msra.mxu0 %v4362
  %4380 = vmatprep.subr.bf16.mxu0 0
  %4381 = vmatpush1.bf16.msra.mxu0 %v4363
  %4382 = vmatprep.subr.bf16.mxu0 0
  %4383 = vmatpush1.bf16.msra.mxu0 %v4364
  %4384 = vmatprep.subr.bf16.mxu0 0
  %4385 = vmatpush1.bf16.msra.mxu0 %v4365
  %4386 = vmatprep.subr.bf16.mxu0 0
  %4387 = vmatpush1.bf16.msra.mxu0 %v4366
  %4388 = vmatprep.subr.bf16.mxu0 0
  %4389 = vmatpush1.bf16.msra.mxu0 %v4367
  %4390 = vmatprep.subr.bf16.mxu0 0
  %4391 = vmatpush1.bf16.msra.mxu0 %v4368
  %4392 = vmatprep.subr.bf16.mxu0 0
  %4393 = vmatpush1.bf16.msra.mxu0 %v4369
  %4394 = vmatprep.subr.bf16.mxu0 0
  %4395 = vmatpush1.bf16.msra.mxu0 0
  %4396 = vmatprep.subr.bf16.mxu0 0
  %4397 = vmatpush1.bf16.msra.mxu0 0
  %4398 = vmatprep.subr.bf16.mxu0 0
  %4399 = vmatpush1.bf16.msra.mxu0 0
  %4400 = vmatprep.subr.bf16.mxu0 0
  %4401 = vmatpush1.bf16.msra.mxu0 0
  %4402 = vmatprep.subr.bf16.mxu0 0
  %4403 = vmatpush1.bf16.msra.mxu0 0
  %4404 = vmatprep.subr.bf16.mxu0 0
  %4405 = vmatpush1.bf16.msra.mxu0 0
  %4406 = vmatprep.subr.bf16.mxu0 0
  %4407 = vmatpush1.bf16.msra.mxu0 0
  %4408 = vmatprep.subr.bf16.mxu0 0
  %4409 = vmatpush1.bf16.msra.mxu0 0
  %4410 = vmatprep.mubr.bf16.mxu0 0
  %4411 = vmatmul.mubr.bf16.gmra.mrb[0].mxu0 %v4321
  %v4412 = vpop.f32.mrb[0].mxu0
  %v4413 = vadd.f32 %v4328, %v4412
  %v4414 = vpop.f32.mrb[0].mxu0
  %v4415 = vpop.f32.mrb[0].mxu0
  %v4416 = vadd.f32 %v4328, %v4415
  %v4417 = vpop.f32.mrb[0].mxu0
  %4418 = vdwg.mxu0
  %v4419 = vadd.f32 %v4168, %v4413
  %v4420 = vadd.f32 %v4169, %v4416
  %v4421 = vld [vmem:[%s18] sm:$0x1]
  %v4422 = vld [vmem:[%s19] sm:$0x1]
  %v4423 = vsel %vm105, %v4419, 0.0
  %4424 = vadd.xlane.f32.xlu0 %v4423
  %v4425 = vpop.xlane.xlu0 %4424
  %v4426 = vsel %vm105, %v4420, 0.0
  %4427 = vadd.xlane.f32.xlu0 %v4426
  %v4428 = vpop.xlane.xlu0 %4427
  %v4429 = vmul.f32 %v4425, %v112
  %v4430 = vmul.f32 %v4428, %v112
  %v4431 = vsub.f32 %v4419, %v4429
  %v4432 = vsub.f32 %v4420, %v4430
  %v4433 = vmul.f32 %v4431, %v4431
  %v4434 = vmul.f32 %v4432, %v4432
  %v4435 = vsel %vm105, %v4433, 0.0
  %4436 = vadd.xlane.f32.xlu0 %v4435
  %v4437 = vpop.xlane.xlu0 %4436
  %v4438 = vsel %vm105, %v4434, 0.0
  %4439 = vadd.xlane.f32.xlu0 %v4438
  %v4440 = vpop.xlane.xlu0 %4439
  %v4441 = vmul.f32 %v4437, %v112
  %v4442 = vmul.f32 %v4440, %v112
  %v4443 = vadd.f32 %v4441, 1e-05
  %v4444 = vadd.f32 %v4442, 1e-05
  %v4445 = vrsqrt.pop %v4443
  %v4446 = vrsqrt.pop %v4444
  %v4447 = vmul.f32 %v4431, %v4445
  %v4448 = vmul.f32 %v4432, %v4446
  %v4450 = vlaneseq
  %v4451 = vshrl.u32 %v4450, 7
  %v4452 = vsub.s32 0, %v4451
  %v4453 = vrot.slane %v4421, %v4452
  %v4455 = vmul.f32 %v4447, %v4453
  %v4456 = vmul.f32 %v4448, %v4453
  %v4458 = vlaneseq
  %v4459 = vshrl.u32 %v4458, 7
  %v4460 = vsub.s32 0, %v4459
  %v4461 = vrot.slane %v4422, %v4460
  %v4463 = vadd.f32 %v4455, %v4461
  %v4464 = vadd.f32 %v4456, %v4461
  %v4465 = vsel %vm105, %v4463, 0.0
  %v4466 = vrot.slane %v4465, 4
  %v4467 = vadd.f32 %v4465, %v4466
  %v4468 = vrot.slane %v4467, 2
  %v4469 = vadd.f32 %v4467, %v4468
  %v4470 = vrot.slane %v4469, 1
  %v4471 = vadd.f32 %v4469, %v4470
  %v4472 = vsel %vm105, %v4464, 0.0
  %v4473 = vrot.slane %v4472, 4
  %v4474 = vadd.f32 %v4472, %v4473
  %v4475 = vrot.slane %v4474, 2
  %v4476 = vadd.f32 %v4474, %v4475
  %v4477 = vrot.slane %v4476, 1
  %v4478 = vadd.f32 %v4476, %v4477
  %v4479 = vrcp.pop 8.0
  %v4480 = vmul.f32 %v4471, %v4479
  %v4481 = vmul.f32 %v4478, %v4479
  %v4482 = vld [vmem:[%s20] sm:$0x1]
  %v4484 = vlaneseq
  %v4485 = vshrl.u32 %v4484, 7
  %v4486 = vsub.s32 0, %v4485
  %v4487 = vrot.slane %v4482, %v4486
  %v4489 = vmul.f32 %v4480, %v4487
  %v4490 = vmul.f32 %v4481, %v4487
  %v4493 = vrot.slane %v4490, 7
  %vm4494 = vcmask 1041409
  %v4495 = vsel %vm4494, %v4493, %v4489
  %vm4497 = vcmask 254976
  %v4498 = vsel %vm4497, %v4495, 0.0
  %4499 = vadd.xlane.f32.xlu0 %v4498
  %v4500 = vpop.xlane.xlu0 %4499
  %v4501 = vld [vmem:[#allocation2] sm:$0x1]
  %v4503 = vlaneseq
  %v4504 = vshrl.u32 %v4503, 7
  %v4505 = vsub.s32 0, %v4504
  %v4506 = vrot.slane %v4501, %v4505
  %v4508 = vadd.f32 %v4500, %v4506
  %vm4509 = vcmp.eq.s32.totalorder %v79, %v77
  %4511 = vset.pattern.permute.xlu0 0
  %4512 = vperm.xlu0 %4511, %v4508
  %v4513 = vpop.permute.xlu0 %4512
  %v4515 = vsel %vm4509, %v4513, 0.0
  %vm4516 = vcmask 1041408
  %v4517 = vsel %vm4516, %v4515, 0.0
  %v4518 = vrot.slane %v4517, 4
  %v4519 = vadd.f32 %v4517, %v4518
  %v4520 = vrot.slane %v4519, 2
  %v4521 = vadd.f32 %v4519, %v4520
  %v4522 = vrot.slane %v4521, 1
  %v4523 = vadd.f32 %v4521, %v4522
  %4524 = vst [vmem:[%s22] sm:$0x1] %v4523
  // Predicated region
  $region90: #{gpt2_reward_forward.1} parent=0 // pred_check
    _
  $region91: #{gpt2_reward_forward.1} parent=0 // pred_check_branch
    %4526 = sbr.rel (0) target = $region93
  $region92: #{gpt2_reward_forward.1} parent=0 // pred_region
    _
  $region93: #{gpt2_reward_forward.1} parent=0 // pred_fallthru
    _
  // Predicated region
  $region94: #{gpt2_reward_forward.1} parent=0 // pred_check
    _
  $region95: #{gpt2_reward_forward.1} parent=0 // pred_check_branch
    %4528 = sbr.rel (0) target = $region97
  $region96: #{gpt2_reward_forward.1} parent=0 // pred_region
    _
  $region97: #{gpt2_reward_forward.1} parent=0 // pred_fallthru
    _

</llo_original>
